<compile_context>
chip_gen: v7x
topology: tpu7x:2x2x1
jax: 0.10.0
libtpu: 0.0.40
codegen_flags: <defaults>
</compile_context>

<pallas_src>
import math
import jax
import jax.numpy as jnp
from jax.experimental import pallas as pl
from jax.experimental.pallas import tpu as pltpu

# ----------------------- small T5 config -----------------------
D_MODEL   = 32     # config.d_model
D_KV      = 8      # config.d_kv
N_HEADS   = 4      # config.num_heads
INNER     = N_HEADS * D_KV   # 32
D_FF      = 64     # config.d_ff
N_LAYERS  = 2      # config.num_layers
VOCAB     = 64     # config.vocab_size
N_BUCKETS = 32     # config.relative_attention_num_buckets
MAX_DIST  = 128    # config.relative_attention_max_distance
EPS       = 1e-6   # config.layer_norm_epsilon
HEAD_OUT  = 16     # head_out_features

B  = 2             # batch
S  = 8             # decoder sequence length
BS = B * S         # 16
HB = N_HEADS * B   # 8  (head x batch, flattened batch dim of attention einsums)

HEAD_PAD = 32      # per-head Dkv padded 8 -> 32 with zeros (no lane slices needed)
LANE     = 128     # lane-dense output / wi / head-weight width

# ----------------------- w32 slab layout (rows x 32 lanes, f32) -----------------------
WQ_OFF     = 0                                   # (H*D, 32): per-head Wq, cols[:D_KV] used
WK_OFF     = WQ_OFF + N_HEADS * D_MODEL          # 128
WV_OFF     = WK_OFF + N_HEADS * D_MODEL          # 256
WO_OFF     = WV_OFF + N_HEADS * D_MODEL          # 384  (H*32, 32): per-head Wo, rows[:D_KV] used
WOFF_OFF   = WO_OFF + N_HEADS * HEAD_PAD         # 512  (D_FF, D)
LN1_OFF    = WOFF_OFF + D_FF                     # 576  (1, D)
LN2_OFF    = LN1_OFF + 8                         # 584  (1, D)
L32_STRIDE = LN2_OFF + 8                         # 592  per-layer stride (mult of 8)
LNF_OFF    = N_LAYERS * L32_STRIDE               # 1184 (1, D)
BIAS_OFF   = LNF_OFF + 8                         # 1192 (HB*S, S): rel-pos bias + causal mask
R32        = BIAS_OFF + HB * S                   # 1256 rows

# ----------------------- w128 slab layout (rows x 128 lanes, f32) -----------------------
WI_ROWS = D_MODEL                                # 32 rows/layer: fused [wi0 | wi1]
WH_OFF  = N_LAYERS * WI_ROWS                     # 64  (D, 128): head weight, cols[:HEAD_OUT] used
R128    = WH_OFF + D_MODEL                       # 96 rows


# ----------------------- shared math helpers -----------------------
def _rmsnorm(x, w):
    # T5LayerNorm: no mean subtraction, no bias
    var = jnp.mean(x * x, axis=-1, keepdims=True)
    return (x * jax.lax.rsqrt(var + EPS)) * w


def _gelu_new(x):
    # HF NewGELUActivation (tanh approximation)
    return 0.5 * x * (1.0 + jnp.tanh(math.sqrt(2.0 / math.pi) * (x + 0.044715 * x * x * x)))


# ----------------------- fused Pallas kernel -----------------------
def t5_fused_kernel(h_ref, w32_ref, w128_ref, out_ref):
    """Entire T5 decoder stack + final RMSNorm + bias-free head, one invocation.

    h_ref    : (BS, D)       embedded inputs (batch flattened)
    w32_ref  : (R32, 32)     all 32-lane-wide weights + rel-pos bias (see layout above)
    w128_ref : (R128, 128)   fused wi0|wi1 per layer + zero-padded head weight
    out_ref  : (BS, 128)     lane-dense output; real logits live in cols [:HEAD_OUT]
    """
    h = h_ref[...]                                                        # (BS, D)
    # rel-pos bias (+ causal mask), broadcast per (head, batch); loaded once, hoisted
    bias = w32_ref[BIAS_OFF:BIAS_OFF + HB * S, 0:S].reshape(HB, S, S)     # (HB, S, S)

    for l in range(N_LAYERS):                    # static unroll; weights stay VMEM-resident
        base = l * L32_STRIDE

        # ---------------- self-attention sub-layer ----------------
        hn = _rmsnorm(h, w32_ref[base + LN1_OFF:base + LN1_OFF + 1, :])   # (BS, D)
        hn_b = jnp.broadcast_to(hn[None], (N_HEADS, BS, D_MODEL))         # (H, BS, D)

        wq = w32_ref[base + WQ_OFF:base + WQ_OFF + N_HEADS * D_MODEL, :]
        wk = w32_ref[base + WK_OFF:base + WK_OFF + N_HEADS * D_MODEL, :]
        wv = w32_ref[base + WV_OFF:base + WV_OFF + N_HEADS * D_MODEL, :]
        wq = wq.reshape(N_HEADS, D_MODEL, HEAD_PAD)                       # leading-only reshape
        wk = wk.reshape(N_HEADS, D_MODEL, HEAD_PAD)
        wv = wv.reshape(N_HEADS, D_MODEL, HEAD_PAD)

        # head-batched projections; padded cols (>= D_KV) are exactly zero
        q = jnp.einsum('hnd,hdk->hnk', hn_b, wq, preferred_element_type=jnp.float32)
        k = jnp.einsum('hnd,hdk->hnk', hn_b, wk, preferred_element_type=jnp.float32)
        v = jnp.einsum('hnd,hdk->hnk', hn_b, wv, preferred_element_type=jnp.float32)
        q = q.reshape(HB, S, HEAD_PAD)                                    # (H*B, S, 32)
        k = k.reshape(HB, S, HEAD_PAD)
        v = v.reshape(HB, S, HEAD_PAD)

        # T5: no 1/sqrt(d_k) scaling; zero padding contributes nothing to the dot
        s = jnp.einsum('bqd,bkd->bqk', q, k, preferred_element_type=jnp.float32)   # (HB, S, S)
        s = s + bias
        m = jnp.max(s, axis=-1, keepdims=True)        # keep: finfo.min mask relies on it
        e = jnp.exp(s - m)
        p = e * pl.reciprocal(jnp.sum(e, axis=-1, keepdims=True), approx=False)
        ctx = jnp.einsum('bqk,bkd->bqd', p, v, preferred_element_type=jnp.float32)  # (HB, S, 32)
        ctx = ctx.reshape(N_HEADS, BS, HEAD_PAD)                                     # (H, BS, 32)

        wo = w32_ref[base + WO_OFF:base + WO_OFF + N_HEADS * HEAD_PAD, :]
        wo = wo.reshape(N_HEADS, HEAD_PAD, D_MODEL)
        o = jnp.einsum('hnd,hde->hne', ctx, wo, preferred_element_type=jnp.float32)  # (H, BS, D)
        h = h + jnp.sum(o, axis=0)                                                   # sum over heads

        # ---------------- gated-gelu feed-forward sub-layer ----------------
        hn2 = _rmsnorm(h, w32_ref[base + LN2_OFF:base + LN2_OFF + 1, :])
        wi = w128_ref[l * WI_ROWS:(l + 1) * WI_ROWS, :]                    # (D, 2*D_FF)
        wi01 = jnp.dot(hn2, wi, preferred_element_type=jnp.float32)        # (BS, 2*D_FF)
        g = _gelu_new(wi01[:, :D_FF]) * wi01[:, D_FF:]
        woff = w32_ref[base + WOFF_OFF:base + WOFF_OFF + D_FF, :]          # (D_FF, D)
        h = h + jnp.dot(g, woff, preferred_element_type=jnp.float32)

    # ---------------- final RMSNorm + bias-free head ----------------
    hf = _rmsnorm(h, w32_ref[LNF_OFF:LNF_OFF + 1, :])
    wh = w128_ref[WH_OFF:WH_OFF + D_MODEL, :]                              # (D, 128), cols>=16 zero
    out_ref[...] = jnp.dot(hf, wh, preferred_element_type=jnp.float32)     # lane-dense store


_VMEM = pl.BlockSpec(memory_space=pltpu.MemorySpace.VMEM)

_fused_call = pl.pallas_call(
    t5_fused_kernel,
    out_shape=jax.ShapeDtypeStruct((BS, LANE), jnp.float32),
    in_specs=[_VMEM, _VMEM, _VMEM],
    out_specs=_VMEM,
)


# ----------------------- one-time param packing (hoisted out of the forward) -----------------------
def compute_position_bias(rel_emb):
    """Decoder relative position bias (+ causal mask folded in). rel_emb: (N_BUCKETS, H)."""
    ctx = jnp.arange(S)[:, None]          # query positions
    mem = jnp.arange(S)[None, :]          # key positions
    rel_pos = mem - ctx
    # bidirectional = False (decoder)
    rp = -jnp.minimum(rel_pos, 0)
    max_exact = N_BUCKETS // 2
    is_small = rp < max_exact
    rp_f = jnp.maximum(rp, 1).astype(jnp.float32)
    large = max_exact + (
        jnp.log(rp_f / max_exact) / math.log(MAX_DIST / max_exact) * (N_BUCKETS - max_exact)
    ).astype(jnp.int32)
    large = jnp.minimum(large, N_BUCKETS - 1)
    buckets = jnp.where(is_small, rp, large)          # (S, S)
    bias = rel_emb[buckets]                           # (S, S, H)
    bias = jnp.transpose(bias, (2, 0, 1))             # (H, S, S)
    causal_ok = mem <= ctx
    mask = jnp.where(causal_ok, 0.0, jnp.finfo(jnp.float32).min)
    return (bias + mask[None, :, :]).astype(jnp.float32)


def prepare_params(params):
    """Pack all weights + bias into two VMEM slabs. Runs ONCE (not per forward)."""
    bias = compute_position_bias(params["rel_bias"])                          # (H, S, S)
    bias_hb = jnp.broadcast_to(bias[:, None], (N_HEADS, B, S, S)).reshape(HB * S, S)

    w32 = jnp.zeros((R32, D_MODEL), jnp.float32)
    w128 = jnp.zeros((R128, LANE), jnp.float32)

    def split_cols(w):   # (D, INNER) -> (H*D, HEAD_PAD); per head, cols[:D_KV] = head block
        out = jnp.zeros((N_HEADS * D_MODEL, HEAD_PAD), jnp.float32)
        for hd in range(N_HEADS):
            out = out.at[hd * D_MODEL:(hd + 1) * D_MODEL, :D_KV].set(
                w[:, hd * D_KV:(hd + 1) * D_KV])
        return out

    def split_rows(w):   # (INNER, D) -> (H*HEAD_PAD, D); per head, rows[:D_KV] = head block
        out = jnp.zeros((N_HEADS * HEAD_PAD, D_MODEL), jnp.float32)
        for hd in range(N_HEADS):
            out = out.at[hd * HEAD_PAD:hd * HEAD_PAD + D_KV, :].set(
                w[hd * D_KV:(hd + 1) * D_KV, :])
        return out

    for l, lp in enumerate(params["layers"]):
        base = l * L32_STRIDE
        w32 = w32.at[base + WQ_OFF:base + WQ_OFF + N_HEADS * D_MODEL].set(split_cols(lp["wq"]))
        w32 = w32.at[base + WK_OFF:base + WK_OFF + N_HEADS * D_MODEL].set(split_cols(lp["wk"]))
        w32 = w32.at[base + WV_OFF:base + WV_OFF + N_HEADS * D_MODEL].set(split_cols(lp["wv"]))
        w32 = w32.at[base + WO_OFF:base + WO_OFF + N_HEADS * HEAD_PAD].set(split_rows(lp["wo"]))
        w32 = w32.at[base + WOFF_OFF:base + WOFF_OFF + D_FF].set(lp["woff"])
        w32 = w32.at[base + LN1_OFF].set(lp["ln1"][0])
        w32 = w32.at[base + LN2_OFF].set(lp["ln2"][0])
        w128 = w128.at[l * WI_ROWS:(l + 1) * WI_ROWS].set(
            jnp.concatenate([lp["wi0"], lp["wi1"]], axis=1))

    w32 = w32.at[LNF_OFF].set(params["ln_f"][0])
    w32 = w32.at[BIAS_OFF:BIAS_OFF + HB * S, :S].set(bias_hb)
    w128 = w128.at[WH_OFF:WH_OFF + D_MODEL, :HEAD_OUT].set(params["head"])
    return {"embed": params["embed"], "w32": w32, "w128": w128}


# ----------------------- jitted forward (one dispatch) -----------------------
# TODO(synk): the embedding gather stays as an XLA op (fused into this jit); dropout = identity.
@jax.jit
def t5_forward(input_ids, embed, w32, w128):
    h = embed[input_ids].reshape(BS, D_MODEL).astype(jnp.float32)   # (BS, D)
    out = _fused_call(h, w32, w128)                                 # (BS, 128) lane-dense
    return out[:, :HEAD_OUT].reshape(B, S, HEAD_OUT)


def t5_decoder_with_head(input_ids, prepared):
    return t5_forward(input_ids, prepared["embed"], prepared["w32"], prepared["w128"])


# ----------------------- params init + pure-JAX reference -----------------------
def init_params(key):
    ks = jax.random.split(key, 4 + N_LAYERS)
    params = {
        "embed": 0.05 * jax.random.normal(ks[0], (VOCAB, D_MODEL), jnp.float32),
        "rel_bias": 0.05 * jax.random.normal(ks[1], (N_BUCKETS, N_HEADS), jnp.float32),
        "ln_f": jnp.ones((1, D_MODEL), jnp.float32),
        "head": 0.05 * jax.random.normal(ks[2], (D_MODEL, HEAD_OUT), jnp.float32),
        "layers": [],
    }
    for li in range(N_LAYERS):
        lk = jax.random.split(ks[4 + li], 7)
        params["layers"].append({
            "ln1": jnp.ones((1, D_MODEL), jnp.float32),
            "wq": 0.05 * jax.random.normal(lk[0], (D_MODEL, INNER), jnp.float32),
            "wk": 0.05 * jax.random.normal(lk[1], (D_MODEL, INNER), jnp.float32),
            "wv": 0.05 * jax.random.normal(lk[2], (D_MODEL, INNER), jnp.float32),
            "wo": 0.05 * jax.random.normal(lk[3], (INNER, D_MODEL), jnp.float32),
            "ln2": jnp.ones((1, D_MODEL), jnp.float32),
            "wi0": 0.05 * jax.random.normal(lk[4], (D_MODEL, D_FF), jnp.float32),
            "wi1": 0.05 * jax.random.normal(lk[5], (D_MODEL, D_FF), jnp.float32),
            "woff": 0.05 * jax.random.normal(lk[6], (D_FF, D_MODEL), jnp.float32),
        })
    return params


def _ref_forward(input_ids, params):
    h = params["embed"][input_ids].astype(jnp.float32)
    bias = compute_position_bias(params["rel_bias"])
    for lp in params["layers"]:
        hn = _rmsnorm(h, lp["ln1"])
        q = hn @ lp["wq"]
        k = hn @ lp["wk"]
        v = hn @ lp["wv"]
        qh = q.reshape(B, S, N_HEADS, D_KV)
        kh = k.reshape(B, S, N_HEADS, D_KV)
        vh = v.reshape(B, S, N_HEADS, D_KV)
        scores = jnp.einsum("bqhd,bkhd->bhqk", qh, kh) + bias[None]
        p = jax.nn.softmax(scores, axis=-1)
        o = jnp.einsum("bhqk,bkhd->bqhd", p, vh).reshape(B, S, INNER)
        h = h + o @ lp["wo"]
        hn2 = _rmsnorm(h, lp["ln2"])
        h = h + (_gelu_new(hn2 @ lp["wi0"]) * (hn2 @ lp["wi1"])) @ lp["woff"]
    return _rmsnorm(h, params["ln_f"]) @ params["head"]


if __name__ == "__main__":
    key = jax.random.PRNGKey(0)
    pkey, ikey = jax.random.split(key)
    params = init_params(pkey)
    input_ids = jax.random.randint(ikey, (B, S), 0, VOCAB, dtype=jnp.int32)

    # hoisted: weight packing + rel-pos bias computed once, outside the forward path
    prepared = prepare_params(params)

    out = t5_decoder_with_head(input_ids, prepared)
    out = jax.block_until_ready(out)

    ref = jax.block_until_ready(_ref_forward(input_ids, params))
    assert out.shape == (B, S, HEAD_OUT), out.shape
    assert bool(jnp.all(jnp.isfinite(out)))
    assert jnp.allclose(out, ref, atol=1e-4, rtol=1e-4), float(jnp.max(jnp.abs(out - ref)))

    print("KERNEL_OK")
</pallas_src>

<mosaic_0001>
module attributes {stable_mosaic.version = 11 : i64} {
  func.func @t5_fused_kernel(%arg0: memref<16x32xf32, #tpu.memory_space<vmem>>, %arg1: memref<1256x32xf32, #tpu.memory_space<vmem>>, %arg2: memref<96x128xf32, #tpu.memory_space<vmem>>, %arg3: memref<16x128xf32, #tpu.memory_space<vmem>>) attributes {dimension_semantics = [], scalar_prefetch = 0 : i64, scratch_operands = 0 : i64, tpu.core_type = #tpu.core_type<tc>} {
    %c0 = arith.constant 0 : index
    %c0_0 = arith.constant 0 : index
    %0 = vector.load %arg0[%c0, %c0_0] : memref<16x32xf32, #tpu.memory_space<vmem>>, vector<16x32xf32>
    %c1192 = arith.constant 1192 : index
    %c0_1 = arith.constant 0 : index
    %1 = vector.load %arg1[%c1192, %c0_1] : memref<1256x32xf32, #tpu.memory_space<vmem>>, vector<64x8xf32>
    %2 = vector.shape_cast %1 : vector<64x8xf32> to vector<8x8x8xf32>
    %c576 = arith.constant 576 : index
    %c0_2 = arith.constant 0 : index
    %3 = vector.load %arg1[%c576, %c0_2] : memref<1256x32xf32, #tpu.memory_space<vmem>>, vector<1x32xf32>
    %4 = arith.mulf %0, %0 : vector<16x32xf32>
    %cst = arith.constant dense<0.000000e+00> : vector<16xf32>
    %5 = vector.multi_reduction <add>, %4, %cst [1] : vector<16x32xf32> to vector<16xf32>
    %6 = vector.shape_cast %5 : vector<16xf32> to vector<16x1xf32>
    %cst_3 = arith.constant 3.200000e+01 : f32
    %7 = vector.broadcast %cst_3 : f32 to vector<16x1xf32>
    %8 = arith.divf %6, %7 : vector<16x1xf32>
    %cst_4 = arith.constant 9.99999997E-7 : f32
    %9 = vector.broadcast %cst_4 : f32 to vector<16x1xf32>
    %10 = arith.addf %8, %9 : vector<16x1xf32>
    %11 = math.rsqrt %10 : vector<16x1xf32>
    %12 = vector.broadcast %11 : vector<16x1xf32> to vector<16x32xf32>
    %13 = arith.mulf %0, %12 : vector<16x32xf32>
    %14 = vector.broadcast %3 : vector<1x32xf32> to vector<16x32xf32>
    %15 = arith.mulf %13, %14 : vector<16x32xf32>
    %16 = vector.shape_cast %15 : vector<16x32xf32> to vector<1x16x32xf32>
    %17 = vector.shape_cast %16 : vector<1x16x32xf32> to vector<1x16x32xf32>
    %18 = vector.broadcast %17 : vector<1x16x32xf32> to vector<4x16x32xf32>
    %c0_5 = arith.constant 0 : index
    %c0_6 = arith.constant 0 : index
    %19 = vector.load %arg1[%c0_5, %c0_6] : memref<1256x32xf32, #tpu.memory_space<vmem>>, vector<128x32xf32>
    %c128 = arith.constant 128 : index
    %c0_7 = arith.constant 0 : index
    %20 = vector.load %arg1[%c128, %c0_7] : memref<1256x32xf32, #tpu.memory_space<vmem>>, vector<128x32xf32>
    %c256 = arith.constant 256 : index
    %c0_8 = arith.constant 0 : index
    %21 = vector.load %arg1[%c256, %c0_8] : memref<1256x32xf32, #tpu.memory_space<vmem>>, vector<128x32xf32>
    %22 = vector.shape_cast %19 : vector<128x32xf32> to vector<4x32x32xf32>
    %23 = vector.shape_cast %20 : vector<128x32xf32> to vector<4x32x32xf32>
    %24 = vector.shape_cast %21 : vector<128x32xf32> to vector<4x32x32xf32>
    "tpu.trace_start"() <{level = 10 : i32, message = "hnd,hdk->hnk"}> : () -> ()
    %cst_9 = arith.constant dense<0.000000e+00> : vector<4x16x32xf32>
    %25 = tpu.matmul %18, %22, %cst_9 {dimension_numbers = #tpu.dot_dimension_numbers<[2], [1], [1], [2], [0, 0, 0, 1, 1, 2], [0], [0]>} : vector<4x16x32xf32>, vector<4x32x32xf32>, vector<4x16x32xf32> -> vector<4x16x32xf32>
    %cst_10 = arith.constant dense<0.000000e+00> : vector<4x16x32xf32>
    %26 = tpu.matmul %18, %23, %cst_10 {dimension_numbers = #tpu.dot_dimension_numbers<[2], [1], [1], [2], [0, 0, 0, 1, 1, 2], [0], [0]>} : vector<4x16x32xf32>, vector<4x32x32xf32>, vector<4x16x32xf32> -> vector<4x16x32xf32>
    %cst_11 = arith.constant dense<0.000000e+00> : vector<4x16x32xf32>
    %27 = tpu.matmul %18, %24, %cst_11 {dimension_numbers = #tpu.dot_dimension_numbers<[2], [1], [1], [2], [0, 0, 0, 1, 1, 2], [0], [0]>} : vector<4x16x32xf32>, vector<4x32x32xf32>, vector<4x16x32xf32> -> vector<4x16x32xf32>
    "tpu.trace_stop"() : () -> ()
    %28 = vector.shape_cast %25 : vector<4x16x32xf32> to vector<8x8x32xf32>
    %29 = vector.shape_cast %26 : vector<4x16x32xf32> to vector<8x8x32xf32>
    %30 = vector.shape_cast %27 : vector<4x16x32xf32> to vector<8x8x32xf32>
    "tpu.trace_start"() <{level = 10 : i32, message = "bqd,bkd->bqk"}> : () -> ()
    %cst_12 = arith.constant dense<0.000000e+00> : vector<8x8x8xf32>
    %31 = tpu.matmul %28, %29, %cst_12 {dimension_numbers = #tpu.dot_dimension_numbers<[2], [2], [1], [1], [0, 0, 0, 1, 1, 1], [0], [0]>} : vector<8x8x32xf32>, vector<8x8x32xf32>, vector<8x8x8xf32> -> vector<8x8x8xf32>
    "tpu.trace_stop"() : () -> ()
    %32 = arith.addf %31, %2 : vector<8x8x8xf32>
    %cst_13 = arith.constant dense<0xFF800000> : vector<8x8xf32>
    %33 = vector.multi_reduction <maximumf>, %32, %cst_13 [2] : vector<8x8x8xf32> to vector<8x8xf32>
    %34 = vector.shape_cast %33 : vector<8x8xf32> to vector<8x8x1xf32>
    %35 = vector.broadcast %34 : vector<8x8x1xf32> to vector<8x8x8xf32>
    %36 = arith.subf %32, %35 : vector<8x8x8xf32>
    %37 = math.exp %36 : vector<8x8x8xf32>
    %cst_14 = arith.constant dense<0.000000e+00> : vector<8x8xf32>
    %38 = vector.multi_reduction <add>, %37, %cst_14 [2] : vector<8x8x8xf32> to vector<8x8xf32>
    %39 = vector.shape_cast %38 : vector<8x8xf32> to vector<8x8x1xf32>
    %40 = tpu.reciprocal %39 : vector<8x8x1xf32> -> vector<8x8x1xf32>
    %41 = vector.broadcast %40 : vector<8x8x1xf32> to vector<8x8x8xf32>
    %42 = arith.mulf %37, %41 : vector<8x8x8xf32>
    "tpu.trace_start"() <{level = 10 : i32, message = "bqk,bkd->bqd"}> : () -> ()
    %cst_15 = arith.constant dense<0.000000e+00> : vector<8x8x32xf32>
    %43 = tpu.matmul %42, %30, %cst_15 {dimension_numbers = #tpu.dot_dimension_numbers<[2], [1], [1], [2], [0, 0, 0, 1, 1, 2], [0], [0]>} : vector<8x8x8xf32>, vector<8x8x32xf32>, vector<8x8x32xf32> -> vector<8x8x32xf32>
    "tpu.trace_stop"() : () -> ()
    %44 = vector.shape_cast %43 : vector<8x8x32xf32> to vector<4x16x32xf32>
    %c384 = arith.constant 384 : index
    %c0_16 = arith.constant 0 : index
    %45 = vector.load %arg1[%c384, %c0_16] : memref<1256x32xf32, #tpu.memory_space<vmem>>, vector<128x32xf32>
    %46 = vector.shape_cast %45 : vector<128x32xf32> to vector<4x32x32xf32>
    "tpu.trace_start"() <{level = 10 : i32, message = "hnd,hde->hne"}> : () -> ()
    %cst_17 = arith.constant dense<0.000000e+00> : vector<4x16x32xf32>
    %47 = tpu.matmul %44, %46, %cst_17 {dimension_numbers = #tpu.dot_dimension_numbers<[2], [1], [1], [2], [0, 0, 0, 1, 1, 2], [0], [0]>} : vector<4x16x32xf32>, vector<4x32x32xf32>, vector<4x16x32xf32> -> vector<4x16x32xf32>
    "tpu.trace_stop"() : () -> ()
    %cst_18 = arith.constant dense<0.000000e+00> : vector<16x32xf32>
    %48 = vector.multi_reduction <add>, %47, %cst_18 [0] : vector<4x16x32xf32> to vector<16x32xf32>
    %49 = arith.addf %0, %48 : vector<16x32xf32>
    %c584 = arith.constant 584 : index
    %c0_19 = arith.constant 0 : index
    %50 = vector.load %arg1[%c584, %c0_19] : memref<1256x32xf32, #tpu.memory_space<vmem>>, vector<1x32xf32>
    %51 = arith.mulf %49, %49 : vector<16x32xf32>
    %cst_20 = arith.constant dense<0.000000e+00> : vector<16xf32>
    %52 = vector.multi_reduction <add>, %51, %cst_20 [1] : vector<16x32xf32> to vector<16xf32>
    %53 = vector.shape_cast %52 : vector<16xf32> to vector<16x1xf32>
    %cst_21 = arith.constant 3.200000e+01 : f32
    %54 = vector.broadcast %cst_21 : f32 to vector<16x1xf32>
    %55 = arith.divf %53, %54 : vector<16x1xf32>
    %cst_22 = arith.constant 9.99999997E-7 : f32
    %56 = vector.broadcast %cst_22 : f32 to vector<16x1xf32>
    %57 = arith.addf %55, %56 : vector<16x1xf32>
    %58 = math.rsqrt %57 : vector<16x1xf32>
    %59 = vector.broadcast %58 : vector<16x1xf32> to vector<16x32xf32>
    %60 = arith.mulf %49, %59 : vector<16x32xf32>
    %61 = vector.broadcast %50 : vector<1x32xf32> to vector<16x32xf32>
    %62 = arith.mulf %60, %61 : vector<16x32xf32>
    %c0_23 = arith.constant 0 : index
    %c0_24 = arith.constant 0 : index
    %63 = vector.load %arg2[%c0_23, %c0_24] : memref<96x128xf32, #tpu.memory_space<vmem>>, vector<32x128xf32>
    %cst_25 = arith.constant dense<0.000000e+00> : vector<16x128xf32>
    %64 = tpu.matmul %62, %63, %cst_25 {dimension_numbers = #tpu.dot_dimension_numbers<[1], [0], [0], [1], [0, 0, 1, 1], [], []>} : vector<16x32xf32>, vector<32x128xf32>, vector<16x128xf32> -> vector<16x128xf32>
    %65 = vector.extract_strided_slice %64 {offsets = [0, 0], sizes = [16, 64], strides = [1, 1]} : vector<16x128xf32> to vector<16x64xf32>
    %cst_26 = arith.constant 5.000000e-01 : f32
    %66 = vector.broadcast %cst_26 : f32 to vector<16x64xf32>
    %67 = arith.mulf %66, %65 : vector<16x64xf32>
    %cst_27 = arith.constant 4.471500e-02 : f32
    %68 = vector.broadcast %cst_27 : f32 to vector<16x64xf32>
    %69 = arith.mulf %68, %65 : vector<16x64xf32>
    %70 = arith.mulf %69, %65 : vector<16x64xf32>
    %71 = arith.mulf %70, %65 : vector<16x64xf32>
    %72 = arith.addf %65, %71 : vector<16x64xf32>
    %cst_28 = arith.constant 0.797884583 : f32
    %73 = vector.broadcast %cst_28 : f32 to vector<16x64xf32>
    %74 = arith.mulf %73, %72 : vector<16x64xf32>
    %75 = math.tanh %74 : vector<16x64xf32>
    %cst_29 = arith.constant 1.000000e+00 : f32
    %76 = vector.broadcast %cst_29 : f32 to vector<16x64xf32>
    %77 = arith.addf %76, %75 : vector<16x64xf32>
    %78 = arith.mulf %67, %77 : vector<16x64xf32>
    %79 = vector.extract_strided_slice %64 {offsets = [0, 64], sizes = [16, 64], strides = [1, 1]} : vector<16x128xf32> to vector<16x64xf32>
    %80 = arith.mulf %78, %79 : vector<16x64xf32>
    %c512 = arith.constant 512 : index
    %c0_30 = arith.constant 0 : index
    %81 = vector.load %arg1[%c512, %c0_30] : memref<1256x32xf32, #tpu.memory_space<vmem>>, vector<64x32xf32>
    %cst_31 = arith.constant dense<0.000000e+00> : vector<16x32xf32>
    %82 = tpu.matmul %80, %81, %cst_31 {dimension_numbers = #tpu.dot_dimension_numbers<[1], [0], [0], [1], [0, 0, 1, 1], [], []>} : vector<16x64xf32>, vector<64x32xf32>, vector<16x32xf32> -> vector<16x32xf32>
    %83 = arith.addf %49, %82 : vector<16x32xf32>
    %c1168 = arith.constant 1168 : index
    %c0_32 = arith.constant 0 : index
    %84 = vector.load %arg1[%c1168, %c0_32] : memref<1256x32xf32, #tpu.memory_space<vmem>>, vector<1x32xf32>
    %85 = arith.mulf %83, %83 : vector<16x32xf32>
    %cst_33 = arith.constant dense<0.000000e+00> : vector<16xf32>
    %86 = vector.multi_reduction <add>, %85, %cst_33 [1] : vector<16x32xf32> to vector<16xf32>
    %87 = vector.shape_cast %86 : vector<16xf32> to vector<16x1xf32>
    %cst_34 = arith.constant 3.200000e+01 : f32
    %88 = vector.broadcast %cst_34 : f32 to vector<16x1xf32>
    %89 = arith.divf %87, %88 : vector<16x1xf32>
    %cst_35 = arith.constant 9.99999997E-7 : f32
    %90 = vector.broadcast %cst_35 : f32 to vector<16x1xf32>
    %91 = arith.addf %89, %90 : vector<16x1xf32>
    %92 = math.rsqrt %91 : vector<16x1xf32>
    %93 = vector.broadcast %92 : vector<16x1xf32> to vector<16x32xf32>
    %94 = arith.mulf %83, %93 : vector<16x32xf32>
    %95 = vector.broadcast %84 : vector<1x32xf32> to vector<16x32xf32>
    %96 = arith.mulf %94, %95 : vector<16x32xf32>
    %97 = vector.shape_cast %96 : vector<16x32xf32> to vector<1x16x32xf32>
    %98 = vector.shape_cast %97 : vector<1x16x32xf32> to vector<1x16x32xf32>
    %99 = vector.broadcast %98 : vector<1x16x32xf32> to vector<4x16x32xf32>
    %c592 = arith.constant 592 : index
    %c0_36 = arith.constant 0 : index
    %100 = vector.load %arg1[%c592, %c0_36] : memref<1256x32xf32, #tpu.memory_space<vmem>>, vector<128x32xf32>
    %c720 = arith.constant 720 : index
    %c0_37 = arith.constant 0 : index
    %101 = vector.load %arg1[%c720, %c0_37] : memref<1256x32xf32, #tpu.memory_space<vmem>>, vector<128x32xf32>
    %c848 = arith.constant 848 : index
    %c0_38 = arith.constant 0 : index
    %102 = vector.load %arg1[%c848, %c0_38] : memref<1256x32xf32, #tpu.memory_space<vmem>>, vector<128x32xf32>
    %103 = vector.shape_cast %100 : vector<128x32xf32> to vector<4x32x32xf32>
    %104 = vector.shape_cast %101 : vector<128x32xf32> to vector<4x32x32xf32>
    %105 = vector.shape_cast %102 : vector<128x32xf32> to vector<4x32x32xf32>
    "tpu.trace_start"() <{level = 10 : i32, message = "hnd,hdk->hnk"}> : () -> ()
    %cst_39 = arith.constant dense<0.000000e+00> : vector<4x16x32xf32>
    %106 = tpu.matmul %99, %103, %cst_39 {dimension_numbers = #tpu.dot_dimension_numbers<[2], [1], [1], [2], [0, 0, 0, 1, 1, 2], [0], [0]>} : vector<4x16x32xf32>, vector<4x32x32xf32>, vector<4x16x32xf32> -> vector<4x16x32xf32>
    %cst_40 = arith.constant dense<0.000000e+00> : vector<4x16x32xf32>
    %107 = tpu.matmul %99, %104, %cst_40 {dimension_numbers = #tpu.dot_dimension_numbers<[2], [1], [1], [2], [0, 0, 0, 1, 1, 2], [0], [0]>} : vector<4x16x32xf32>, vector<4x32x32xf32>, vector<4x16x32xf32> -> vector<4x16x32xf32>
    %cst_41 = arith.constant dense<0.000000e+00> : vector<4x16x32xf32>
    %108 = tpu.matmul %99, %105, %cst_41 {dimension_numbers = #tpu.dot_dimension_numbers<[2], [1], [1], [2], [0, 0, 0, 1, 1, 2], [0], [0]>} : vector<4x16x32xf32>, vector<4x32x32xf32>, vector<4x16x32xf32> -> vector<4x16x32xf32>
    "tpu.trace_stop"() : () -> ()
    %109 = vector.shape_cast %106 : vector<4x16x32xf32> to vector<8x8x32xf32>
    %110 = vector.shape_cast %107 : vector<4x16x32xf32> to vector<8x8x32xf32>
    %111 = vector.shape_cast %108 : vector<4x16x32xf32> to vector<8x8x32xf32>
    "tpu.trace_start"() <{level = 10 : i32, message = "bqd,bkd->bqk"}> : () -> ()
    %cst_42 = arith.constant dense<0.000000e+00> : vector<8x8x8xf32>
    %112 = tpu.matmul %109, %110, %cst_42 {dimension_numbers = #tpu.dot_dimension_numbers<[2], [2], [1], [1], [0, 0, 0, 1, 1, 1], [0], [0]>} : vector<8x8x32xf32>, vector<8x8x32xf32>, vector<8x8x8xf32> -> vector<8x8x8xf32>
    "tpu.trace_stop"() : () -> ()
    %113 = arith.addf %112, %2 : vector<8x8x8xf32>
    %cst_43 = arith.constant dense<0xFF800000> : vector<8x8xf32>
    %114 = vector.multi_reduction <maximumf>, %113, %cst_43 [2] : vector<8x8x8xf32> to vector<8x8xf32>
    %115 = vector.shape_cast %114 : vector<8x8xf32> to vector<8x8x1xf32>
    %116 = vector.broadcast %115 : vector<8x8x1xf32> to vector<8x8x8xf32>
    %117 = arith.subf %113, %116 : vector<8x8x8xf32>
    %118 = math.exp %117 : vector<8x8x8xf32>
    %cst_44 = arith.constant dense<0.000000e+00> : vector<8x8xf32>
    %119 = vector.multi_reduction <add>, %118, %cst_44 [2] : vector<8x8x8xf32> to vector<8x8xf32>
    %120 = vector.shape_cast %119 : vector<8x8xf32> to vector<8x8x1xf32>
    %121 = tpu.reciprocal %120 : vector<8x8x1xf32> -> vector<8x8x1xf32>
    %122 = vector.broadcast %121 : vector<8x8x1xf32> to vector<8x8x8xf32>
    %123 = arith.mulf %118, %122 : vector<8x8x8xf32>
    "tpu.trace_start"() <{level = 10 : i32, message = "bqk,bkd->bqd"}> : () -> ()
    %cst_45 = arith.constant dense<0.000000e+00> : vector<8x8x32xf32>
    %124 = tpu.matmul %123, %111, %cst_45 {dimension_numbers = #tpu.dot_dimension_numbers<[2], [1], [1], [2], [0, 0, 0, 1, 1, 2], [0], [0]>} : vector<8x8x8xf32>, vector<8x8x32xf32>, vector<8x8x32xf32> -> vector<8x8x32xf32>
    "tpu.trace_stop"() : () -> ()
    %125 = vector.shape_cast %124 : vector<8x8x32xf32> to vector<4x16x32xf32>
    %c976 = arith.constant 976 : index
    %c0_46 = arith.constant 0 : index
    %126 = vector.load %arg1[%c976, %c0_46] : memref<1256x32xf32, #tpu.memory_space<vmem>>, vector<128x32xf32>
    %127 = vector.shape_cast %126 : vector<128x32xf32> to vector<4x32x32xf32>
    "tpu.trace_start"() <{level = 10 : i32, message = "hnd,hde->hne"}> : () -> ()
    %cst_47 = arith.constant dense<0.000000e+00> : vector<4x16x32xf32>
    %128 = tpu.matmul %125, %127, %cst_47 {dimension_numbers = #tpu.dot_dimension_numbers<[2], [1], [1], [2], [0, 0, 0, 1, 1, 2], [0], [0]>} : vector<4x16x32xf32>, vector<4x32x32xf32>, vector<4x16x32xf32> -> vector<4x16x32xf32>
    "tpu.trace_stop"() : () -> ()
    %cst_48 = arith.constant dense<0.000000e+00> : vector<16x32xf32>
    %129 = vector.multi_reduction <add>, %128, %cst_48 [0] : vector<4x16x32xf32> to vector<16x32xf32>
    %130 = arith.addf %83, %129 : vector<16x32xf32>
    %c1176 = arith.constant 1176 : index
    %c0_49 = arith.constant 0 : index
    %131 = vector.load %arg1[%c1176, %c0_49] : memref<1256x32xf32, #tpu.memory_space<vmem>>, vector<1x32xf32>
    %132 = arith.mulf %130, %130 : vector<16x32xf32>
    %cst_50 = arith.constant dense<0.000000e+00> : vector<16xf32>
    %133 = vector.multi_reduction <add>, %132, %cst_50 [1] : vector<16x32xf32> to vector<16xf32>
    %134 = vector.shape_cast %133 : vector<16xf32> to vector<16x1xf32>
    %cst_51 = arith.constant 3.200000e+01 : f32
    %135 = vector.broadcast %cst_51 : f32 to vector<16x1xf32>
    %136 = arith.divf %134, %135 : vector<16x1xf32>
    %cst_52 = arith.constant 9.99999997E-7 : f32
    %137 = vector.broadcast %cst_52 : f32 to vector<16x1xf32>
    %138 = arith.addf %136, %137 : vector<16x1xf32>
    %139 = math.rsqrt %138 : vector<16x1xf32>
    %140 = vector.broadcast %139 : vector<16x1xf32> to vector<16x32xf32>
    %141 = arith.mulf %130, %140 : vector<16x32xf32>
    %142 = vector.broadcast %131 : vector<1x32xf32> to vector<16x32xf32>
    %143 = arith.mulf %141, %142 : vector<16x32xf32>
    %c32 = arith.constant 32 : index
    %c0_53 = arith.constant 0 : index
    %144 = vector.load %arg2[%c32, %c0_53] : memref<96x128xf32, #tpu.memory_space<vmem>>, vector<32x128xf32>
    %cst_54 = arith.constant dense<0.000000e+00> : vector<16x128xf32>
    %145 = tpu.matmul %143, %144, %cst_54 {dimension_numbers = #tpu.dot_dimension_numbers<[1], [0], [0], [1], [0, 0, 1, 1], [], []>} : vector<16x32xf32>, vector<32x128xf32>, vector<16x128xf32> -> vector<16x128xf32>
    %146 = vector.extract_strided_slice %145 {offsets = [0, 0], sizes = [16, 64], strides = [1, 1]} : vector<16x128xf32> to vector<16x64xf32>
    %cst_55 = arith.constant 5.000000e-01 : f32
    %147 = vector.broadcast %cst_55 : f32 to vector<16x64xf32>
    %148 = arith.mulf %147, %146 : vector<16x64xf32>
    %cst_56 = arith.constant 4.471500e-02 : f32
    %149 = vector.broadcast %cst_56 : f32 to vector<16x64xf32>
    %150 = arith.mulf %149, %146 : vector<16x64xf32>
    %151 = arith.mulf %150, %146 : vector<16x64xf32>
    %152 = arith.mulf %151, %146 : vector<16x64xf32>
    %153 = arith.addf %146, %152 : vector<16x64xf32>
    %cst_57 = arith.constant 0.797884583 : f32
    %154 = vector.broadcast %cst_57 : f32 to vector<16x64xf32>
    %155 = arith.mulf %154, %153 : vector<16x64xf32>
    %156 = math.tanh %155 : vector<16x64xf32>
    %cst_58 = arith.constant 1.000000e+00 : f32
    %157 = vector.broadcast %cst_58 : f32 to vector<16x64xf32>
    %158 = arith.addf %157, %156 : vector<16x64xf32>
    %159 = arith.mulf %148, %158 : vector<16x64xf32>
    %160 = vector.extract_strided_slice %145 {offsets = [0, 64], sizes = [16, 64], strides = [1, 1]} : vector<16x128xf32> to vector<16x64xf32>
    %161 = arith.mulf %159, %160 : vector<16x64xf32>
    %c1104 = arith.constant 1104 : index
    %c0_59 = arith.constant 0 : index
    %162 = vector.load %arg1[%c1104, %c0_59] : memref<1256x32xf32, #tpu.memory_space<vmem>>, vector<64x32xf32>
    %cst_60 = arith.constant dense<0.000000e+00> : vector<16x32xf32>
    %163 = tpu.matmul %161, %162, %cst_60 {dimension_numbers = #tpu.dot_dimension_numbers<[1], [0], [0], [1], [0, 0, 1, 1], [], []>} : vector<16x64xf32>, vector<64x32xf32>, vector<16x32xf32> -> vector<16x32xf32>
    %164 = arith.addf %130, %163 : vector<16x32xf32>
    %c1184 = arith.constant 1184 : index
    %c0_61 = arith.constant 0 : index
    %165 = vector.load %arg1[%c1184, %c0_61] : memref<1256x32xf32, #tpu.memory_space<vmem>>, vector<1x32xf32>
    %166 = arith.mulf %164, %164 : vector<16x32xf32>
    %cst_62 = arith.constant dense<0.000000e+00> : vector<16xf32>
    %167 = vector.multi_reduction <add>, %166, %cst_62 [1] : vector<16x32xf32> to vector<16xf32>
    %168 = vector.shape_cast %167 : vector<16xf32> to vector<16x1xf32>
    %cst_63 = arith.constant 3.200000e+01 : f32
    %169 = vector.broadcast %cst_63 : f32 to vector<16x1xf32>
    %170 = arith.divf %168, %169 : vector<16x1xf32>
    %cst_64 = arith.constant 9.99999997E-7 : f32
    %171 = vector.broadcast %cst_64 : f32 to vector<16x1xf32>
    %172 = arith.addf %170, %171 : vector<16x1xf32>
    %173 = math.rsqrt %172 : vector<16x1xf32>
    %174 = vector.broadcast %173 : vector<16x1xf32> to vector<16x32xf32>
    %175 = arith.mulf %164, %174 : vector<16x32xf32>
    %176 = vector.broadcast %165 : vector<1x32xf32> to vector<16x32xf32>
    %177 = arith.mulf %175, %176 : vector<16x32xf32>
    %c64 = arith.constant 64 : index
    %c0_65 = arith.constant 0 : index
    %178 = vector.load %arg2[%c64, %c0_65] : memref<96x128xf32, #tpu.memory_space<vmem>>, vector<32x128xf32>
    %cst_66 = arith.constant dense<0.000000e+00> : vector<16x128xf32>
    %179 = tpu.matmul %177, %178, %cst_66 {dimension_numbers = #tpu.dot_dimension_numbers<[1], [0], [0], [1], [0, 0, 1, 1], [], []>} : vector<16x32xf32>, vector<32x128xf32>, vector<16x128xf32> -> vector<16x128xf32>
    %c0_67 = arith.constant 0 : index
    %c0_68 = arith.constant 0 : index
    %180 = vector.load %arg3[%c0_67, %c0_68] : memref<16x128xf32, #tpu.memory_space<vmem>>, vector<16x128xf32>
    tpu.vector_store %arg3[%c0_67, %c0_68], %179 {strides = array<i32>} : memref<16x128xf32, #tpu.memory_space<vmem>>, vector<16x128xf32>,
    return
  }
}

</mosaic_0001>

<llo_original>
// kernel: t5_forward.1
$region0: #{t5_forward.1}
  #allocation0 [shape = 'u32[]', space=smem, size = 0x4, offset = 0x4, fixed_abs, tag = 'smem constant byte address 0x4 - core index']
  #allocation1 [shape = 'u32[144,128]{1,0:T(1,128)}', space=vmem, size = 0x12000, scoped, tag = 'internal scratch']
  %s0 = inlined_call_operand.vmem [shape: f32[16,32], index: 0, kind: input, shape index: {}]
  %s1 = inlined_call_operand.vmem [shape: f32[1256,32], index: 1, kind: input, shape index: {}]
  %s2 = inlined_call_operand.vmem [shape: f32[96,128], index: 2, kind: input, shape index: {}]
  %s3 = inlined_call_operand.vmem [shape: f32[16,128], index: 3, kind: output, shape index: {}]
  %s4 = sld [smem:[#allocation0]]
  $region22: #{t5_forward.1} parent=0
    _
  %s6 = ssub.s32 1, %s4
  %s7 = scalar_select 0, %s6, %s4
  // Predicated region
  $region2: #{t5_forward.1} parent=0 // pred_check
    _
  $region3: #{t5_forward.1} parent=0 // pred_check_branch
    %9 = sbr.rel (0) target = $region5
  $region4: #{t5_forward.1} parent=0 // pred_region
    _
  $region5: #{t5_forward.1} parent=0 // pred_fallthru
    _
  // Predicated region
  $region6: #{t5_forward.1} parent=0 // pred_check
    _
  $region7: #{t5_forward.1} parent=0 // pred_check_branch
    %11 = sbr.rel (0) target = $region9
  $region8: #{t5_forward.1} parent=0 // pred_region
    _
  $region9: #{t5_forward.1} parent=0 // pred_fallthru
    _
  // Predicated region
  $region10: #{t5_forward.1} parent=0 // pred_check
    _
  $region11: #{t5_forward.1} parent=0 // pred_check_branch
    %13 = sbr.rel (0) target = $region13
  $region12: #{t5_forward.1} parent=0 // pred_region
    _
  $region13: #{t5_forward.1} parent=0 // pred_fallthru
    _
  %v14 = vld [vmem:[%s0] sm:$0xff]
  %v15 = vld [vmem:[%s0 + $0x8] sm:$0xff]
  %v16 = vld [vmem:[%s1 + $0x4a8] sm:$0xff]
  %v17 = vld [vmem:[%s1 + $0x4b0] sm:$0xff]
  %v18 = vld [vmem:[%s1 + $0x4b8] sm:$0xff]
  %v19 = vld [vmem:[%s1 + $0x4c0] sm:$0xff]
  %v20 = vld [vmem:[%s1 + $0x4c8] sm:$0xff]
  %v21 = vld [vmem:[%s1 + $0x4d0] sm:$0xff]
  %v22 = vld [vmem:[%s1 + $0x4d8] sm:$0xff]
  %v23 = vld [vmem:[%s1 + $0x4e0] sm:$0xff]
  %v24 = vld [vmem:[%s1 + $0x240] sm:$0x1]
  %v25 = vmul.f32 %v14, %v14
  %v26 = vmul.f32 %v15, %v15
  %vm27 = vcmask 261120
  %v28 = vsel %vm27, %v25, 0.0
  %29 = vadd.xlane.f32.xlu0 %v28
  %v30 = vpop.xlane.xlu0 %29
  %v31 = vsel %vm27, %v26, 0.0
  %32 = vadd.xlane.f32.xlu0 %v31
  %v33 = vpop.xlane.xlu0 %32
  %v34 = vrcp.pop 32.0
  %v35 = vmul.f32 %v30, %v34
  %v36 = vmul.f32 %v33, %v34
  %v37 = vadd.f32 %v35, 1e-06
  %v38 = vadd.f32 %v36, 1e-06
  %v39 = vrsqrt.pop %v37
  %v40 = vrsqrt.pop %v38
  %v41 = vmul.f32 %v14, %v39
  %v42 = vmul.f32 %v15, %v40
  %v43 = vlaneseq
  %v44 = vshrl.u32 %v43, 7
  %v45 = vsub.s32 0, %v44
  %v46 = vrot.slane %v24, %v45
  %v47 = vmul.f32 %v41, %v46
  %v48 = vmul.f32 %v42, %v46
  %v49 = vld [vmem:[%s1] sm:$0xff]
  %v50 = vld [vmem:[%s1 + $0x8] sm:$0xff]
  %v51 = vld [vmem:[%s1 + $0x10] sm:$0xff]
  %v52 = vld [vmem:[%s1 + $0x18] sm:$0xff]
  %v53 = vld [vmem:[%s1 + $0x20] sm:$0xff]
  %v54 = vld [vmem:[%s1 + $0x28] sm:$0xff]
  %v55 = vld [vmem:[%s1 + $0x30] sm:$0xff]
  %v56 = vld [vmem:[%s1 + $0x38] sm:$0xff]
  %v57 = vld [vmem:[%s1 + $0x40] sm:$0xff]
  %v58 = vld [vmem:[%s1 + $0x48] sm:$0xff]
  %v59 = vld [vmem:[%s1 + $0x50] sm:$0xff]
  %v60 = vld [vmem:[%s1 + $0x58] sm:$0xff]
  %v61 = vld [vmem:[%s1 + $0x60] sm:$0xff]
  %v62 = vld [vmem:[%s1 + $0x68] sm:$0xff]
  %v63 = vld [vmem:[%s1 + $0x70] sm:$0xff]
  %v64 = vld [vmem:[%s1 + $0x78] sm:$0xff]
  %v65 = vld [vmem:[%s1 + $0x80] sm:$0xff]
  %v66 = vld [vmem:[%s1 + $0x88] sm:$0xff]
  %v67 = vld [vmem:[%s1 + $0x90] sm:$0xff]
  %v68 = vld [vmem:[%s1 + $0x98] sm:$0xff]
  %v69 = vld [vmem:[%s1 + $0xa0] sm:$0xff]
  %v70 = vld [vmem:[%s1 + $0xa8] sm:$0xff]
  %v71 = vld [vmem:[%s1 + $0xb0] sm:$0xff]
  %v72 = vld [vmem:[%s1 + $0xb8] sm:$0xff]
  %v73 = vld [vmem:[%s1 + $0xc0] sm:$0xff]
  %v74 = vld [vmem:[%s1 + $0xc8] sm:$0xff]
  %v75 = vld [vmem:[%s1 + $0xd0] sm:$0xff]
  %v76 = vld [vmem:[%s1 + $0xd8] sm:$0xff]
  %v77 = vld [vmem:[%s1 + $0xe0] sm:$0xff]
  %v78 = vld [vmem:[%s1 + $0xe8] sm:$0xff]
  %v79 = vld [vmem:[%s1 + $0xf0] sm:$0xff]
  %v80 = vld [vmem:[%s1 + $0xf8] sm:$0xff]
  %v81 = vld [vmem:[%s1 + $0x100] sm:$0xff]
  %v82 = vld [vmem:[%s1 + $0x108] sm:$0xff]
  %v83 = vld [vmem:[%s1 + $0x110] sm:$0xff]
  %v84 = vld [vmem:[%s1 + $0x118] sm:$0xff]
  %v85 = vld [vmem:[%s1 + $0x120] sm:$0xff]
  %v86 = vld [vmem:[%s1 + $0x128] sm:$0xff]
  %v87 = vld [vmem:[%s1 + $0x130] sm:$0xff]
  %v88 = vld [vmem:[%s1 + $0x138] sm:$0xff]
  %v89 = vld [vmem:[%s1 + $0x140] sm:$0xff]
  %v90 = vld [vmem:[%s1 + $0x148] sm:$0xff]
  %v91 = vld [vmem:[%s1 + $0x150] sm:$0xff]
  %v92 = vld [vmem:[%s1 + $0x158] sm:$0xff]
  %v93 = vld [vmem:[%s1 + $0x160] sm:$0xff]
  %v94 = vld [vmem:[%s1 + $0x168] sm:$0xff]
  %v95 = vld [vmem:[%s1 + $0x170] sm:$0xff]
  %v96 = vld [vmem:[%s1 + $0x178] sm:$0xff]
  %v98 = vsel %vm27, %v47, 0
  %v101 = vsel %vm27, %v48, 0
  %103 = vmatprep.subr.mxu0 0.0
  %104 = vmatpush1.msra.mxu0 %v49
  %105 = vmatprep.subr.mxu0 0.0
  %106 = vmatpush1.msra.mxu0 %v50
  %107 = vmatprep.subr.mxu0 0.0
  %108 = vmatpush1.msra.mxu0 %v51
  %109 = vmatprep.subr.mxu0 0.0
  %110 = vmatpush1.msra.mxu0 %v52
  %111 = vmatprep.subr.mxu0 0.0
  %112 = vmatpush1.msra.mxu0 0.0
  %113 = vmatprep.subr.mxu0 0.0
  %114 = vmatpush1.msra.mxu0 0.0
  %115 = vmatprep.subr.mxu0 0.0
  %116 = vmatpush1.msra.mxu0 0.0
  %117 = vmatprep.subr.mxu0 0.0
  %118 = vmatpush1.msra.mxu0 0.0
  %119 = vmatprep.subr.mxu0 0.0
  %120 = vmatpush1.msra.mxu0 0.0
  %121 = vmatprep.subr.mxu0 0.0
  %122 = vmatpush1.msra.mxu0 0.0
  %123 = vmatprep.subr.mxu0 0.0
  %124 = vmatpush1.msra.mxu0 0.0
  %125 = vmatprep.subr.mxu0 0.0
  %126 = vmatpush1.msra.mxu0 0.0
  %127 = vmatprep.subr.mxu0 0.0
  %128 = vmatpush1.msra.mxu0 0.0
  %129 = vmatprep.subr.mxu0 0.0
  %130 = vmatpush1.msra.mxu0 0.0
  %131 = vmatprep.subr.mxu0 0.0
  %132 = vmatpush1.msra.mxu0 0.0
  %133 = vmatprep.subr.mxu0 0.0
  %134 = vmatpush1.msra.mxu0 0.0
  %135 = vmatprep.subr.mxu0 0.0
  %136 = vmatpush1.msra.mxu0 0.0
  %137 = vmatprep.subr.mxu0 0.0
  %138 = vmatpush1.msra.mxu0 0.0
  %139 = vmatprep.subr.mxu0 0.0
  %140 = vmatpush1.msra.mxu0 0.0
  %141 = vmatprep.subr.mxu0 0.0
  %142 = vmatpush1.msra.mxu0 0.0
  %143 = vmatprep.subr.mxu0 0.0
  %144 = vmatpush1.msra.mxu0 0.0
  %145 = vmatprep.subr.mxu0 0.0
  %146 = vmatpush1.msra.mxu0 0.0
  %147 = vmatprep.subr.mxu0 0.0
  %148 = vmatpush1.msra.mxu0 0.0
  %149 = vmatprep.subr.mxu0 0.0
  %150 = vmatpush1.msra.mxu0 0.0
  %151 = vmatprep.subr.mxu0 0.0
  %152 = vmatpush1.msra.mxu0 0.0
  %153 = vmatprep.subr.mxu0 0.0
  %154 = vmatpush1.msra.mxu0 0.0
  %155 = vmatprep.subr.mxu0 0.0
  %156 = vmatpush1.msra.mxu0 0.0
  %157 = vmatprep.subr.mxu0 0.0
  %158 = vmatpush1.msra.mxu0 0.0
  %159 = vmatprep.subr.mxu0 0.0
  %160 = vmatpush1.msra.mxu0 0.0
  %161 = vmatprep.subr.mxu0 0.0
  %162 = vmatpush1.msra.mxu0 0.0
  %163 = vmatprep.subr.mxu0 0.0
  %164 = vmatpush1.msra.mxu0 0.0
  %165 = vmatprep.subr.mxu0 0.0
  %166 = vmatpush1.msra.mxu0 0.0
  %167 = vmatprep.mubr.f32.mxu0 0.0
  %168 = vmatmul.mubr.f32.gmra.mrb[0].mxu0 %v98
  %v169 = vpop.f32.mrb[0].mxu0
  %v170 = vadd.f32 0.0, %v169
  %v171 = vpop.f32.mrb[0].mxu0
  %172 = vmatprep.mubr.f32.mxu0 0.0
  %173 = vmatmul.mubr.f32.gmra.mrb[0].mxu0 %v101
  %v174 = vpop.f32.mrb[0].mxu0
  %v175 = vadd.f32 0.0, %v174
  %v176 = vpop.f32.mrb[0].mxu0
  %177 = vdwg.mxu0
  %178 = vmatprep.subr.mxu0 0.0
  %179 = vmatpush1.msra.mxu0 %v53
  %180 = vmatprep.subr.mxu0 0.0
  %181 = vmatpush1.msra.mxu0 %v54
  %182 = vmatprep.subr.mxu0 0.0
  %183 = vmatpush1.msra.mxu0 %v55
  %184 = vmatprep.subr.mxu0 0.0
  %185 = vmatpush1.msra.mxu0 %v56
  %186 = vmatprep.subr.mxu0 0.0
  %187 = vmatpush1.msra.mxu0 0.0
  %188 = vmatprep.subr.mxu0 0.0
  %189 = vmatpush1.msra.mxu0 0.0
  %190 = vmatprep.subr.mxu0 0.0
  %191 = vmatpush1.msra.mxu0 0.0
  %192 = vmatprep.subr.mxu0 0.0
  %193 = vmatpush1.msra.mxu0 0.0
  %194 = vmatprep.subr.mxu0 0.0
  %195 = vmatpush1.msra.mxu0 0.0
  %196 = vmatprep.subr.mxu0 0.0
  %197 = vmatpush1.msra.mxu0 0.0
  %198 = vmatprep.subr.mxu0 0.0
  %199 = vmatpush1.msra.mxu0 0.0
  %200 = vmatprep.subr.mxu0 0.0
  %201 = vmatpush1.msra.mxu0 0.0
  %202 = vmatprep.subr.mxu0 0.0
  %203 = vmatpush1.msra.mxu0 0.0
  %204 = vmatprep.subr.mxu0 0.0
  %205 = vmatpush1.msra.mxu0 0.0
  %206 = vmatprep.subr.mxu0 0.0
  %207 = vmatpush1.msra.mxu0 0.0
  %208 = vmatprep.subr.mxu0 0.0
  %209 = vmatpush1.msra.mxu0 0.0
  %210 = vmatprep.subr.mxu0 0.0
  %211 = vmatpush1.msra.mxu0 0.0
  %212 = vmatprep.subr.mxu0 0.0
  %213 = vmatpush1.msra.mxu0 0.0
  %214 = vmatprep.subr.mxu0 0.0
  %215 = vmatpush1.msra.mxu0 0.0
  %216 = vmatprep.subr.mxu0 0.0
  %217 = vmatpush1.msra.mxu0 0.0
  %218 = vmatprep.subr.mxu0 0.0
  %219 = vmatpush1.msra.mxu0 0.0
  %220 = vmatprep.subr.mxu0 0.0
  %221 = vmatpush1.msra.mxu0 0.0
  %222 = vmatprep.subr.mxu0 0.0
  %223 = vmatpush1.msra.mxu0 0.0
  %224 = vmatprep.subr.mxu0 0.0
  %225 = vmatpush1.msra.mxu0 0.0
  %226 = vmatprep.subr.mxu0 0.0
  %227 = vmatpush1.msra.mxu0 0.0
  %228 = vmatprep.subr.mxu0 0.0
  %229 = vmatpush1.msra.mxu0 0.0
  %230 = vmatprep.subr.mxu0 0.0
  %231 = vmatpush1.msra.mxu0 0.0
  %232 = vmatprep.subr.mxu0 0.0
  %233 = vmatpush1.msra.mxu0 0.0
  %234 = vmatprep.subr.mxu0 0.0
  %235 = vmatpush1.msra.mxu0 0.0
  %236 = vmatprep.subr.mxu0 0.0
  %237 = vmatpush1.msra.mxu0 0.0
  %238 = vmatprep.subr.mxu0 0.0
  %239 = vmatpush1.msra.mxu0 0.0
  %240 = vmatprep.subr.mxu0 0.0
  %241 = vmatpush1.msra.mxu0 0.0
  %242 = vmatprep.mubr.f32.mxu0 0.0
  %243 = vmatmul.mubr.f32.gmra.mrb[0].mxu0 %v98
  %v244 = vpop.f32.mrb[0].mxu0
  %v245 = vadd.f32 0.0, %v244
  %v246 = vpop.f32.mrb[0].mxu0
  %247 = vmatprep.mubr.f32.mxu0 0.0
  %248 = vmatmul.mubr.f32.gmra.mrb[0].mxu0 %v101
  %v249 = vpop.f32.mrb[0].mxu0
  %v250 = vadd.f32 0.0, %v249
  %v251 = vpop.f32.mrb[0].mxu0
  %252 = vdwg.mxu0
  %253 = vmatprep.subr.mxu0 0.0
  %254 = vmatpush1.msra.mxu0 %v57
  %255 = vmatprep.subr.mxu0 0.0
  %256 = vmatpush1.msra.mxu0 %v58
  %257 = vmatprep.subr.mxu0 0.0
  %258 = vmatpush1.msra.mxu0 %v59
  %259 = vmatprep.subr.mxu0 0.0
  %260 = vmatpush1.msra.mxu0 %v60
  %261 = vmatprep.subr.mxu0 0.0
  %262 = vmatpush1.msra.mxu0 0.0
  %263 = vmatprep.subr.mxu0 0.0
  %264 = vmatpush1.msra.mxu0 0.0
  %265 = vmatprep.subr.mxu0 0.0
  %266 = vmatpush1.msra.mxu0 0.0
  %267 = vmatprep.subr.mxu0 0.0
  %268 = vmatpush1.msra.mxu0 0.0
  %269 = vmatprep.subr.mxu0 0.0
  %270 = vmatpush1.msra.mxu0 0.0
  %271 = vmatprep.subr.mxu0 0.0
  %272 = vmatpush1.msra.mxu0 0.0
  %273 = vmatprep.subr.mxu0 0.0
  %274 = vmatpush1.msra.mxu0 0.0
  %275 = vmatprep.subr.mxu0 0.0
  %276 = vmatpush1.msra.mxu0 0.0
  %277 = vmatprep.subr.mxu0 0.0
  %278 = vmatpush1.msra.mxu0 0.0
  %279 = vmatprep.subr.mxu0 0.0
  %280 = vmatpush1.msra.mxu0 0.0
  %281 = vmatprep.subr.mxu0 0.0
  %282 = vmatpush1.msra.mxu0 0.0
  %283 = vmatprep.subr.mxu0 0.0
  %284 = vmatpush1.msra.mxu0 0.0
  %285 = vmatprep.subr.mxu0 0.0
  %286 = vmatpush1.msra.mxu0 0.0
  %287 = vmatprep.subr.mxu0 0.0
  %288 = vmatpush1.msra.mxu0 0.0
  %289 = vmatprep.subr.mxu0 0.0
  %290 = vmatpush1.msra.mxu0 0.0
  %291 = vmatprep.subr.mxu0 0.0
  %292 = vmatpush1.msra.mxu0 0.0
  %293 = vmatprep.subr.mxu0 0.0
  %294 = vmatpush1.msra.mxu0 0.0
  %295 = vmatprep.subr.mxu0 0.0
  %296 = vmatpush1.msra.mxu0 0.0
  %297 = vmatprep.subr.mxu0 0.0
  %298 = vmatpush1.msra.mxu0 0.0
  %299 = vmatprep.subr.mxu0 0.0
  %300 = vmatpush1.msra.mxu0 0.0
  %301 = vmatprep.subr.mxu0 0.0
  %302 = vmatpush1.msra.mxu0 0.0
  %303 = vmatprep.subr.mxu0 0.0
  %304 = vmatpush1.msra.mxu0 0.0
  %305 = vmatprep.subr.mxu0 0.0
  %306 = vmatpush1.msra.mxu0 0.0
  %307 = vmatprep.subr.mxu0 0.0
  %308 = vmatpush1.msra.mxu0 0.0
  %309 = vmatprep.subr.mxu0 0.0
  %310 = vmatpush1.msra.mxu0 0.0
  %311 = vmatprep.subr.mxu0 0.0
  %312 = vmatpush1.msra.mxu0 0.0
  %313 = vmatprep.subr.mxu0 0.0
  %314 = vmatpush1.msra.mxu0 0.0
  %315 = vmatprep.subr.mxu0 0.0
  %316 = vmatpush1.msra.mxu0 0.0
  %317 = vmatprep.mubr.f32.mxu0 0.0
  %318 = vmatmul.mubr.f32.gmra.mrb[0].mxu0 %v98
  %v319 = vpop.f32.mrb[0].mxu0
  %v320 = vadd.f32 0.0, %v319
  %v321 = vpop.f32.mrb[0].mxu0
  %322 = vmatprep.mubr.f32.mxu0 0.0
  %323 = vmatmul.mubr.f32.gmra.mrb[0].mxu0 %v101
  %v324 = vpop.f32.mrb[0].mxu0
  %v325 = vadd.f32 0.0, %v324
  %v326 = vpop.f32.mrb[0].mxu0
  %327 = vdwg.mxu0
  %328 = vmatprep.subr.mxu0 0.0
  %329 = vmatpush1.msra.mxu0 %v61
  %330 = vmatprep.subr.mxu0 0.0
  %331 = vmatpush1.msra.mxu0 %v62
  %332 = vmatprep.subr.mxu0 0.0
  %333 = vmatpush1.msra.mxu0 %v63
  %334 = vmatprep.subr.mxu0 0.0
  %335 = vmatpush1.msra.mxu0 %v64
  %336 = vmatprep.subr.mxu0 0.0
  %337 = vmatpush1.msra.mxu0 0.0
  %338 = vmatprep.subr.mxu0 0.0
  %339 = vmatpush1.msra.mxu0 0.0
  %340 = vmatprep.subr.mxu0 0.0
  %341 = vmatpush1.msra.mxu0 0.0
  %342 = vmatprep.subr.mxu0 0.0
  %343 = vmatpush1.msra.mxu0 0.0
  %344 = vmatprep.subr.mxu0 0.0
  %345 = vmatpush1.msra.mxu0 0.0
  %346 = vmatprep.subr.mxu0 0.0
  %347 = vmatpush1.msra.mxu0 0.0
  %348 = vmatprep.subr.mxu0 0.0
  %349 = vmatpush1.msra.mxu0 0.0
  %350 = vmatprep.subr.mxu0 0.0
  %351 = vmatpush1.msra.mxu0 0.0
  %352 = vmatprep.subr.mxu0 0.0
  %353 = vmatpush1.msra.mxu0 0.0
  %354 = vmatprep.subr.mxu0 0.0
  %355 = vmatpush1.msra.mxu0 0.0
  %356 = vmatprep.subr.mxu0 0.0
  %357 = vmatpush1.msra.mxu0 0.0
  %358 = vmatprep.subr.mxu0 0.0
  %359 = vmatpush1.msra.mxu0 0.0
  %360 = vmatprep.subr.mxu0 0.0
  %361 = vmatpush1.msra.mxu0 0.0
  %362 = vmatprep.subr.mxu0 0.0
  %363 = vmatpush1.msra.mxu0 0.0
  %364 = vmatprep.subr.mxu0 0.0
  %365 = vmatpush1.msra.mxu0 0.0
  %366 = vmatprep.subr.mxu0 0.0
  %367 = vmatpush1.msra.mxu0 0.0
  %368 = vmatprep.subr.mxu0 0.0
  %369 = vmatpush1.msra.mxu0 0.0
  %370 = vmatprep.subr.mxu0 0.0
  %371 = vmatpush1.msra.mxu0 0.0
  %372 = vmatprep.subr.mxu0 0.0
  %373 = vmatpush1.msra.mxu0 0.0
  %374 = vmatprep.subr.mxu0 0.0
  %375 = vmatpush1.msra.mxu0 0.0
  %376 = vmatprep.subr.mxu0 0.0
  %377 = vmatpush1.msra.mxu0 0.0
  %378 = vmatprep.subr.mxu0 0.0
  %379 = vmatpush1.msra.mxu0 0.0
  %380 = vmatprep.subr.mxu0 0.0
  %381 = vmatpush1.msra.mxu0 0.0
  %382 = vmatprep.subr.mxu0 0.0
  %383 = vmatpush1.msra.mxu0 0.0
  %384 = vmatprep.subr.mxu0 0.0
  %385 = vmatpush1.msra.mxu0 0.0
  %386 = vmatprep.subr.mxu0 0.0
  %387 = vmatpush1.msra.mxu0 0.0
  %388 = vmatprep.subr.mxu0 0.0
  %389 = vmatpush1.msra.mxu0 0.0
  %390 = vmatprep.subr.mxu0 0.0
  %391 = vmatpush1.msra.mxu0 0.0
  %392 = vmatprep.mubr.f32.mxu0 0.0
  %393 = vmatmul.mubr.f32.gmra.mrb[0].mxu0 %v98
  %v394 = vpop.f32.mrb[0].mxu0
  %v395 = vadd.f32 0.0, %v394
  %v396 = vpop.f32.mrb[0].mxu0
  %397 = vmatprep.mubr.f32.mxu0 0.0
  %398 = vmatmul.mubr.f32.gmra.mrb[0].mxu0 %v101
  %v399 = vpop.f32.mrb[0].mxu0
  %v400 = vadd.f32 0.0, %v399
  %v401 = vpop.f32.mrb[0].mxu0
  %402 = vdwg.mxu0
  %403 = vmatprep.subr.mxu0 0.0
  %404 = vmatpush1.msra.mxu0 %v65
  %405 = vmatprep.subr.mxu0 0.0
  %406 = vmatpush1.msra.mxu0 %v66
  %407 = vmatprep.subr.mxu0 0.0
  %408 = vmatpush1.msra.mxu0 %v67
  %409 = vmatprep.subr.mxu0 0.0
  %410 = vmatpush1.msra.mxu0 %v68
  %411 = vmatprep.subr.mxu0 0.0
  %412 = vmatpush1.msra.mxu0 0.0
  %413 = vmatprep.subr.mxu0 0.0
  %414 = vmatpush1.msra.mxu0 0.0
  %415 = vmatprep.subr.mxu0 0.0
  %416 = vmatpush1.msra.mxu0 0.0
  %417 = vmatprep.subr.mxu0 0.0
  %418 = vmatpush1.msra.mxu0 0.0
  %419 = vmatprep.subr.mxu0 0.0
  %420 = vmatpush1.msra.mxu0 0.0
  %421 = vmatprep.subr.mxu0 0.0
  %422 = vmatpush1.msra.mxu0 0.0
  %423 = vmatprep.subr.mxu0 0.0
  %424 = vmatpush1.msra.mxu0 0.0
  %425 = vmatprep.subr.mxu0 0.0
  %426 = vmatpush1.msra.mxu0 0.0
  %427 = vmatprep.subr.mxu0 0.0
  %428 = vmatpush1.msra.mxu0 0.0
  %429 = vmatprep.subr.mxu0 0.0
  %430 = vmatpush1.msra.mxu0 0.0
  %431 = vmatprep.subr.mxu0 0.0
  %432 = vmatpush1.msra.mxu0 0.0
  %433 = vmatprep.subr.mxu0 0.0
  %434 = vmatpush1.msra.mxu0 0.0
  %435 = vmatprep.subr.mxu0 0.0
  %436 = vmatpush1.msra.mxu0 0.0
  %437 = vmatprep.subr.mxu0 0.0
  %438 = vmatpush1.msra.mxu0 0.0
  %439 = vmatprep.subr.mxu0 0.0
  %440 = vmatpush1.msra.mxu0 0.0
  %441 = vmatprep.subr.mxu0 0.0
  %442 = vmatpush1.msra.mxu0 0.0
  %443 = vmatprep.subr.mxu0 0.0
  %444 = vmatpush1.msra.mxu0 0.0
  %445 = vmatprep.subr.mxu0 0.0
  %446 = vmatpush1.msra.mxu0 0.0
  %447 = vmatprep.subr.mxu0 0.0
  %448 = vmatpush1.msra.mxu0 0.0
  %449 = vmatprep.subr.mxu0 0.0
  %450 = vmatpush1.msra.mxu0 0.0
  %451 = vmatprep.subr.mxu0 0.0
  %452 = vmatpush1.msra.mxu0 0.0
  %453 = vmatprep.subr.mxu0 0.0
  %454 = vmatpush1.msra.mxu0 0.0
  %455 = vmatprep.subr.mxu0 0.0
  %456 = vmatpush1.msra.mxu0 0.0
  %457 = vmatprep.subr.mxu0 0.0
  %458 = vmatpush1.msra.mxu0 0.0
  %459 = vmatprep.subr.mxu0 0.0
  %460 = vmatpush1.msra.mxu0 0.0
  %461 = vmatprep.subr.mxu0 0.0
  %462 = vmatpush1.msra.mxu0 0.0
  %463 = vmatprep.subr.mxu0 0.0
  %464 = vmatpush1.msra.mxu0 0.0
  %465 = vmatprep.subr.mxu0 0.0
  %466 = vmatpush1.msra.mxu0 0.0
  %467 = vmatprep.mubr.f32.mxu0 0.0
  %468 = vmatmul.mubr.f32.gmra.mrb[0].mxu0 %v98
  %v469 = vpop.f32.mrb[0].mxu0
  %v470 = vadd.f32 0.0, %v469
  %v471 = vpop.f32.mrb[0].mxu0
  %472 = vmatprep.mubr.f32.mxu0 0.0
  %473 = vmatmul.mubr.f32.gmra.mrb[0].mxu0 %v101
  %v474 = vpop.f32.mrb[0].mxu0
  %v475 = vadd.f32 0.0, %v474
  %v476 = vpop.f32.mrb[0].mxu0
  %477 = vdwg.mxu0
  %478 = vmatprep.subr.mxu0 0.0
  %479 = vmatpush1.msra.mxu0 %v69
  %480 = vmatprep.subr.mxu0 0.0
  %481 = vmatpush1.msra.mxu0 %v70
  %482 = vmatprep.subr.mxu0 0.0
  %483 = vmatpush1.msra.mxu0 %v71
  %484 = vmatprep.subr.mxu0 0.0
  %485 = vmatpush1.msra.mxu0 %v72
  %486 = vmatprep.subr.mxu0 0.0
  %487 = vmatpush1.msra.mxu0 0.0
  %488 = vmatprep.subr.mxu0 0.0
  %489 = vmatpush1.msra.mxu0 0.0
  %490 = vmatprep.subr.mxu0 0.0
  %491 = vmatpush1.msra.mxu0 0.0
  %492 = vmatprep.subr.mxu0 0.0
  %493 = vmatpush1.msra.mxu0 0.0
  %494 = vmatprep.subr.mxu0 0.0
  %495 = vmatpush1.msra.mxu0 0.0
  %496 = vmatprep.subr.mxu0 0.0
  %497 = vmatpush1.msra.mxu0 0.0
  %498 = vmatprep.subr.mxu0 0.0
  %499 = vmatpush1.msra.mxu0 0.0
  %500 = vmatprep.subr.mxu0 0.0
  %501 = vmatpush1.msra.mxu0 0.0
  %502 = vmatprep.subr.mxu0 0.0
  %503 = vmatpush1.msra.mxu0 0.0
  %504 = vmatprep.subr.mxu0 0.0
  %505 = vmatpush1.msra.mxu0 0.0
  %506 = vmatprep.subr.mxu0 0.0
  %507 = vmatpush1.msra.mxu0 0.0
  %508 = vmatprep.subr.mxu0 0.0
  %509 = vmatpush1.msra.mxu0 0.0
  %510 = vmatprep.subr.mxu0 0.0
  %511 = vmatpush1.msra.mxu0 0.0
  %512 = vmatprep.subr.mxu0 0.0
  %513 = vmatpush1.msra.mxu0 0.0
  %514 = vmatprep.subr.mxu0 0.0
  %515 = vmatpush1.msra.mxu0 0.0
  %516 = vmatprep.subr.mxu0 0.0
  %517 = vmatpush1.msra.mxu0 0.0
  %518 = vmatprep.subr.mxu0 0.0
  %519 = vmatpush1.msra.mxu0 0.0
  %520 = vmatprep.subr.mxu0 0.0
  %521 = vmatpush1.msra.mxu0 0.0
  %522 = vmatprep.subr.mxu0 0.0
  %523 = vmatpush1.msra.mxu0 0.0
  %524 = vmatprep.subr.mxu0 0.0
  %525 = vmatpush1.msra.mxu0 0.0
  %526 = vmatprep.subr.mxu0 0.0
  %527 = vmatpush1.msra.mxu0 0.0
  %528 = vmatprep.subr.mxu0 0.0
  %529 = vmatpush1.msra.mxu0 0.0
  %530 = vmatprep.subr.mxu0 0.0
  %531 = vmatpush1.msra.mxu0 0.0
  %532 = vmatprep.subr.mxu0 0.0
  %533 = vmatpush1.msra.mxu0 0.0
  %534 = vmatprep.subr.mxu0 0.0
  %535 = vmatpush1.msra.mxu0 0.0
  %536 = vmatprep.subr.mxu0 0.0
  %537 = vmatpush1.msra.mxu0 0.0
  %538 = vmatprep.subr.mxu0 0.0
  %539 = vmatpush1.msra.mxu0 0.0
  %540 = vmatprep.subr.mxu0 0.0
  %541 = vmatpush1.msra.mxu0 0.0
  %542 = vmatprep.mubr.f32.mxu0 0.0
  %543 = vmatmul.mubr.f32.gmra.mrb[0].mxu0 %v98
  %v544 = vpop.f32.mrb[0].mxu0
  %v545 = vadd.f32 0.0, %v544
  %v546 = vpop.f32.mrb[0].mxu0
  %547 = vmatprep.mubr.f32.mxu0 0.0
  %548 = vmatmul.mubr.f32.gmra.mrb[0].mxu0 %v101
  %v549 = vpop.f32.mrb[0].mxu0
  %v550 = vadd.f32 0.0, %v549
  %v551 = vpop.f32.mrb[0].mxu0
  %552 = vdwg.mxu0
  %553 = vmatprep.subr.mxu0 0.0
  %554 = vmatpush1.msra.mxu0 %v73
  %555 = vmatprep.subr.mxu0 0.0
  %556 = vmatpush1.msra.mxu0 %v74
  %557 = vmatprep.subr.mxu0 0.0
  %558 = vmatpush1.msra.mxu0 %v75
  %559 = vmatprep.subr.mxu0 0.0
  %560 = vmatpush1.msra.mxu0 %v76
  %561 = vmatprep.subr.mxu0 0.0
  %562 = vmatpush1.msra.mxu0 0.0
  %563 = vmatprep.subr.mxu0 0.0
  %564 = vmatpush1.msra.mxu0 0.0
  %565 = vmatprep.subr.mxu0 0.0
  %566 = vmatpush1.msra.mxu0 0.0
  %567 = vmatprep.subr.mxu0 0.0
  %568 = vmatpush1.msra.mxu0 0.0
  %569 = vmatprep.subr.mxu0 0.0
  %570 = vmatpush1.msra.mxu0 0.0
  %571 = vmatprep.subr.mxu0 0.0
  %572 = vmatpush1.msra.mxu0 0.0
  %573 = vmatprep.subr.mxu0 0.0
  %574 = vmatpush1.msra.mxu0 0.0
  %575 = vmatprep.subr.mxu0 0.0
  %576 = vmatpush1.msra.mxu0 0.0
  %577 = vmatprep.subr.mxu0 0.0
  %578 = vmatpush1.msra.mxu0 0.0
  %579 = vmatprep.subr.mxu0 0.0
  %580 = vmatpush1.msra.mxu0 0.0
  %581 = vmatprep.subr.mxu0 0.0
  %582 = vmatpush1.msra.mxu0 0.0
  %583 = vmatprep.subr.mxu0 0.0
  %584 = vmatpush1.msra.mxu0 0.0
  %585 = vmatprep.subr.mxu0 0.0
  %586 = vmatpush1.msra.mxu0 0.0
  %587 = vmatprep.subr.mxu0 0.0
  %588 = vmatpush1.msra.mxu0 0.0
  %589 = vmatprep.subr.mxu0 0.0
  %590 = vmatpush1.msra.mxu0 0.0
  %591 = vmatprep.subr.mxu0 0.0
  %592 = vmatpush1.msra.mxu0 0.0
  %593 = vmatprep.subr.mxu0 0.0
  %594 = vmatpush1.msra.mxu0 0.0
  %595 = vmatprep.subr.mxu0 0.0
  %596 = vmatpush1.msra.mxu0 0.0
  %597 = vmatprep.subr.mxu0 0.0
  %598 = vmatpush1.msra.mxu0 0.0
  %599 = vmatprep.subr.mxu0 0.0
  %600 = vmatpush1.msra.mxu0 0.0
  %601 = vmatprep.subr.mxu0 0.0
  %602 = vmatpush1.msra.mxu0 0.0
  %603 = vmatprep.subr.mxu0 0.0
  %604 = vmatpush1.msra.mxu0 0.0
  %605 = vmatprep.subr.mxu0 0.0
  %606 = vmatpush1.msra.mxu0 0.0
  %607 = vmatprep.subr.mxu0 0.0
  %608 = vmatpush1.msra.mxu0 0.0
  %609 = vmatprep.subr.mxu0 0.0
  %610 = vmatpush1.msra.mxu0 0.0
  %611 = vmatprep.subr.mxu0 0.0
  %612 = vmatpush1.msra.mxu0 0.0
  %613 = vmatprep.subr.mxu0 0.0
  %614 = vmatpush1.msra.mxu0 0.0
  %615 = vmatprep.subr.mxu0 0.0
  %616 = vmatpush1.msra.mxu0 0.0
  %617 = vmatprep.mubr.f32.mxu0 0.0
  %618 = vmatmul.mubr.f32.gmra.mrb[0].mxu0 %v98
  %v619 = vpop.f32.mrb[0].mxu0
  %v620 = vadd.f32 0.0, %v619
  %v621 = vpop.f32.mrb[0].mxu0
  %622 = vmatprep.mubr.f32.mxu0 0.0
  %623 = vmatmul.mubr.f32.gmra.mrb[0].mxu0 %v101
  %v624 = vpop.f32.mrb[0].mxu0
  %v625 = vadd.f32 0.0, %v624
  %v626 = vpop.f32.mrb[0].mxu0
  %627 = vdwg.mxu0
  %628 = vmatprep.subr.mxu0 0.0
  %629 = vmatpush1.msra.mxu0 %v77
  %630 = vmatprep.subr.mxu0 0.0
  %631 = vmatpush1.msra.mxu0 %v78
  %632 = vmatprep.subr.mxu0 0.0
  %633 = vmatpush1.msra.mxu0 %v79
  %634 = vmatprep.subr.mxu0 0.0
  %635 = vmatpush1.msra.mxu0 %v80
  %636 = vmatprep.subr.mxu0 0.0
  %637 = vmatpush1.msra.mxu0 0.0
  %638 = vmatprep.subr.mxu0 0.0
  %639 = vmatpush1.msra.mxu0 0.0
  %640 = vmatprep.subr.mxu0 0.0
  %641 = vmatpush1.msra.mxu0 0.0
  %642 = vmatprep.subr.mxu0 0.0
  %643 = vmatpush1.msra.mxu0 0.0
  %644 = vmatprep.subr.mxu0 0.0
  %645 = vmatpush1.msra.mxu0 0.0
  %646 = vmatprep.subr.mxu0 0.0
  %647 = vmatpush1.msra.mxu0 0.0
  %648 = vmatprep.subr.mxu0 0.0
  %649 = vmatpush1.msra.mxu0 0.0
  %650 = vmatprep.subr.mxu0 0.0
  %651 = vmatpush1.msra.mxu0 0.0
  %652 = vmatprep.subr.mxu0 0.0
  %653 = vmatpush1.msra.mxu0 0.0
  %654 = vmatprep.subr.mxu0 0.0
  %655 = vmatpush1.msra.mxu0 0.0
  %656 = vmatprep.subr.mxu0 0.0
  %657 = vmatpush1.msra.mxu0 0.0
  %658 = vmatprep.subr.mxu0 0.0
  %659 = vmatpush1.msra.mxu0 0.0
  %660 = vmatprep.subr.mxu0 0.0
  %661 = vmatpush1.msra.mxu0 0.0
  %662 = vmatprep.subr.mxu0 0.0
  %663 = vmatpush1.msra.mxu0 0.0
  %664 = vmatprep.subr.mxu0 0.0
  %665 = vmatpush1.msra.mxu0 0.0
  %666 = vmatprep.subr.mxu0 0.0
  %667 = vmatpush1.msra.mxu0 0.0
  %668 = vmatprep.subr.mxu0 0.0
  %669 = vmatpush1.msra.mxu0 0.0
  %670 = vmatprep.subr.mxu0 0.0
  %671 = vmatpush1.msra.mxu0 0.0
  %672 = vmatprep.subr.mxu0 0.0
  %673 = vmatpush1.msra.mxu0 0.0
  %674 = vmatprep.subr.mxu0 0.0
  %675 = vmatpush1.msra.mxu0 0.0
  %676 = vmatprep.subr.mxu0 0.0
  %677 = vmatpush1.msra.mxu0 0.0
  %678 = vmatprep.subr.mxu0 0.0
  %679 = vmatpush1.msra.mxu0 0.0
  %680 = vmatprep.subr.mxu0 0.0
  %681 = vmatpush1.msra.mxu0 0.0
  %682 = vmatprep.subr.mxu0 0.0
  %683 = vmatpush1.msra.mxu0 0.0
  %684 = vmatprep.subr.mxu0 0.0
  %685 = vmatpush1.msra.mxu0 0.0
  %686 = vmatprep.subr.mxu0 0.0
  %687 = vmatpush1.msra.mxu0 0.0
  %688 = vmatprep.subr.mxu0 0.0
  %689 = vmatpush1.msra.mxu0 0.0
  %690 = vmatprep.subr.mxu0 0.0
  %691 = vmatpush1.msra.mxu0 0.0
  %692 = vmatprep.mubr.f32.mxu0 0.0
  %693 = vmatmul.mubr.f32.gmra.mrb[0].mxu0 %v98
  %v694 = vpop.f32.mrb[0].mxu0
  %v695 = vadd.f32 0.0, %v694
  %v696 = vpop.f32.mrb[0].mxu0
  %697 = vmatprep.mubr.f32.mxu0 0.0
  %698 = vmatmul.mubr.f32.gmra.mrb[0].mxu0 %v101
  %v699 = vpop.f32.mrb[0].mxu0
  %v700 = vadd.f32 0.0, %v699
  %v701 = vpop.f32.mrb[0].mxu0
  %702 = vdwg.mxu0
  %703 = vmatprep.subr.mxu0 0.0
  %704 = vmatpush1.msra.mxu0 %v81
  %705 = vmatprep.subr.mxu0 0.0
  %706 = vmatpush1.msra.mxu0 %v82
  %707 = vmatprep.subr.mxu0 0.0
  %708 = vmatpush1.msra.mxu0 %v83
  %709 = vmatprep.subr.mxu0 0.0
  %710 = vmatpush1.msra.mxu0 %v84
  %711 = vmatprep.subr.mxu0 0.0
  %712 = vmatpush1.msra.mxu0 0.0
  %713 = vmatprep.subr.mxu0 0.0
  %714 = vmatpush1.msra.mxu0 0.0
  %715 = vmatprep.subr.mxu0 0.0
  %716 = vmatpush1.msra.mxu0 0.0
  %717 = vmatprep.subr.mxu0 0.0
  %718 = vmatpush1.msra.mxu0 0.0
  %719 = vmatprep.subr.mxu0 0.0
  %720 = vmatpush1.msra.mxu0 0.0
  %721 = vmatprep.subr.mxu0 0.0
  %722 = vmatpush1.msra.mxu0 0.0
  %723 = vmatprep.subr.mxu0 0.0
  %724 = vmatpush1.msra.mxu0 0.0
  %725 = vmatprep.subr.mxu0 0.0
  %726 = vmatpush1.msra.mxu0 0.0
  %727 = vmatprep.subr.mxu0 0.0
  %728 = vmatpush1.msra.mxu0 0.0
  %729 = vmatprep.subr.mxu0 0.0
  %730 = vmatpush1.msra.mxu0 0.0
  %731 = vmatprep.subr.mxu0 0.0
  %732 = vmatpush1.msra.mxu0 0.0
  %733 = vmatprep.subr.mxu0 0.0
  %734 = vmatpush1.msra.mxu0 0.0
  %735 = vmatprep.subr.mxu0 0.0
  %736 = vmatpush1.msra.mxu0 0.0
  %737 = vmatprep.subr.mxu0 0.0
  %738 = vmatpush1.msra.mxu0 0.0
  %739 = vmatprep.subr.mxu0 0.0
  %740 = vmatpush1.msra.mxu0 0.0
  %741 = vmatprep.subr.mxu0 0.0
  %742 = vmatpush1.msra.mxu0 0.0
  %743 = vmatprep.subr.mxu0 0.0
  %744 = vmatpush1.msra.mxu0 0.0
  %745 = vmatprep.subr.mxu0 0.0
  %746 = vmatpush1.msra.mxu0 0.0
  %747 = vmatprep.subr.mxu0 0.0
  %748 = vmatpush1.msra.mxu0 0.0
  %749 = vmatprep.subr.mxu0 0.0
  %750 = vmatpush1.msra.mxu0 0.0
  %751 = vmatprep.subr.mxu0 0.0
  %752 = vmatpush1.msra.mxu0 0.0
  %753 = vmatprep.subr.mxu0 0.0
  %754 = vmatpush1.msra.mxu0 0.0
  %755 = vmatprep.subr.mxu0 0.0
  %756 = vmatpush1.msra.mxu0 0.0
  %757 = vmatprep.subr.mxu0 0.0
  %758 = vmatpush1.msra.mxu0 0.0
  %759 = vmatprep.subr.mxu0 0.0
  %760 = vmatpush1.msra.mxu0 0.0
  %761 = vmatprep.subr.mxu0 0.0
  %762 = vmatpush1.msra.mxu0 0.0
  %763 = vmatprep.subr.mxu0 0.0
  %764 = vmatpush1.msra.mxu0 0.0
  %765 = vmatprep.subr.mxu0 0.0
  %766 = vmatpush1.msra.mxu0 0.0
  %767 = vmatprep.mubr.f32.mxu0 0.0
  %768 = vmatmul.mubr.f32.gmra.mrb[0].mxu0 %v98
  %v769 = vpop.f32.mrb[0].mxu0
  %v770 = vadd.f32 0.0, %v769
  %v771 = vpop.f32.mrb[0].mxu0
  %772 = vmatprep.mubr.f32.mxu0 0.0
  %773 = vmatmul.mubr.f32.gmra.mrb[0].mxu0 %v101
  %v774 = vpop.f32.mrb[0].mxu0
  %v775 = vadd.f32 0.0, %v774
  %v776 = vpop.f32.mrb[0].mxu0
  %777 = vdwg.mxu0
  %778 = vmatprep.subr.mxu0 0.0
  %779 = vmatpush1.msra.mxu0 %v85
  %780 = vmatprep.subr.mxu0 0.0
  %781 = vmatpush1.msra.mxu0 %v86
  %782 = vmatprep.subr.mxu0 0.0
  %783 = vmatpush1.msra.mxu0 %v87
  %784 = vmatprep.subr.mxu0 0.0
  %785 = vmatpush1.msra.mxu0 %v88
  %786 = vmatprep.subr.mxu0 0.0
  %787 = vmatpush1.msra.mxu0 0.0
  %788 = vmatprep.subr.mxu0 0.0
  %789 = vmatpush1.msra.mxu0 0.0
  %790 = vmatprep.subr.mxu0 0.0
  %791 = vmatpush1.msra.mxu0 0.0
  %792 = vmatprep.subr.mxu0 0.0
  %793 = vmatpush1.msra.mxu0 0.0
  %794 = vmatprep.subr.mxu0 0.0
  %795 = vmatpush1.msra.mxu0 0.0
  %796 = vmatprep.subr.mxu0 0.0
  %797 = vmatpush1.msra.mxu0 0.0
  %798 = vmatprep.subr.mxu0 0.0
  %799 = vmatpush1.msra.mxu0 0.0
  %800 = vmatprep.subr.mxu0 0.0
  %801 = vmatpush1.msra.mxu0 0.0
  %802 = vmatprep.subr.mxu0 0.0
  %803 = vmatpush1.msra.mxu0 0.0
  %804 = vmatprep.subr.mxu0 0.0
  %805 = vmatpush1.msra.mxu0 0.0
  %806 = vmatprep.subr.mxu0 0.0
  %807 = vmatpush1.msra.mxu0 0.0
  %808 = vmatprep.subr.mxu0 0.0
  %809 = vmatpush1.msra.mxu0 0.0
  %810 = vmatprep.subr.mxu0 0.0
  %811 = vmatpush1.msra.mxu0 0.0
  %812 = vmatprep.subr.mxu0 0.0
  %813 = vmatpush1.msra.mxu0 0.0
  %814 = vmatprep.subr.mxu0 0.0
  %815 = vmatpush1.msra.mxu0 0.0
  %816 = vmatprep.subr.mxu0 0.0
  %817 = vmatpush1.msra.mxu0 0.0
  %818 = vmatprep.subr.mxu0 0.0
  %819 = vmatpush1.msra.mxu0 0.0
  %820 = vmatprep.subr.mxu0 0.0
  %821 = vmatpush1.msra.mxu0 0.0
  %822 = vmatprep.subr.mxu0 0.0
  %823 = vmatpush1.msra.mxu0 0.0
  %824 = vmatprep.subr.mxu0 0.0
  %825 = vmatpush1.msra.mxu0 0.0
  %826 = vmatprep.subr.mxu0 0.0
  %827 = vmatpush1.msra.mxu0 0.0
  %828 = vmatprep.subr.mxu0 0.0
  %829 = vmatpush1.msra.mxu0 0.0
  %830 = vmatprep.subr.mxu0 0.0
  %831 = vmatpush1.msra.mxu0 0.0
  %832 = vmatprep.subr.mxu0 0.0
  %833 = vmatpush1.msra.mxu0 0.0
  %834 = vmatprep.subr.mxu0 0.0
  %835 = vmatpush1.msra.mxu0 0.0
  %836 = vmatprep.subr.mxu0 0.0
  %837 = vmatpush1.msra.mxu0 0.0
  %838 = vmatprep.subr.mxu0 0.0
  %839 = vmatpush1.msra.mxu0 0.0
  %840 = vmatprep.subr.mxu0 0.0
  %841 = vmatpush1.msra.mxu0 0.0
  %842 = vmatprep.mubr.f32.mxu0 0.0
  %843 = vmatmul.mubr.f32.gmra.mrb[0].mxu0 %v98
  %v844 = vpop.f32.mrb[0].mxu0
  %v845 = vadd.f32 0.0, %v844
  %v846 = vpop.f32.mrb[0].mxu0
  %847 = vmatprep.mubr.f32.mxu0 0.0
  %848 = vmatmul.mubr.f32.gmra.mrb[0].mxu0 %v101
  %v849 = vpop.f32.mrb[0].mxu0
  %v850 = vadd.f32 0.0, %v849
  %v851 = vpop.f32.mrb[0].mxu0
  %852 = vdwg.mxu0
  %853 = vmatprep.subr.mxu0 0.0
  %854 = vmatpush1.msra.mxu0 %v89
  %855 = vmatprep.subr.mxu0 0.0
  %856 = vmatpush1.msra.mxu0 %v90
  %857 = vmatprep.subr.mxu0 0.0
  %858 = vmatpush1.msra.mxu0 %v91
  %859 = vmatprep.subr.mxu0 0.0
  %860 = vmatpush1.msra.mxu0 %v92
  %861 = vmatprep.subr.mxu0 0.0
  %862 = vmatpush1.msra.mxu0 0.0
  %863 = vmatprep.subr.mxu0 0.0
  %864 = vmatpush1.msra.mxu0 0.0
  %865 = vmatprep.subr.mxu0 0.0
  %866 = vmatpush1.msra.mxu0 0.0
  %867 = vmatprep.subr.mxu0 0.0
  %868 = vmatpush1.msra.mxu0 0.0
  %869 = vmatprep.subr.mxu0 0.0
  %870 = vmatpush1.msra.mxu0 0.0
  %871 = vmatprep.subr.mxu0 0.0
  %872 = vmatpush1.msra.mxu0 0.0
  %873 = vmatprep.subr.mxu0 0.0
  %874 = vmatpush1.msra.mxu0 0.0
  %875 = vmatprep.subr.mxu0 0.0
  %876 = vmatpush1.msra.mxu0 0.0
  %877 = vmatprep.subr.mxu0 0.0
  %878 = vmatpush1.msra.mxu0 0.0
  %879 = vmatprep.subr.mxu0 0.0
  %880 = vmatpush1.msra.mxu0 0.0
  %881 = vmatprep.subr.mxu0 0.0
  %882 = vmatpush1.msra.mxu0 0.0
  %883 = vmatprep.subr.mxu0 0.0
  %884 = vmatpush1.msra.mxu0 0.0
  %885 = vmatprep.subr.mxu0 0.0
  %886 = vmatpush1.msra.mxu0 0.0
  %887 = vmatprep.subr.mxu0 0.0
  %888 = vmatpush1.msra.mxu0 0.0
  %889 = vmatprep.subr.mxu0 0.0
  %890 = vmatpush1.msra.mxu0 0.0
  %891 = vmatprep.subr.mxu0 0.0
  %892 = vmatpush1.msra.mxu0 0.0
  %893 = vmatprep.subr.mxu0 0.0
  %894 = vmatpush1.msra.mxu0 0.0
  %895 = vmatprep.subr.mxu0 0.0
  %896 = vmatpush1.msra.mxu0 0.0
  %897 = vmatprep.subr.mxu0 0.0
  %898 = vmatpush1.msra.mxu0 0.0
  %899 = vmatprep.subr.mxu0 0.0
  %900 = vmatpush1.msra.mxu0 0.0
  %901 = vmatprep.subr.mxu0 0.0
  %902 = vmatpush1.msra.mxu0 0.0
  %903 = vmatprep.subr.mxu0 0.0
  %904 = vmatpush1.msra.mxu0 0.0
  %905 = vmatprep.subr.mxu0 0.0
  %906 = vmatpush1.msra.mxu0 0.0
  %907 = vmatprep.subr.mxu0 0.0
  %908 = vmatpush1.msra.mxu0 0.0
  %909 = vmatprep.subr.mxu0 0.0
  %910 = vmatpush1.msra.mxu0 0.0
  %911 = vmatprep.subr.mxu0 0.0
  %912 = vmatpush1.msra.mxu0 0.0
  %913 = vmatprep.subr.mxu0 0.0
  %914 = vmatpush1.msra.mxu0 0.0
  %915 = vmatprep.subr.mxu0 0.0
  %916 = vmatpush1.msra.mxu0 0.0
  %917 = vmatprep.mubr.f32.mxu0 0.0
  %918 = vmatmul.mubr.f32.gmra.mrb[0].mxu0 %v98
  %v919 = vpop.f32.mrb[0].mxu0
  %v920 = vadd.f32 0.0, %v919
  %v921 = vpop.f32.mrb[0].mxu0
  %922 = vmatprep.mubr.f32.mxu0 0.0
  %923 = vmatmul.mubr.f32.gmra.mrb[0].mxu0 %v101
  %v924 = vpop.f32.mrb[0].mxu0
  %v925 = vadd.f32 0.0, %v924
  %v926 = vpop.f32.mrb[0].mxu0
  %927 = vdwg.mxu0
  %928 = vmatprep.subr.mxu0 0.0
  %929 = vmatpush1.msra.mxu0 %v93
  %930 = vmatprep.subr.mxu0 0.0
  %931 = vmatpush1.msra.mxu0 %v94
  %932 = vmatprep.subr.mxu0 0.0
  %933 = vmatpush1.msra.mxu0 %v95
  %934 = vmatprep.subr.mxu0 0.0
  %935 = vmatpush1.msra.mxu0 %v96
  %936 = vmatprep.subr.mxu0 0.0
  %937 = vmatpush1.msra.mxu0 0.0
  %938 = vmatprep.subr.mxu0 0.0
  %939 = vmatpush1.msra.mxu0 0.0
  %940 = vmatprep.subr.mxu0 0.0
  %941 = vmatpush1.msra.mxu0 0.0
  %942 = vmatprep.subr.mxu0 0.0
  %943 = vmatpush1.msra.mxu0 0.0
  %944 = vmatprep.subr.mxu0 0.0
  %945 = vmatpush1.msra.mxu0 0.0
  %946 = vmatprep.subr.mxu0 0.0
  %947 = vmatpush1.msra.mxu0 0.0
  %948 = vmatprep.subr.mxu0 0.0
  %949 = vmatpush1.msra.mxu0 0.0
  %950 = vmatprep.subr.mxu0 0.0
  %951 = vmatpush1.msra.mxu0 0.0
  %952 = vmatprep.subr.mxu0 0.0
  %953 = vmatpush1.msra.mxu0 0.0
  %954 = vmatprep.subr.mxu0 0.0
  %955 = vmatpush1.msra.mxu0 0.0
  %956 = vmatprep.subr.mxu0 0.0
  %957 = vmatpush1.msra.mxu0 0.0
  %958 = vmatprep.subr.mxu0 0.0
  %959 = vmatpush1.msra.mxu0 0.0
  %960 = vmatprep.subr.mxu0 0.0
  %961 = vmatpush1.msra.mxu0 0.0
  %962 = vmatprep.subr.mxu0 0.0
  %963 = vmatpush1.msra.mxu0 0.0
  %964 = vmatprep.subr.mxu0 0.0
  %965 = vmatpush1.msra.mxu0 0.0
  %966 = vmatprep.subr.mxu0 0.0
  %967 = vmatpush1.msra.mxu0 0.0
  %968 = vmatprep.subr.mxu0 0.0
  %969 = vmatpush1.msra.mxu0 0.0
  %970 = vmatprep.subr.mxu0 0.0
  %971 = vmatpush1.msra.mxu0 0.0
  %972 = vmatprep.subr.mxu0 0.0
  %973 = vmatpush1.msra.mxu0 0.0
  %974 = vmatprep.subr.mxu0 0.0
  %975 = vmatpush1.msra.mxu0 0.0
  %976 = vmatprep.subr.mxu0 0.0
  %977 = vmatpush1.msra.mxu0 0.0
  %978 = vmatprep.subr.mxu0 0.0
  %979 = vmatpush1.msra.mxu0 0.0
  %980 = vmatprep.subr.mxu0 0.0
  %981 = vmatpush1.msra.mxu0 0.0
  %982 = vmatprep.subr.mxu0 0.0
  %983 = vmatpush1.msra.mxu0 0.0
  %984 = vmatprep.subr.mxu0 0.0
  %985 = vmatpush1.msra.mxu0 0.0
  %986 = vmatprep.subr.mxu0 0.0
  %987 = vmatpush1.msra.mxu0 0.0
  %988 = vmatprep.subr.mxu0 0.0
  %989 = vmatpush1.msra.mxu0 0.0
  %990 = vmatprep.subr.mxu0 0.0
  %991 = vmatpush1.msra.mxu0 0.0
  %992 = vmatprep.mubr.f32.mxu0 0.0
  %993 = vmatmul.mubr.f32.gmra.mrb[0].mxu0 %v98
  %v994 = vpop.f32.mrb[0].mxu0
  %v995 = vadd.f32 0.0, %v994
  %v996 = vpop.f32.mrb[0].mxu0
  %997 = vmatprep.mubr.f32.mxu0 0.0
  %998 = vmatmul.mubr.f32.gmra.mrb[0].mxu0 %v101
  %v999 = vpop.f32.mrb[0].mxu0
  %v1000 = vadd.f32 0.0, %v999
  %v1001 = vpop.f32.mrb[0].mxu0
  %1002 = vdwg.mxu0
  %v1004 = vsel %vm27, %v170, 0
  %v1007 = vsel %vm27, %v470, 0
  %1009 = vmatprep.subr.mxu0 0.0
  %1010 = vmatpush1.xpose.msra.mxu0 %v1007
  %1011 = vmatprep.subr.mxu0 0.0
  %1012 = vmatpush1.xpose.msra.mxu0 0.0
  %1013 = vmatprep.subr.mxu0 0.0
  %1014 = vmatpush1.xpose.msra.mxu0 0.0
  %1015 = vmatprep.subr.mxu0 0.0
  %1016 = vmatpush1.xpose.msra.mxu0 0.0
  %1017 = vmatprep.subr.mxu0 0.0
  %1018 = vmatpush1.xpose.msra.mxu0 0.0
  %1019 = vmatprep.subr.mxu0 0.0
  %1020 = vmatpush1.xpose.msra.mxu0 0.0
  %1021 = vmatprep.subr.mxu0 0.0
  %1022 = vmatpush1.xpose.msra.mxu0 0.0
  %1023 = vmatprep.subr.mxu0 0.0
  %1024 = vmatpush1.xpose.msra.mxu0 0.0
  %1025 = vmatprep.subr.mxu0 0.0
  %1026 = vmatpush1.xpose.msra.mxu0 0.0
  %1027 = vmatprep.subr.mxu0 0.0
  %1028 = vmatpush1.xpose.msra.mxu0 0.0
  %1029 = vmatprep.subr.mxu0 0.0
  %1030 = vmatpush1.xpose.msra.mxu0 0.0
  %1031 = vmatprep.subr.mxu0 0.0
  %1032 = vmatpush1.xpose.msra.mxu0 0.0
  %1033 = vmatprep.subr.mxu0 0.0
  %1034 = vmatpush1.xpose.msra.mxu0 0.0
  %1035 = vmatprep.subr.mxu0 0.0
  %1036 = vmatpush1.xpose.msra.mxu0 0.0
  %1037 = vmatprep.subr.mxu0 0.0
  %1038 = vmatpush1.xpose.msra.mxu0 0.0
  %1039 = vmatprep.subr.mxu0 0.0
  %1040 = vmatpush1.xpose.msra.mxu0 0.0
  %1041 = vmatprep.subr.mxu0 0.0
  %1042 = vmatpush1.xpose.msra.mxu0 0.0
  %1043 = vmatprep.subr.mxu0 0.0
  %1044 = vmatpush1.xpose.msra.mxu0 0.0
  %1045 = vmatprep.subr.mxu0 0.0
  %1046 = vmatpush1.xpose.msra.mxu0 0.0
  %1047 = vmatprep.subr.mxu0 0.0
  %1048 = vmatpush1.xpose.msra.mxu0 0.0
  %1049 = vmatprep.subr.mxu0 0.0
  %1050 = vmatpush1.xpose.msra.mxu0 0.0
  %1051 = vmatprep.subr.mxu0 0.0
  %1052 = vmatpush1.xpose.msra.mxu0 0.0
  %1053 = vmatprep.subr.mxu0 0.0
  %1054 = vmatpush1.xpose.msra.mxu0 0.0
  %1055 = vmatprep.subr.mxu0 0.0
  %1056 = vmatpush1.xpose.msra.mxu0 0.0
  %1057 = vmatprep.subr.mxu0 0.0
  %1058 = vmatpush1.xpose.msra.mxu0 0.0
  %1059 = vmatprep.subr.mxu0 0.0
  %1060 = vmatpush1.xpose.msra.mxu0 0.0
  %1061 = vmatprep.subr.mxu0 0.0
  %1062 = vmatpush1.xpose.msra.mxu0 0.0
  %1063 = vmatprep.subr.mxu0 0.0
  %1064 = vmatpush1.xpose.msra.mxu0 0.0
  %1065 = vmatprep.subr.mxu0 0.0
  %1066 = vmatpush1.xpose.msra.mxu0 0.0
  %1067 = vmatprep.subr.mxu0 0.0
  %1068 = vmatpush1.xpose.msra.mxu0 0.0
  %1069 = vmatprep.subr.mxu0 0.0
  %1070 = vmatpush1.xpose.msra.mxu0 0.0
  %1071 = vmatprep.subr.mxu0 0.0
  %1072 = vmatpush1.xpose.msra.mxu0 0.0
  %1073 = vmatprep.mubr.f32.mxu0 0.0
  %1074 = vmatmul.mubr.f32.gmra.mrb[0].mxu0 %v1004
  %v1075 = vpop.f32.mrb[0].mxu0
  %v1076 = vadd.f32 %v16, %v1075
  %v1077 = vpop.f32.mrb[0].mxu0
  %1078 = vdwg.mxu0
  %v1080 = vsel %vm27, %v175, 0
  %v1083 = vsel %vm27, %v475, 0
  %1085 = vmatprep.subr.mxu0 0.0
  %1086 = vmatpush1.xpose.msra.mxu0 %v1083
  %1087 = vmatprep.subr.mxu0 0.0
  %1088 = vmatpush1.xpose.msra.mxu0 0.0
  %1089 = vmatprep.subr.mxu0 0.0
  %1090 = vmatpush1.xpose.msra.mxu0 0.0
  %1091 = vmatprep.subr.mxu0 0.0
  %1092 = vmatpush1.xpose.msra.mxu0 0.0
  %1093 = vmatprep.subr.mxu0 0.0
  %1094 = vmatpush1.xpose.msra.mxu0 0.0
  %1095 = vmatprep.subr.mxu0 0.0
  %1096 = vmatpush1.xpose.msra.mxu0 0.0
  %1097 = vmatprep.subr.mxu0 0.0
  %1098 = vmatpush1.xpose.msra.mxu0 0.0
  %1099 = vmatprep.subr.mxu0 0.0
  %1100 = vmatpush1.xpose.msra.mxu0 0.0
  %1101 = vmatprep.subr.mxu0 0.0
  %1102 = vmatpush1.xpose.msra.mxu0 0.0
  %1103 = vmatprep.subr.mxu0 0.0
  %1104 = vmatpush1.xpose.msra.mxu0 0.0
  %1105 = vmatprep.subr.mxu0 0.0
  %1106 = vmatpush1.xpose.msra.mxu0 0.0
  %1107 = vmatprep.subr.mxu0 0.0
  %1108 = vmatpush1.xpose.msra.mxu0 0.0
  %1109 = vmatprep.subr.mxu0 0.0
  %1110 = vmatpush1.xpose.msra.mxu0 0.0
  %1111 = vmatprep.subr.mxu0 0.0
  %1112 = vmatpush1.xpose.msra.mxu0 0.0
  %1113 = vmatprep.subr.mxu0 0.0
  %1114 = vmatpush1.xpose.msra.mxu0 0.0
  %1115 = vmatprep.subr.mxu0 0.0
  %1116 = vmatpush1.xpose.msra.mxu0 0.0
  %1117 = vmatprep.subr.mxu0 0.0
  %1118 = vmatpush1.xpose.msra.mxu0 0.0
  %1119 = vmatprep.subr.mxu0 0.0
  %1120 = vmatpush1.xpose.msra.mxu0 0.0
  %1121 = vmatprep.subr.mxu0 0.0
  %1122 = vmatpush1.xpose.msra.mxu0 0.0
  %1123 = vmatprep.subr.mxu0 0.0
  %1124 = vmatpush1.xpose.msra.mxu0 0.0
  %1125 = vmatprep.subr.mxu0 0.0
  %1126 = vmatpush1.xpose.msra.mxu0 0.0
  %1127 = vmatprep.subr.mxu0 0.0
  %1128 = vmatpush1.xpose.msra.mxu0 0.0
  %1129 = vmatprep.subr.mxu0 0.0
  %1130 = vmatpush1.xpose.msra.mxu0 0.0
  %1131 = vmatprep.subr.mxu0 0.0
  %1132 = vmatpush1.xpose.msra.mxu0 0.0
  %1133 = vmatprep.subr.mxu0 0.0
  %1134 = vmatpush1.xpose.msra.mxu0 0.0
  %1135 = vmatprep.subr.mxu0 0.0
  %1136 = vmatpush1.xpose.msra.mxu0 0.0
  %1137 = vmatprep.subr.mxu0 0.0
  %1138 = vmatpush1.xpose.msra.mxu0 0.0
  %1139 = vmatprep.subr.mxu0 0.0
  %1140 = vmatpush1.xpose.msra.mxu0 0.0
  %1141 = vmatprep.subr.mxu0 0.0
  %1142 = vmatpush1.xpose.msra.mxu0 0.0
  %1143 = vmatprep.subr.mxu0 0.0
  %1144 = vmatpush1.xpose.msra.mxu0 0.0
  %1145 = vmatprep.subr.mxu0 0.0
  %1146 = vmatpush1.xpose.msra.mxu0 0.0
  %1147 = vmatprep.subr.mxu0 0.0
  %1148 = vmatpush1.xpose.msra.mxu0 0.0
  %1149 = vmatprep.mubr.f32.mxu0 0.0
  %1150 = vmatmul.mubr.f32.gmra.mrb[0].mxu0 %v1080
  %v1151 = vpop.f32.mrb[0].mxu0
  %v1152 = vadd.f32 %v17, %v1151
  %v1153 = vpop.f32.mrb[0].mxu0
  %1154 = vdwg.mxu0
  %v1156 = vsel %vm27, %v245, 0
  %v1159 = vsel %vm27, %v545, 0
  %1161 = vmatprep.subr.mxu0 0.0
  %1162 = vmatpush1.xpose.msra.mxu0 %v1159
  %1163 = vmatprep.subr.mxu0 0.0
  %1164 = vmatpush1.xpose.msra.mxu0 0.0
  %1165 = vmatprep.subr.mxu0 0.0
  %1166 = vmatpush1.xpose.msra.mxu0 0.0
  %1167 = vmatprep.subr.mxu0 0.0
  %1168 = vmatpush1.xpose.msra.mxu0 0.0
  %1169 = vmatprep.subr.mxu0 0.0
  %1170 = vmatpush1.xpose.msra.mxu0 0.0
  %1171 = vmatprep.subr.mxu0 0.0
  %1172 = vmatpush1.xpose.msra.mxu0 0.0
  %1173 = vmatprep.subr.mxu0 0.0
  %1174 = vmatpush1.xpose.msra.mxu0 0.0
  %1175 = vmatprep.subr.mxu0 0.0
  %1176 = vmatpush1.xpose.msra.mxu0 0.0
  %1177 = vmatprep.subr.mxu0 0.0
  %1178 = vmatpush1.xpose.msra.mxu0 0.0
  %1179 = vmatprep.subr.mxu0 0.0
  %1180 = vmatpush1.xpose.msra.mxu0 0.0
  %1181 = vmatprep.subr.mxu0 0.0
  %1182 = vmatpush1.xpose.msra.mxu0 0.0
  %1183 = vmatprep.subr.mxu0 0.0
  %1184 = vmatpush1.xpose.msra.mxu0 0.0
  %1185 = vmatprep.subr.mxu0 0.0
  %1186 = vmatpush1.xpose.msra.mxu0 0.0
  %1187 = vmatprep.subr.mxu0 0.0
  %1188 = vmatpush1.xpose.msra.mxu0 0.0
  %1189 = vmatprep.subr.mxu0 0.0
  %1190 = vmatpush1.xpose.msra.mxu0 0.0
  %1191 = vmatprep.subr.mxu0 0.0
  %1192 = vmatpush1.xpose.msra.mxu0 0.0
  %1193 = vmatprep.subr.mxu0 0.0
  %1194 = vmatpush1.xpose.msra.mxu0 0.0
  %1195 = vmatprep.subr.mxu0 0.0
  %1196 = vmatpush1.xpose.msra.mxu0 0.0
  %1197 = vmatprep.subr.mxu0 0.0
  %1198 = vmatpush1.xpose.msra.mxu0 0.0
  %1199 = vmatprep.subr.mxu0 0.0
  %1200 = vmatpush1.xpose.msra.mxu0 0.0
  %1201 = vmatprep.subr.mxu0 0.0
  %1202 = vmatpush1.xpose.msra.mxu0 0.0
  %1203 = vmatprep.subr.mxu0 0.0
  %1204 = vmatpush1.xpose.msra.mxu0 0.0
  %1205 = vmatprep.subr.mxu0 0.0
  %1206 = vmatpush1.xpose.msra.mxu0 0.0
  %1207 = vmatprep.subr.mxu0 0.0
  %1208 = vmatpush1.xpose.msra.mxu0 0.0
  %1209 = vmatprep.subr.mxu0 0.0
  %1210 = vmatpush1.xpose.msra.mxu0 0.0
  %1211 = vmatprep.subr.mxu0 0.0
  %1212 = vmatpush1.xpose.msra.mxu0 0.0
  %1213 = vmatprep.subr.mxu0 0.0
  %1214 = vmatpush1.xpose.msra.mxu0 0.0
  %1215 = vmatprep.subr.mxu0 0.0
  %1216 = vmatpush1.xpose.msra.mxu0 0.0
  %1217 = vmatprep.subr.mxu0 0.0
  %1218 = vmatpush1.xpose.msra.mxu0 0.0
  %1219 = vmatprep.subr.mxu0 0.0
  %1220 = vmatpush1.xpose.msra.mxu0 0.0
  %1221 = vmatprep.subr.mxu0 0.0
  %1222 = vmatpush1.xpose.msra.mxu0 0.0
  %1223 = vmatprep.subr.mxu0 0.0
  %1224 = vmatpush1.xpose.msra.mxu0 0.0
  %1225 = vmatprep.mubr.f32.mxu0 0.0
  %1226 = vmatmul.mubr.f32.gmra.mrb[0].mxu0 %v1156
  %v1227 = vpop.f32.mrb[0].mxu0
  %v1228 = vadd.f32 %v18, %v1227
  %v1229 = vpop.f32.mrb[0].mxu0
  %1230 = vdwg.mxu0
  %v1232 = vsel %vm27, %v250, 0
  %v1235 = vsel %vm27, %v550, 0
  %1237 = vmatprep.subr.mxu0 0.0
  %1238 = vmatpush1.xpose.msra.mxu0 %v1235
  %1239 = vmatprep.subr.mxu0 0.0
  %1240 = vmatpush1.xpose.msra.mxu0 0.0
  %1241 = vmatprep.subr.mxu0 0.0
  %1242 = vmatpush1.xpose.msra.mxu0 0.0
  %1243 = vmatprep.subr.mxu0 0.0
  %1244 = vmatpush1.xpose.msra.mxu0 0.0
  %1245 = vmatprep.subr.mxu0 0.0
  %1246 = vmatpush1.xpose.msra.mxu0 0.0
  %1247 = vmatprep.subr.mxu0 0.0
  %1248 = vmatpush1.xpose.msra.mxu0 0.0
  %1249 = vmatprep.subr.mxu0 0.0
  %1250 = vmatpush1.xpose.msra.mxu0 0.0
  %1251 = vmatprep.subr.mxu0 0.0
  %1252 = vmatpush1.xpose.msra.mxu0 0.0
  %1253 = vmatprep.subr.mxu0 0.0
  %1254 = vmatpush1.xpose.msra.mxu0 0.0
  %1255 = vmatprep.subr.mxu0 0.0
  %1256 = vmatpush1.xpose.msra.mxu0 0.0
  %1257 = vmatprep.subr.mxu0 0.0
  %1258 = vmatpush1.xpose.msra.mxu0 0.0
  %1259 = vmatprep.subr.mxu0 0.0
  %1260 = vmatpush1.xpose.msra.mxu0 0.0
  %1261 = vmatprep.subr.mxu0 0.0
  %1262 = vmatpush1.xpose.msra.mxu0 0.0
  %1263 = vmatprep.subr.mxu0 0.0
  %1264 = vmatpush1.xpose.msra.mxu0 0.0
  %1265 = vmatprep.subr.mxu0 0.0
  %1266 = vmatpush1.xpose.msra.mxu0 0.0
  %1267 = vmatprep.subr.mxu0 0.0
  %1268 = vmatpush1.xpose.msra.mxu0 0.0
  %1269 = vmatprep.subr.mxu0 0.0
  %1270 = vmatpush1.xpose.msra.mxu0 0.0
  %1271 = vmatprep.subr.mxu0 0.0
  %1272 = vmatpush1.xpose.msra.mxu0 0.0
  %1273 = vmatprep.subr.mxu0 0.0
  %1274 = vmatpush1.xpose.msra.mxu0 0.0
  %1275 = vmatprep.subr.mxu0 0.0
  %1276 = vmatpush1.xpose.msra.mxu0 0.0
  %1277 = vmatprep.subr.mxu0 0.0
  %1278 = vmatpush1.xpose.msra.mxu0 0.0
  %1279 = vmatprep.subr.mxu0 0.0
  %1280 = vmatpush1.xpose.msra.mxu0 0.0
  %1281 = vmatprep.subr.mxu0 0.0
  %1282 = vmatpush1.xpose.msra.mxu0 0.0
  %1283 = vmatprep.subr.mxu0 0.0
  %1284 = vmatpush1.xpose.msra.mxu0 0.0
  %1285 = vmatprep.subr.mxu0 0.0
  %1286 = vmatpush1.xpose.msra.mxu0 0.0
  %1287 = vmatprep.subr.mxu0 0.0
  %1288 = vmatpush1.xpose.msra.mxu0 0.0
  %1289 = vmatprep.subr.mxu0 0.0
  %1290 = vmatpush1.xpose.msra.mxu0 0.0
  %1291 = vmatprep.subr.mxu0 0.0
  %1292 = vmatpush1.xpose.msra.mxu0 0.0
  %1293 = vmatprep.subr.mxu0 0.0
  %1294 = vmatpush1.xpose.msra.mxu0 0.0
  %1295 = vmatprep.subr.mxu0 0.0
  %1296 = vmatpush1.xpose.msra.mxu0 0.0
  %1297 = vmatprep.subr.mxu0 0.0
  %1298 = vmatpush1.xpose.msra.mxu0 0.0
  %1299 = vmatprep.subr.mxu0 0.0
  %1300 = vmatpush1.xpose.msra.mxu0 0.0
  %1301 = vmatprep.mubr.f32.mxu0 0.0
  %1302 = vmatmul.mubr.f32.gmra.mrb[0].mxu0 %v1232
  %v1303 = vpop.f32.mrb[0].mxu0
  %v1304 = vadd.f32 %v19, %v1303
  %v1305 = vpop.f32.mrb[0].mxu0
  %1306 = vdwg.mxu0
  %v1308 = vsel %vm27, %v320, 0
  %v1311 = vsel %vm27, %v620, 0
  %1313 = vmatprep.subr.mxu0 0.0
  %1314 = vmatpush1.xpose.msra.mxu0 %v1311
  %1315 = vmatprep.subr.mxu0 0.0
  %1316 = vmatpush1.xpose.msra.mxu0 0.0
  %1317 = vmatprep.subr.mxu0 0.0
  %1318 = vmatpush1.xpose.msra.mxu0 0.0
  %1319 = vmatprep.subr.mxu0 0.0
  %1320 = vmatpush1.xpose.msra.mxu0 0.0
  %1321 = vmatprep.subr.mxu0 0.0
  %1322 = vmatpush1.xpose.msra.mxu0 0.0
  %1323 = vmatprep.subr.mxu0 0.0
  %1324 = vmatpush1.xpose.msra.mxu0 0.0
  %1325 = vmatprep.subr.mxu0 0.0
  %1326 = vmatpush1.xpose.msra.mxu0 0.0
  %1327 = vmatprep.subr.mxu0 0.0
  %1328 = vmatpush1.xpose.msra.mxu0 0.0
  %1329 = vmatprep.subr.mxu0 0.0
  %1330 = vmatpush1.xpose.msra.mxu0 0.0
  %1331 = vmatprep.subr.mxu0 0.0
  %1332 = vmatpush1.xpose.msra.mxu0 0.0
  %1333 = vmatprep.subr.mxu0 0.0
  %1334 = vmatpush1.xpose.msra.mxu0 0.0
  %1335 = vmatprep.subr.mxu0 0.0
  %1336 = vmatpush1.xpose.msra.mxu0 0.0
  %1337 = vmatprep.subr.mxu0 0.0
  %1338 = vmatpush1.xpose.msra.mxu0 0.0
  %1339 = vmatprep.subr.mxu0 0.0
  %1340 = vmatpush1.xpose.msra.mxu0 0.0
  %1341 = vmatprep.subr.mxu0 0.0
  %1342 = vmatpush1.xpose.msra.mxu0 0.0
  %1343 = vmatprep.subr.mxu0 0.0
  %1344 = vmatpush1.xpose.msra.mxu0 0.0
  %1345 = vmatprep.subr.mxu0 0.0
  %1346 = vmatpush1.xpose.msra.mxu0 0.0
  %1347 = vmatprep.subr.mxu0 0.0
  %1348 = vmatpush1.xpose.msra.mxu0 0.0
  %1349 = vmatprep.subr.mxu0 0.0
  %1350 = vmatpush1.xpose.msra.mxu0 0.0
  %1351 = vmatprep.subr.mxu0 0.0
  %1352 = vmatpush1.xpose.msra.mxu0 0.0
  %1353 = vmatprep.subr.mxu0 0.0
  %1354 = vmatpush1.xpose.msra.mxu0 0.0
  %1355 = vmatprep.subr.mxu0 0.0
  %1356 = vmatpush1.xpose.msra.mxu0 0.0
  %1357 = vmatprep.subr.mxu0 0.0
  %1358 = vmatpush1.xpose.msra.mxu0 0.0
  %1359 = vmatprep.subr.mxu0 0.0
  %1360 = vmatpush1.xpose.msra.mxu0 0.0
  %1361 = vmatprep.subr.mxu0 0.0
  %1362 = vmatpush1.xpose.msra.mxu0 0.0
  %1363 = vmatprep.subr.mxu0 0.0
  %1364 = vmatpush1.xpose.msra.mxu0 0.0
  %1365 = vmatprep.subr.mxu0 0.0
  %1366 = vmatpush1.xpose.msra.mxu0 0.0
  %1367 = vmatprep.subr.mxu0 0.0
  %1368 = vmatpush1.xpose.msra.mxu0 0.0
  %1369 = vmatprep.subr.mxu0 0.0
  %1370 = vmatpush1.xpose.msra.mxu0 0.0
  %1371 = vmatprep.subr.mxu0 0.0
  %1372 = vmatpush1.xpose.msra.mxu0 0.0
  %1373 = vmatprep.subr.mxu0 0.0
  %1374 = vmatpush1.xpose.msra.mxu0 0.0
  %1375 = vmatprep.subr.mxu0 0.0
  %1376 = vmatpush1.xpose.msra.mxu0 0.0
  %1377 = vmatprep.mubr.f32.mxu0 0.0
  %1378 = vmatmul.mubr.f32.gmra.mrb[0].mxu0 %v1308
  %v1379 = vpop.f32.mrb[0].mxu0
  %v1380 = vadd.f32 %v20, %v1379
  %v1381 = vpop.f32.mrb[0].mxu0
  %1382 = vdwg.mxu0
  %v1384 = vsel %vm27, %v325, 0
  %v1387 = vsel %vm27, %v625, 0
  %1389 = vmatprep.subr.mxu0 0.0
  %1390 = vmatpush1.xpose.msra.mxu0 %v1387
  %1391 = vmatprep.subr.mxu0 0.0
  %1392 = vmatpush1.xpose.msra.mxu0 0.0
  %1393 = vmatprep.subr.mxu0 0.0
  %1394 = vmatpush1.xpose.msra.mxu0 0.0
  %1395 = vmatprep.subr.mxu0 0.0
  %1396 = vmatpush1.xpose.msra.mxu0 0.0
  %1397 = vmatprep.subr.mxu0 0.0
  %1398 = vmatpush1.xpose.msra.mxu0 0.0
  %1399 = vmatprep.subr.mxu0 0.0
  %1400 = vmatpush1.xpose.msra.mxu0 0.0
  %1401 = vmatprep.subr.mxu0 0.0
  %1402 = vmatpush1.xpose.msra.mxu0 0.0
  %1403 = vmatprep.subr.mxu0 0.0
  %1404 = vmatpush1.xpose.msra.mxu0 0.0
  %1405 = vmatprep.subr.mxu0 0.0
  %1406 = vmatpush1.xpose.msra.mxu0 0.0
  %1407 = vmatprep.subr.mxu0 0.0
  %1408 = vmatpush1.xpose.msra.mxu0 0.0
  %1409 = vmatprep.subr.mxu0 0.0
  %1410 = vmatpush1.xpose.msra.mxu0 0.0
  %1411 = vmatprep.subr.mxu0 0.0
  %1412 = vmatpush1.xpose.msra.mxu0 0.0
  %1413 = vmatprep.subr.mxu0 0.0
  %1414 = vmatpush1.xpose.msra.mxu0 0.0
  %1415 = vmatprep.subr.mxu0 0.0
  %1416 = vmatpush1.xpose.msra.mxu0 0.0
  %1417 = vmatprep.subr.mxu0 0.0
  %1418 = vmatpush1.xpose.msra.mxu0 0.0
  %1419 = vmatprep.subr.mxu0 0.0
  %1420 = vmatpush1.xpose.msra.mxu0 0.0
  %1421 = vmatprep.subr.mxu0 0.0
  %1422 = vmatpush1.xpose.msra.mxu0 0.0
  %1423 = vmatprep.subr.mxu0 0.0
  %1424 = vmatpush1.xpose.msra.mxu0 0.0
  %1425 = vmatprep.subr.mxu0 0.0
  %1426 = vmatpush1.xpose.msra.mxu0 0.0
  %1427 = vmatprep.subr.mxu0 0.0
  %1428 = vmatpush1.xpose.msra.mxu0 0.0
  %1429 = vmatprep.subr.mxu0 0.0
  %1430 = vmatpush1.xpose.msra.mxu0 0.0
  %1431 = vmatprep.subr.mxu0 0.0
  %1432 = vmatpush1.xpose.msra.mxu0 0.0
  %1433 = vmatprep.subr.mxu0 0.0
  %1434 = vmatpush1.xpose.msra.mxu0 0.0
  %1435 = vmatprep.subr.mxu0 0.0
  %1436 = vmatpush1.xpose.msra.mxu0 0.0
  %1437 = vmatprep.subr.mxu0 0.0
  %1438 = vmatpush1.xpose.msra.mxu0 0.0
  %1439 = vmatprep.subr.mxu0 0.0
  %1440 = vmatpush1.xpose.msra.mxu0 0.0
  %1441 = vmatprep.subr.mxu0 0.0
  %1442 = vmatpush1.xpose.msra.mxu0 0.0
  %1443 = vmatprep.subr.mxu0 0.0
  %1444 = vmatpush1.xpose.msra.mxu0 0.0
  %1445 = vmatprep.subr.mxu0 0.0
  %1446 = vmatpush1.xpose.msra.mxu0 0.0
  %1447 = vmatprep.subr.mxu0 0.0
  %1448 = vmatpush1.xpose.msra.mxu0 0.0
  %1449 = vmatprep.subr.mxu0 0.0
  %1450 = vmatpush1.xpose.msra.mxu0 0.0
  %1451 = vmatprep.subr.mxu0 0.0
  %1452 = vmatpush1.xpose.msra.mxu0 0.0
  %1453 = vmatprep.mubr.f32.mxu0 0.0
  %1454 = vmatmul.mubr.f32.gmra.mrb[0].mxu0 %v1384
  %v1455 = vpop.f32.mrb[0].mxu0
  %v1456 = vadd.f32 %v21, %v1455
  %v1457 = vpop.f32.mrb[0].mxu0
  %1458 = vdwg.mxu0
  %v1460 = vsel %vm27, %v395, 0
  %v1463 = vsel %vm27, %v695, 0
  %1465 = vmatprep.subr.mxu0 0.0
  %1466 = vmatpush1.xpose.msra.mxu0 %v1463
  %1467 = vmatprep.subr.mxu0 0.0
  %1468 = vmatpush1.xpose.msra.mxu0 0.0
  %1469 = vmatprep.subr.mxu0 0.0
  %1470 = vmatpush1.xpose.msra.mxu0 0.0
  %1471 = vmatprep.subr.mxu0 0.0
  %1472 = vmatpush1.xpose.msra.mxu0 0.0
  %1473 = vmatprep.subr.mxu0 0.0
  %1474 = vmatpush1.xpose.msra.mxu0 0.0
  %1475 = vmatprep.subr.mxu0 0.0
  %1476 = vmatpush1.xpose.msra.mxu0 0.0
  %1477 = vmatprep.subr.mxu0 0.0
  %1478 = vmatpush1.xpose.msra.mxu0 0.0
  %1479 = vmatprep.subr.mxu0 0.0
  %1480 = vmatpush1.xpose.msra.mxu0 0.0
  %1481 = vmatprep.subr.mxu0 0.0
  %1482 = vmatpush1.xpose.msra.mxu0 0.0
  %1483 = vmatprep.subr.mxu0 0.0
  %1484 = vmatpush1.xpose.msra.mxu0 0.0
  %1485 = vmatprep.subr.mxu0 0.0
  %1486 = vmatpush1.xpose.msra.mxu0 0.0
  %1487 = vmatprep.subr.mxu0 0.0
  %1488 = vmatpush1.xpose.msra.mxu0 0.0
  %1489 = vmatprep.subr.mxu0 0.0
  %1490 = vmatpush1.xpose.msra.mxu0 0.0
  %1491 = vmatprep.subr.mxu0 0.0
  %1492 = vmatpush1.xpose.msra.mxu0 0.0
  %1493 = vmatprep.subr.mxu0 0.0
  %1494 = vmatpush1.xpose.msra.mxu0 0.0
  %1495 = vmatprep.subr.mxu0 0.0
  %1496 = vmatpush1.xpose.msra.mxu0 0.0
  %1497 = vmatprep.subr.mxu0 0.0
  %1498 = vmatpush1.xpose.msra.mxu0 0.0
  %1499 = vmatprep.subr.mxu0 0.0
  %1500 = vmatpush1.xpose.msra.mxu0 0.0
  %1501 = vmatprep.subr.mxu0 0.0
  %1502 = vmatpush1.xpose.msra.mxu0 0.0
  %1503 = vmatprep.subr.mxu0 0.0
  %1504 = vmatpush1.xpose.msra.mxu0 0.0
  %1505 = vmatprep.subr.mxu0 0.0
  %1506 = vmatpush1.xpose.msra.mxu0 0.0
  %1507 = vmatprep.subr.mxu0 0.0
  %1508 = vmatpush1.xpose.msra.mxu0 0.0
  %1509 = vmatprep.subr.mxu0 0.0
  %1510 = vmatpush1.xpose.msra.mxu0 0.0
  %1511 = vmatprep.subr.mxu0 0.0
  %1512 = vmatpush1.xpose.msra.mxu0 0.0
  %1513 = vmatprep.subr.mxu0 0.0
  %1514 = vmatpush1.xpose.msra.mxu0 0.0
  %1515 = vmatprep.subr.mxu0 0.0
  %1516 = vmatpush1.xpose.msra.mxu0 0.0
  %1517 = vmatprep.subr.mxu0 0.0
  %1518 = vmatpush1.xpose.msra.mxu0 0.0
  %1519 = vmatprep.subr.mxu0 0.0
  %1520 = vmatpush1.xpose.msra.mxu0 0.0
  %1521 = vmatprep.subr.mxu0 0.0
  %1522 = vmatpush1.xpose.msra.mxu0 0.0
  %1523 = vmatprep.subr.mxu0 0.0
  %1524 = vmatpush1.xpose.msra.mxu0 0.0
  %1525 = vmatprep.subr.mxu0 0.0
  %1526 = vmatpush1.xpose.msra.mxu0 0.0
  %1527 = vmatprep.subr.mxu0 0.0
  %1528 = vmatpush1.xpose.msra.mxu0 0.0
  %1529 = vmatprep.mubr.f32.mxu0 0.0
  %1530 = vmatmul.mubr.f32.gmra.mrb[0].mxu0 %v1460
  %v1531 = vpop.f32.mrb[0].mxu0
  %v1532 = vadd.f32 %v22, %v1531
  %v1533 = vpop.f32.mrb[0].mxu0
  %1534 = vdwg.mxu0
  %v1536 = vsel %vm27, %v400, 0
  %v1539 = vsel %vm27, %v700, 0
  %1541 = vmatprep.subr.mxu0 0.0
  %1542 = vmatpush1.xpose.msra.mxu0 %v1539
  %1543 = vmatprep.subr.mxu0 0.0
  %1544 = vmatpush1.xpose.msra.mxu0 0.0
  %1545 = vmatprep.subr.mxu0 0.0
  %1546 = vmatpush1.xpose.msra.mxu0 0.0
  %1547 = vmatprep.subr.mxu0 0.0
  %1548 = vmatpush1.xpose.msra.mxu0 0.0
  %1549 = vmatprep.subr.mxu0 0.0
  %1550 = vmatpush1.xpose.msra.mxu0 0.0
  %1551 = vmatprep.subr.mxu0 0.0
  %1552 = vmatpush1.xpose.msra.mxu0 0.0
  %1553 = vmatprep.subr.mxu0 0.0
  %1554 = vmatpush1.xpose.msra.mxu0 0.0
  %1555 = vmatprep.subr.mxu0 0.0
  %1556 = vmatpush1.xpose.msra.mxu0 0.0
  %1557 = vmatprep.subr.mxu0 0.0
  %1558 = vmatpush1.xpose.msra.mxu0 0.0
  %1559 = vmatprep.subr.mxu0 0.0
  %1560 = vmatpush1.xpose.msra.mxu0 0.0
  %1561 = vmatprep.subr.mxu0 0.0
  %1562 = vmatpush1.xpose.msra.mxu0 0.0
  %1563 = vmatprep.subr.mxu0 0.0
  %1564 = vmatpush1.xpose.msra.mxu0 0.0
  %1565 = vmatprep.subr.mxu0 0.0
  %1566 = vmatpush1.xpose.msra.mxu0 0.0
  %1567 = vmatprep.subr.mxu0 0.0
  %1568 = vmatpush1.xpose.msra.mxu0 0.0
  %1569 = vmatprep.subr.mxu0 0.0
  %1570 = vmatpush1.xpose.msra.mxu0 0.0
  %1571 = vmatprep.subr.mxu0 0.0
  %1572 = vmatpush1.xpose.msra.mxu0 0.0
  %1573 = vmatprep.subr.mxu0 0.0
  %1574 = vmatpush1.xpose.msra.mxu0 0.0
  %1575 = vmatprep.subr.mxu0 0.0
  %1576 = vmatpush1.xpose.msra.mxu0 0.0
  %1577 = vmatprep.subr.mxu0 0.0
  %1578 = vmatpush1.xpose.msra.mxu0 0.0
  %1579 = vmatprep.subr.mxu0 0.0
  %1580 = vmatpush1.xpose.msra.mxu0 0.0
  %1581 = vmatprep.subr.mxu0 0.0
  %1582 = vmatpush1.xpose.msra.mxu0 0.0
  %1583 = vmatprep.subr.mxu0 0.0
  %1584 = vmatpush1.xpose.msra.mxu0 0.0
  %1585 = vmatprep.subr.mxu0 0.0
  %1586 = vmatpush1.xpose.msra.mxu0 0.0
  %1587 = vmatprep.subr.mxu0 0.0
  %1588 = vmatpush1.xpose.msra.mxu0 0.0
  %1589 = vmatprep.subr.mxu0 0.0
  %1590 = vmatpush1.xpose.msra.mxu0 0.0
  %1591 = vmatprep.subr.mxu0 0.0
  %1592 = vmatpush1.xpose.msra.mxu0 0.0
  %1593 = vmatprep.subr.mxu0 0.0
  %1594 = vmatpush1.xpose.msra.mxu0 0.0
  %1595 = vmatprep.subr.mxu0 0.0
  %1596 = vmatpush1.xpose.msra.mxu0 0.0
  %1597 = vmatprep.subr.mxu0 0.0
  %1598 = vmatpush1.xpose.msra.mxu0 0.0
  %1599 = vmatprep.subr.mxu0 0.0
  %1600 = vmatpush1.xpose.msra.mxu0 0.0
  %1601 = vmatprep.subr.mxu0 0.0
  %1602 = vmatpush1.xpose.msra.mxu0 0.0
  %1603 = vmatprep.subr.mxu0 0.0
  %1604 = vmatpush1.xpose.msra.mxu0 0.0
  %1605 = vmatprep.mubr.f32.mxu0 0.0
  %1606 = vmatmul.mubr.f32.gmra.mrb[0].mxu0 %v1536
  %v1607 = vpop.f32.mrb[0].mxu0
  %v1608 = vadd.f32 %v23, %v1607
  %v1609 = vpop.f32.mrb[0].mxu0
  %1610 = vdwg.mxu0
  %vm1611 = vcmask 64512
  %v1612 = vsel %vm1611, %v1076, -inf
  %1613 = vmax.xlane.f32.xlu0 %v1612
  %v1614 = vpop.xlane.xlu0 %1613
  %v1615 = vsel %vm1611, %v1152, -inf
  %1616 = vmax.xlane.f32.xlu0 %v1615
  %v1617 = vpop.xlane.xlu0 %1616
  %v1618 = vsel %vm1611, %v1228, -inf
  %1619 = vmax.xlane.f32.xlu0 %v1618
  %v1620 = vpop.xlane.xlu0 %1619
  %v1621 = vsel %vm1611, %v1304, -inf
  %1622 = vmax.xlane.f32.xlu0 %v1621
  %v1623 = vpop.xlane.xlu0 %1622
  %v1624 = vsel %vm1611, %v1380, -inf
  %1625 = vmax.xlane.f32.xlu0 %v1624
  %v1626 = vpop.xlane.xlu0 %1625
  %v1627 = vsel %vm1611, %v1456, -inf
  %1628 = vmax.xlane.f32.xlu0 %v1627
  %v1629 = vpop.xlane.xlu0 %1628
  %v1630 = vsel %vm1611, %v1532, -inf
  %1631 = vmax.xlane.f32.xlu0 %v1630
  %v1632 = vpop.xlane.xlu0 %1631
  %v1633 = vsel %vm1611, %v1608, -inf
  %1634 = vmax.xlane.f32.xlu0 %v1633
  %v1635 = vpop.xlane.xlu0 %1634
  %v1636 = vsub.f32 %v1076, %v1614
  %v1637 = vsub.f32 %v1152, %v1617
  %v1638 = vsub.f32 %v1228, %v1620
  %v1639 = vsub.f32 %v1304, %v1623
  %v1640 = vsub.f32 %v1380, %v1626
  %v1641 = vsub.f32 %v1456, %v1629
  %v1642 = vsub.f32 %v1532, %v1632
  %v1643 = vsub.f32 %v1608, %v1635
  %v1644 = vmul.f32 %v1636, 1.442695
  %v1645 = vpow.pop %v1644
  %v1646 = vmul.f32 %v1637, 1.442695
  %v1647 = vpow.pop %v1646
  %v1648 = vmul.f32 %v1638, 1.442695
  %v1649 = vpow.pop %v1648
  %v1650 = vmul.f32 %v1639, 1.442695
  %v1651 = vpow.pop %v1650
  %v1652 = vmul.f32 %v1640, 1.442695
  %v1653 = vpow.pop %v1652
  %v1654 = vmul.f32 %v1641, 1.442695
  %v1655 = vpow.pop %v1654
  %v1656 = vmul.f32 %v1642, 1.442695
  %v1657 = vpow.pop %v1656
  %v1658 = vmul.f32 %v1643, 1.442695
  %v1659 = vpow.pop %v1658
  %v1660 = vsel %vm1611, %v1645, 0.0
  %1661 = vadd.xlane.f32.xlu0 %v1660
  %v1662 = vpop.xlane.xlu0 %1661
  %v1663 = vsel %vm1611, %v1647, 0.0
  %1664 = vadd.xlane.f32.xlu0 %v1663
  %v1665 = vpop.xlane.xlu0 %1664
  %v1666 = vsel %vm1611, %v1649, 0.0
  %1667 = vadd.xlane.f32.xlu0 %v1666
  %v1668 = vpop.xlane.xlu0 %1667
  %v1669 = vsel %vm1611, %v1651, 0.0
  %1670 = vadd.xlane.f32.xlu0 %v1669
  %v1671 = vpop.xlane.xlu0 %1670
  %v1672 = vsel %vm1611, %v1653, 0.0
  %1673 = vadd.xlane.f32.xlu0 %v1672
  %v1674 = vpop.xlane.xlu0 %1673
  %v1675 = vsel %vm1611, %v1655, 0.0
  %1676 = vadd.xlane.f32.xlu0 %v1675
  %v1677 = vpop.xlane.xlu0 %1676
  %v1678 = vsel %vm1611, %v1657, 0.0
  %1679 = vadd.xlane.f32.xlu0 %v1678
  %v1680 = vpop.xlane.xlu0 %1679
  %v1681 = vsel %vm1611, %v1659, 0.0
  %1682 = vadd.xlane.f32.xlu0 %v1681
  %v1683 = vpop.xlane.xlu0 %1682
  %v1684 = vrcp.pop %v1662
  %v1685 = vrcp.pop %v1665
  %v1686 = vrcp.pop %v1668
  %v1687 = vrcp.pop %v1671
  %v1688 = vrcp.pop %v1674
  %v1689 = vrcp.pop %v1677
  %v1690 = vrcp.pop %v1680
  %v1691 = vrcp.pop %v1683
  %v1692 = vmul.f32 %v1645, %v1684
  %v1693 = vmul.f32 %v1647, %v1685
  %v1694 = vmul.f32 %v1649, %v1686
  %v1695 = vmul.f32 %v1651, %v1687
  %v1696 = vmul.f32 %v1653, %v1688
  %v1697 = vmul.f32 %v1655, %v1689
  %v1698 = vmul.f32 %v1657, %v1690
  %v1699 = vmul.f32 %v1659, %v1691
  %v1701 = vsel %vm1611, %v1692, 0
  %1703 = vmatprep.subr.mxu0 0.0
  %1704 = vmatpush1.msra.mxu0 %v770
  %1705 = vmatprep.subr.mxu0 0.0
  %1706 = vmatpush1.msra.mxu0 0.0
  %1707 = vmatprep.subr.mxu0 0.0
  %1708 = vmatpush1.msra.mxu0 0.0
  %1709 = vmatprep.subr.mxu0 0.0
  %1710 = vmatpush1.msra.mxu0 0.0
  %1711 = vmatprep.subr.mxu0 0.0
  %1712 = vmatpush1.msra.mxu0 0.0
  %1713 = vmatprep.subr.mxu0 0.0
  %1714 = vmatpush1.msra.mxu0 0.0
  %1715 = vmatprep.subr.mxu0 0.0
  %1716 = vmatpush1.msra.mxu0 0.0
  %1717 = vmatprep.subr.mxu0 0.0
  %1718 = vmatpush1.msra.mxu0 0.0
  %1719 = vmatprep.subr.mxu0 0.0
  %1720 = vmatpush1.msra.mxu0 0.0
  %1721 = vmatprep.subr.mxu0 0.0
  %1722 = vmatpush1.msra.mxu0 0.0
  %1723 = vmatprep.subr.mxu0 0.0
  %1724 = vmatpush1.msra.mxu0 0.0
  %1725 = vmatprep.subr.mxu0 0.0
  %1726 = vmatpush1.msra.mxu0 0.0
  %1727 = vmatprep.subr.mxu0 0.0
  %1728 = vmatpush1.msra.mxu0 0.0
  %1729 = vmatprep.subr.mxu0 0.0
  %1730 = vmatpush1.msra.mxu0 0.0
  %1731 = vmatprep.subr.mxu0 0.0
  %1732 = vmatpush1.msra.mxu0 0.0
  %1733 = vmatprep.subr.mxu0 0.0
  %1734 = vmatpush1.msra.mxu0 0.0
  %1735 = vmatprep.subr.mxu0 0.0
  %1736 = vmatpush1.msra.mxu0 0.0
  %1737 = vmatprep.subr.mxu0 0.0
  %1738 = vmatpush1.msra.mxu0 0.0
  %1739 = vmatprep.subr.mxu0 0.0
  %1740 = vmatpush1.msra.mxu0 0.0
  %1741 = vmatprep.subr.mxu0 0.0
  %1742 = vmatpush1.msra.mxu0 0.0
  %1743 = vmatprep.subr.mxu0 0.0
  %1744 = vmatpush1.msra.mxu0 0.0
  %1745 = vmatprep.subr.mxu0 0.0
  %1746 = vmatpush1.msra.mxu0 0.0
  %1747 = vmatprep.subr.mxu0 0.0
  %1748 = vmatpush1.msra.mxu0 0.0
  %1749 = vmatprep.subr.mxu0 0.0
  %1750 = vmatpush1.msra.mxu0 0.0
  %1751 = vmatprep.subr.mxu0 0.0
  %1752 = vmatpush1.msra.mxu0 0.0
  %1753 = vmatprep.subr.mxu0 0.0
  %1754 = vmatpush1.msra.mxu0 0.0
  %1755 = vmatprep.subr.mxu0 0.0
  %1756 = vmatpush1.msra.mxu0 0.0
  %1757 = vmatprep.subr.mxu0 0.0
  %1758 = vmatpush1.msra.mxu0 0.0
  %1759 = vmatprep.subr.mxu0 0.0
  %1760 = vmatpush1.msra.mxu0 0.0
  %1761 = vmatprep.subr.mxu0 0.0
  %1762 = vmatpush1.msra.mxu0 0.0
  %1763 = vmatprep.subr.mxu0 0.0
  %1764 = vmatpush1.msra.mxu0 0.0
  %1765 = vmatprep.subr.mxu0 0.0
  %1766 = vmatpush1.msra.mxu0 0.0
  %1767 = vmatprep.mubr.f32.mxu0 0.0
  %1768 = vmatmul.mubr.f32.gmra.mrb[0].mxu0 %v1701
  %v1769 = vpop.f32.mrb[0].mxu0
  %v1770 = vadd.f32 0.0, %v1769
  %v1771 = vpop.f32.mrb[0].mxu0
  %1772 = vdwg.mxu0
  %v1774 = vsel %vm1611, %v1693, 0
  %1776 = vmatprep.subr.mxu0 0.0
  %1777 = vmatpush1.msra.mxu0 %v775
  %1778 = vmatprep.subr.mxu0 0.0
  %1779 = vmatpush1.msra.mxu0 0.0
  %1780 = vmatprep.subr.mxu0 0.0
  %1781 = vmatpush1.msra.mxu0 0.0
  %1782 = vmatprep.subr.mxu0 0.0
  %1783 = vmatpush1.msra.mxu0 0.0
  %1784 = vmatprep.subr.mxu0 0.0
  %1785 = vmatpush1.msra.mxu0 0.0
  %1786 = vmatprep.subr.mxu0 0.0
  %1787 = vmatpush1.msra.mxu0 0.0
  %1788 = vmatprep.subr.mxu0 0.0
  %1789 = vmatpush1.msra.mxu0 0.0
  %1790 = vmatprep.subr.mxu0 0.0
  %1791 = vmatpush1.msra.mxu0 0.0
  %1792 = vmatprep.subr.mxu0 0.0
  %1793 = vmatpush1.msra.mxu0 0.0
  %1794 = vmatprep.subr.mxu0 0.0
  %1795 = vmatpush1.msra.mxu0 0.0
  %1796 = vmatprep.subr.mxu0 0.0
  %1797 = vmatpush1.msra.mxu0 0.0
  %1798 = vmatprep.subr.mxu0 0.0
  %1799 = vmatpush1.msra.mxu0 0.0
  %1800 = vmatprep.subr.mxu0 0.0
  %1801 = vmatpush1.msra.mxu0 0.0
  %1802 = vmatprep.subr.mxu0 0.0
  %1803 = vmatpush1.msra.mxu0 0.0
  %1804 = vmatprep.subr.mxu0 0.0
  %1805 = vmatpush1.msra.mxu0 0.0
  %1806 = vmatprep.subr.mxu0 0.0
  %1807 = vmatpush1.msra.mxu0 0.0
  %1808 = vmatprep.subr.mxu0 0.0
  %1809 = vmatpush1.msra.mxu0 0.0
  %1810 = vmatprep.subr.mxu0 0.0
  %1811 = vmatpush1.msra.mxu0 0.0
  %1812 = vmatprep.subr.mxu0 0.0
  %1813 = vmatpush1.msra.mxu0 0.0
  %1814 = vmatprep.subr.mxu0 0.0
  %1815 = vmatpush1.msra.mxu0 0.0
  %1816 = vmatprep.subr.mxu0 0.0
  %1817 = vmatpush1.msra.mxu0 0.0
  %1818 = vmatprep.subr.mxu0 0.0
  %1819 = vmatpush1.msra.mxu0 0.0
  %1820 = vmatprep.subr.mxu0 0.0
  %1821 = vmatpush1.msra.mxu0 0.0
  %1822 = vmatprep.subr.mxu0 0.0
  %1823 = vmatpush1.msra.mxu0 0.0
  %1824 = vmatprep.subr.mxu0 0.0
  %1825 = vmatpush1.msra.mxu0 0.0
  %1826 = vmatprep.subr.mxu0 0.0
  %1827 = vmatpush1.msra.mxu0 0.0
  %1828 = vmatprep.subr.mxu0 0.0
  %1829 = vmatpush1.msra.mxu0 0.0
  %1830 = vmatprep.subr.mxu0 0.0
  %1831 = vmatpush1.msra.mxu0 0.0
  %1832 = vmatprep.subr.mxu0 0.0
  %1833 = vmatpush1.msra.mxu0 0.0
  %1834 = vmatprep.subr.mxu0 0.0
  %1835 = vmatpush1.msra.mxu0 0.0
  %1836 = vmatprep.subr.mxu0 0.0
  %1837 = vmatpush1.msra.mxu0 0.0
  %1838 = vmatprep.subr.mxu0 0.0
  %1839 = vmatpush1.msra.mxu0 0.0
  %1840 = vmatprep.mubr.f32.mxu0 0.0
  %1841 = vmatmul.mubr.f32.gmra.mrb[0].mxu0 %v1774
  %v1842 = vpop.f32.mrb[0].mxu0
  %v1843 = vadd.f32 0.0, %v1842
  %v1844 = vpop.f32.mrb[0].mxu0
  %1845 = vdwg.mxu0
  %v1847 = vsel %vm1611, %v1694, 0
  %1849 = vmatprep.subr.mxu0 0.0
  %1850 = vmatpush1.msra.mxu0 %v845
  %1851 = vmatprep.subr.mxu0 0.0
  %1852 = vmatpush1.msra.mxu0 0.0
  %1853 = vmatprep.subr.mxu0 0.0
  %1854 = vmatpush1.msra.mxu0 0.0
  %1855 = vmatprep.subr.mxu0 0.0
  %1856 = vmatpush1.msra.mxu0 0.0
  %1857 = vmatprep.subr.mxu0 0.0
  %1858 = vmatpush1.msra.mxu0 0.0
  %1859 = vmatprep.subr.mxu0 0.0
  %1860 = vmatpush1.msra.mxu0 0.0
  %1861 = vmatprep.subr.mxu0 0.0
  %1862 = vmatpush1.msra.mxu0 0.0
  %1863 = vmatprep.subr.mxu0 0.0
  %1864 = vmatpush1.msra.mxu0 0.0
  %1865 = vmatprep.subr.mxu0 0.0
  %1866 = vmatpush1.msra.mxu0 0.0
  %1867 = vmatprep.subr.mxu0 0.0
  %1868 = vmatpush1.msra.mxu0 0.0
  %1869 = vmatprep.subr.mxu0 0.0
  %1870 = vmatpush1.msra.mxu0 0.0
  %1871 = vmatprep.subr.mxu0 0.0
  %1872 = vmatpush1.msra.mxu0 0.0
  %1873 = vmatprep.subr.mxu0 0.0
  %1874 = vmatpush1.msra.mxu0 0.0
  %1875 = vmatprep.subr.mxu0 0.0
  %1876 = vmatpush1.msra.mxu0 0.0
  %1877 = vmatprep.subr.mxu0 0.0
  %1878 = vmatpush1.msra.mxu0 0.0
  %1879 = vmatprep.subr.mxu0 0.0
  %1880 = vmatpush1.msra.mxu0 0.0
  %1881 = vmatprep.subr.mxu0 0.0
  %1882 = vmatpush1.msra.mxu0 0.0
  %1883 = vmatprep.subr.mxu0 0.0
  %1884 = vmatpush1.msra.mxu0 0.0
  %1885 = vmatprep.subr.mxu0 0.0
  %1886 = vmatpush1.msra.mxu0 0.0
  %1887 = vmatprep.subr.mxu0 0.0
  %1888 = vmatpush1.msra.mxu0 0.0
  %1889 = vmatprep.subr.mxu0 0.0
  %1890 = vmatpush1.msra.mxu0 0.0
  %1891 = vmatprep.subr.mxu0 0.0
  %1892 = vmatpush1.msra.mxu0 0.0
  %1893 = vmatprep.subr.mxu0 0.0
  %1894 = vmatpush1.msra.mxu0 0.0
  %1895 = vmatprep.subr.mxu0 0.0
  %1896 = vmatpush1.msra.mxu0 0.0
  %1897 = vmatprep.subr.mxu0 0.0
  %1898 = vmatpush1.msra.mxu0 0.0
  %1899 = vmatprep.subr.mxu0 0.0
  %1900 = vmatpush1.msra.mxu0 0.0
  %1901 = vmatprep.subr.mxu0 0.0
  %1902 = vmatpush1.msra.mxu0 0.0
  %1903 = vmatprep.subr.mxu0 0.0
  %1904 = vmatpush1.msra.mxu0 0.0
  %1905 = vmatprep.subr.mxu0 0.0
  %1906 = vmatpush1.msra.mxu0 0.0
  %1907 = vmatprep.subr.mxu0 0.0
  %1908 = vmatpush1.msra.mxu0 0.0
  %1909 = vmatprep.subr.mxu0 0.0
  %1910 = vmatpush1.msra.mxu0 0.0
  %1911 = vmatprep.subr.mxu0 0.0
  %1912 = vmatpush1.msra.mxu0 0.0
  %1913 = vmatprep.mubr.f32.mxu0 0.0
  %1914 = vmatmul.mubr.f32.gmra.mrb[0].mxu0 %v1847
  %v1915 = vpop.f32.mrb[0].mxu0
  %v1916 = vadd.f32 0.0, %v1915
  %v1917 = vpop.f32.mrb[0].mxu0
  %1918 = vdwg.mxu0
  %v1920 = vsel %vm1611, %v1695, 0
  %1922 = vmatprep.subr.mxu0 0.0
  %1923 = vmatpush1.msra.mxu0 %v850
  %1924 = vmatprep.subr.mxu0 0.0
  %1925 = vmatpush1.msra.mxu0 0.0
  %1926 = vmatprep.subr.mxu0 0.0
  %1927 = vmatpush1.msra.mxu0 0.0
  %1928 = vmatprep.subr.mxu0 0.0
  %1929 = vmatpush1.msra.mxu0 0.0
  %1930 = vmatprep.subr.mxu0 0.0
  %1931 = vmatpush1.msra.mxu0 0.0
  %1932 = vmatprep.subr.mxu0 0.0
  %1933 = vmatpush1.msra.mxu0 0.0
  %1934 = vmatprep.subr.mxu0 0.0
  %1935 = vmatpush1.msra.mxu0 0.0
  %1936 = vmatprep.subr.mxu0 0.0
  %1937 = vmatpush1.msra.mxu0 0.0
  %1938 = vmatprep.subr.mxu0 0.0
  %1939 = vmatpush1.msra.mxu0 0.0
  %1940 = vmatprep.subr.mxu0 0.0
  %1941 = vmatpush1.msra.mxu0 0.0
  %1942 = vmatprep.subr.mxu0 0.0
  %1943 = vmatpush1.msra.mxu0 0.0
  %1944 = vmatprep.subr.mxu0 0.0
  %1945 = vmatpush1.msra.mxu0 0.0
  %1946 = vmatprep.subr.mxu0 0.0
  %1947 = vmatpush1.msra.mxu0 0.0
  %1948 = vmatprep.subr.mxu0 0.0
  %1949 = vmatpush1.msra.mxu0 0.0
  %1950 = vmatprep.subr.mxu0 0.0
  %1951 = vmatpush1.msra.mxu0 0.0
  %1952 = vmatprep.subr.mxu0 0.0
  %1953 = vmatpush1.msra.mxu0 0.0
  %1954 = vmatprep.subr.mxu0 0.0
  %1955 = vmatpush1.msra.mxu0 0.0
  %1956 = vmatprep.subr.mxu0 0.0
  %1957 = vmatpush1.msra.mxu0 0.0
  %1958 = vmatprep.subr.mxu0 0.0
  %1959 = vmatpush1.msra.mxu0 0.0
  %1960 = vmatprep.subr.mxu0 0.0
  %1961 = vmatpush1.msra.mxu0 0.0
  %1962 = vmatprep.subr.mxu0 0.0
  %1963 = vmatpush1.msra.mxu0 0.0
  %1964 = vmatprep.subr.mxu0 0.0
  %1965 = vmatpush1.msra.mxu0 0.0
  %1966 = vmatprep.subr.mxu0 0.0
  %1967 = vmatpush1.msra.mxu0 0.0
  %1968 = vmatprep.subr.mxu0 0.0
  %1969 = vmatpush1.msra.mxu0 0.0
  %1970 = vmatprep.subr.mxu0 0.0
  %1971 = vmatpush1.msra.mxu0 0.0
  %1972 = vmatprep.subr.mxu0 0.0
  %1973 = vmatpush1.msra.mxu0 0.0
  %1974 = vmatprep.subr.mxu0 0.0
  %1975 = vmatpush1.msra.mxu0 0.0
  %1976 = vmatprep.subr.mxu0 0.0
  %1977 = vmatpush1.msra.mxu0 0.0
  %1978 = vmatprep.subr.mxu0 0.0
  %1979 = vmatpush1.msra.mxu0 0.0
  %1980 = vmatprep.subr.mxu0 0.0
  %1981 = vmatpush1.msra.mxu0 0.0
  %1982 = vmatprep.subr.mxu0 0.0
  %1983 = vmatpush1.msra.mxu0 0.0
  %1984 = vmatprep.subr.mxu0 0.0
  %1985 = vmatpush1.msra.mxu0 0.0
  %1986 = vmatprep.mubr.f32.mxu0 0.0
  %1987 = vmatmul.mubr.f32.gmra.mrb[0].mxu0 %v1920
  %v1988 = vpop.f32.mrb[0].mxu0
  %v1989 = vadd.f32 0.0, %v1988
  %v1990 = vpop.f32.mrb[0].mxu0
  %1991 = vdwg.mxu0
  %v1993 = vsel %vm1611, %v1696, 0
  %1995 = vmatprep.subr.mxu0 0.0
  %1996 = vmatpush1.msra.mxu0 %v920
  %1997 = vmatprep.subr.mxu0 0.0
  %1998 = vmatpush1.msra.mxu0 0.0
  %1999 = vmatprep.subr.mxu0 0.0
  %2000 = vmatpush1.msra.mxu0 0.0
  %2001 = vmatprep.subr.mxu0 0.0
  %2002 = vmatpush1.msra.mxu0 0.0
  %2003 = vmatprep.subr.mxu0 0.0
  %2004 = vmatpush1.msra.mxu0 0.0
  %2005 = vmatprep.subr.mxu0 0.0
  %2006 = vmatpush1.msra.mxu0 0.0
  %2007 = vmatprep.subr.mxu0 0.0
  %2008 = vmatpush1.msra.mxu0 0.0
  %2009 = vmatprep.subr.mxu0 0.0
  %2010 = vmatpush1.msra.mxu0 0.0
  %2011 = vmatprep.subr.mxu0 0.0
  %2012 = vmatpush1.msra.mxu0 0.0
  %2013 = vmatprep.subr.mxu0 0.0
  %2014 = vmatpush1.msra.mxu0 0.0
  %2015 = vmatprep.subr.mxu0 0.0
  %2016 = vmatpush1.msra.mxu0 0.0
  %2017 = vmatprep.subr.mxu0 0.0
  %2018 = vmatpush1.msra.mxu0 0.0
  %2019 = vmatprep.subr.mxu0 0.0
  %2020 = vmatpush1.msra.mxu0 0.0
  %2021 = vmatprep.subr.mxu0 0.0
  %2022 = vmatpush1.msra.mxu0 0.0
  %2023 = vmatprep.subr.mxu0 0.0
  %2024 = vmatpush1.msra.mxu0 0.0
  %2025 = vmatprep.subr.mxu0 0.0
  %2026 = vmatpush1.msra.mxu0 0.0
  %2027 = vmatprep.subr.mxu0 0.0
  %2028 = vmatpush1.msra.mxu0 0.0
  %2029 = vmatprep.subr.mxu0 0.0
  %2030 = vmatpush1.msra.mxu0 0.0
  %2031 = vmatprep.subr.mxu0 0.0
  %2032 = vmatpush1.msra.mxu0 0.0
  %2033 = vmatprep.subr.mxu0 0.0
  %2034 = vmatpush1.msra.mxu0 0.0
  %2035 = vmatprep.subr.mxu0 0.0
  %2036 = vmatpush1.msra.mxu0 0.0
  %2037 = vmatprep.subr.mxu0 0.0
  %2038 = vmatpush1.msra.mxu0 0.0
  %2039 = vmatprep.subr.mxu0 0.0
  %2040 = vmatpush1.msra.mxu0 0.0
  %2041 = vmatprep.subr.mxu0 0.0
  %2042 = vmatpush1.msra.mxu0 0.0
  %2043 = vmatprep.subr.mxu0 0.0
  %2044 = vmatpush1.msra.mxu0 0.0
  %2045 = vmatprep.subr.mxu0 0.0
  %2046 = vmatpush1.msra.mxu0 0.0
  %2047 = vmatprep.subr.mxu0 0.0
  %2048 = vmatpush1.msra.mxu0 0.0
  %2049 = vmatprep.subr.mxu0 0.0
  %2050 = vmatpush1.msra.mxu0 0.0
  %2051 = vmatprep.subr.mxu0 0.0
  %2052 = vmatpush1.msra.mxu0 0.0
  %2053 = vmatprep.subr.mxu0 0.0
  %2054 = vmatpush1.msra.mxu0 0.0
  %2055 = vmatprep.subr.mxu0 0.0
  %2056 = vmatpush1.msra.mxu0 0.0
  %2057 = vmatprep.subr.mxu0 0.0
  %2058 = vmatpush1.msra.mxu0 0.0
  %2059 = vmatprep.mubr.f32.mxu0 0.0
  %2060 = vmatmul.mubr.f32.gmra.mrb[0].mxu0 %v1993
  %v2061 = vpop.f32.mrb[0].mxu0
  %v2062 = vadd.f32 0.0, %v2061
  %v2063 = vpop.f32.mrb[0].mxu0
  %2064 = vdwg.mxu0
  %v2066 = vsel %vm1611, %v1697, 0
  %2068 = vmatprep.subr.mxu0 0.0
  %2069 = vmatpush1.msra.mxu0 %v925
  %2070 = vmatprep.subr.mxu0 0.0
  %2071 = vmatpush1.msra.mxu0 0.0
  %2072 = vmatprep.subr.mxu0 0.0
  %2073 = vmatpush1.msra.mxu0 0.0
  %2074 = vmatprep.subr.mxu0 0.0
  %2075 = vmatpush1.msra.mxu0 0.0
  %2076 = vmatprep.subr.mxu0 0.0
  %2077 = vmatpush1.msra.mxu0 0.0
  %2078 = vmatprep.subr.mxu0 0.0
  %2079 = vmatpush1.msra.mxu0 0.0
  %2080 = vmatprep.subr.mxu0 0.0
  %2081 = vmatpush1.msra.mxu0 0.0
  %2082 = vmatprep.subr.mxu0 0.0
  %2083 = vmatpush1.msra.mxu0 0.0
  %2084 = vmatprep.subr.mxu0 0.0
  %2085 = vmatpush1.msra.mxu0 0.0
  %2086 = vmatprep.subr.mxu0 0.0
  %2087 = vmatpush1.msra.mxu0 0.0
  %2088 = vmatprep.subr.mxu0 0.0
  %2089 = vmatpush1.msra.mxu0 0.0
  %2090 = vmatprep.subr.mxu0 0.0
  %2091 = vmatpush1.msra.mxu0 0.0
  %2092 = vmatprep.subr.mxu0 0.0
  %2093 = vmatpush1.msra.mxu0 0.0
  %2094 = vmatprep.subr.mxu0 0.0
  %2095 = vmatpush1.msra.mxu0 0.0
  %2096 = vmatprep.subr.mxu0 0.0
  %2097 = vmatpush1.msra.mxu0 0.0
  %2098 = vmatprep.subr.mxu0 0.0
  %2099 = vmatpush1.msra.mxu0 0.0
  %2100 = vmatprep.subr.mxu0 0.0
  %2101 = vmatpush1.msra.mxu0 0.0
  %2102 = vmatprep.subr.mxu0 0.0
  %2103 = vmatpush1.msra.mxu0 0.0
  %2104 = vmatprep.subr.mxu0 0.0
  %2105 = vmatpush1.msra.mxu0 0.0
  %2106 = vmatprep.subr.mxu0 0.0
  %2107 = vmatpush1.msra.mxu0 0.0
  %2108 = vmatprep.subr.mxu0 0.0
  %2109 = vmatpush1.msra.mxu0 0.0
  %2110 = vmatprep.subr.mxu0 0.0
  %2111 = vmatpush1.msra.mxu0 0.0
  %2112 = vmatprep.subr.mxu0 0.0
  %2113 = vmatpush1.msra.mxu0 0.0
  %2114 = vmatprep.subr.mxu0 0.0
  %2115 = vmatpush1.msra.mxu0 0.0
  %2116 = vmatprep.subr.mxu0 0.0
  %2117 = vmatpush1.msra.mxu0 0.0
  %2118 = vmatprep.subr.mxu0 0.0
  %2119 = vmatpush1.msra.mxu0 0.0
  %2120 = vmatprep.subr.mxu0 0.0
  %2121 = vmatpush1.msra.mxu0 0.0
  %2122 = vmatprep.subr.mxu0 0.0
  %2123 = vmatpush1.msra.mxu0 0.0
  %2124 = vmatprep.subr.mxu0 0.0
  %2125 = vmatpush1.msra.mxu0 0.0
  %2126 = vmatprep.subr.mxu0 0.0
  %2127 = vmatpush1.msra.mxu0 0.0
  %2128 = vmatprep.subr.mxu0 0.0
  %2129 = vmatpush1.msra.mxu0 0.0
  %2130 = vmatprep.subr.mxu0 0.0
  %2131 = vmatpush1.msra.mxu0 0.0
  %2132 = vmatprep.mubr.f32.mxu0 0.0
  %2133 = vmatmul.mubr.f32.gmra.mrb[0].mxu0 %v2066
  %v2134 = vpop.f32.mrb[0].mxu0
  %v2135 = vadd.f32 0.0, %v2134
  %v2136 = vpop.f32.mrb[0].mxu0
  %2137 = vdwg.mxu0
  %v2139 = vsel %vm1611, %v1698, 0
  %2141 = vmatprep.subr.mxu0 0.0
  %2142 = vmatpush1.msra.mxu0 %v995
  %2143 = vmatprep.subr.mxu0 0.0
  %2144 = vmatpush1.msra.mxu0 0.0
  %2145 = vmatprep.subr.mxu0 0.0
  %2146 = vmatpush1.msra.mxu0 0.0
  %2147 = vmatprep.subr.mxu0 0.0
  %2148 = vmatpush1.msra.mxu0 0.0
  %2149 = vmatprep.subr.mxu0 0.0
  %2150 = vmatpush1.msra.mxu0 0.0
  %2151 = vmatprep.subr.mxu0 0.0
  %2152 = vmatpush1.msra.mxu0 0.0
  %2153 = vmatprep.subr.mxu0 0.0
  %2154 = vmatpush1.msra.mxu0 0.0
  %2155 = vmatprep.subr.mxu0 0.0
  %2156 = vmatpush1.msra.mxu0 0.0
  %2157 = vmatprep.subr.mxu0 0.0
  %2158 = vmatpush1.msra.mxu0 0.0
  %2159 = vmatprep.subr.mxu0 0.0
  %2160 = vmatpush1.msra.mxu0 0.0
  %2161 = vmatprep.subr.mxu0 0.0
  %2162 = vmatpush1.msra.mxu0 0.0
  %2163 = vmatprep.subr.mxu0 0.0
  %2164 = vmatpush1.msra.mxu0 0.0
  %2165 = vmatprep.subr.mxu0 0.0
  %2166 = vmatpush1.msra.mxu0 0.0
  %2167 = vmatprep.subr.mxu0 0.0
  %2168 = vmatpush1.msra.mxu0 0.0
  %2169 = vmatprep.subr.mxu0 0.0
  %2170 = vmatpush1.msra.mxu0 0.0
  %2171 = vmatprep.subr.mxu0 0.0
  %2172 = vmatpush1.msra.mxu0 0.0
  %2173 = vmatprep.subr.mxu0 0.0
  %2174 = vmatpush1.msra.mxu0 0.0
  %2175 = vmatprep.subr.mxu0 0.0
  %2176 = vmatpush1.msra.mxu0 0.0
  %2177 = vmatprep.subr.mxu0 0.0
  %2178 = vmatpush1.msra.mxu0 0.0
  %2179 = vmatprep.subr.mxu0 0.0
  %2180 = vmatpush1.msra.mxu0 0.0
  %2181 = vmatprep.subr.mxu0 0.0
  %2182 = vmatpush1.msra.mxu0 0.0
  %2183 = vmatprep.subr.mxu0 0.0
  %2184 = vmatpush1.msra.mxu0 0.0
  %2185 = vmatprep.subr.mxu0 0.0
  %2186 = vmatpush1.msra.mxu0 0.0
  %2187 = vmatprep.subr.mxu0 0.0
  %2188 = vmatpush1.msra.mxu0 0.0
  %2189 = vmatprep.subr.mxu0 0.0
  %2190 = vmatpush1.msra.mxu0 0.0
  %2191 = vmatprep.subr.mxu0 0.0
  %2192 = vmatpush1.msra.mxu0 0.0
  %2193 = vmatprep.subr.mxu0 0.0
  %2194 = vmatpush1.msra.mxu0 0.0
  %2195 = vmatprep.subr.mxu0 0.0
  %2196 = vmatpush1.msra.mxu0 0.0
  %2197 = vmatprep.subr.mxu0 0.0
  %2198 = vmatpush1.msra.mxu0 0.0
  %2199 = vmatprep.subr.mxu0 0.0
  %2200 = vmatpush1.msra.mxu0 0.0
  %2201 = vmatprep.subr.mxu0 0.0
  %2202 = vmatpush1.msra.mxu0 0.0
  %2203 = vmatprep.subr.mxu0 0.0
  %2204 = vmatpush1.msra.mxu0 0.0
  %2205 = vmatprep.mubr.f32.mxu0 0.0
  %2206 = vmatmul.mubr.f32.gmra.mrb[0].mxu0 %v2139
  %v2207 = vpop.f32.mrb[0].mxu0
  %v2208 = vadd.f32 0.0, %v2207
  %v2209 = vpop.f32.mrb[0].mxu0
  %2210 = vdwg.mxu0
  %v2212 = vsel %vm1611, %v1699, 0
  %2214 = vmatprep.subr.mxu0 0.0
  %2215 = vmatpush1.msra.mxu0 %v1000
  %2216 = vmatprep.subr.mxu0 0.0
  %2217 = vmatpush1.msra.mxu0 0.0
  %2218 = vmatprep.subr.mxu0 0.0
  %2219 = vmatpush1.msra.mxu0 0.0
  %2220 = vmatprep.subr.mxu0 0.0
  %2221 = vmatpush1.msra.mxu0 0.0
  %2222 = vmatprep.subr.mxu0 0.0
  %2223 = vmatpush1.msra.mxu0 0.0
  %2224 = vmatprep.subr.mxu0 0.0
  %2225 = vmatpush1.msra.mxu0 0.0
  %2226 = vmatprep.subr.mxu0 0.0
  %2227 = vmatpush1.msra.mxu0 0.0
  %2228 = vmatprep.subr.mxu0 0.0
  %2229 = vmatpush1.msra.mxu0 0.0
  %2230 = vmatprep.subr.mxu0 0.0
  %2231 = vmatpush1.msra.mxu0 0.0
  %2232 = vmatprep.subr.mxu0 0.0
  %2233 = vmatpush1.msra.mxu0 0.0
  %2234 = vmatprep.subr.mxu0 0.0
  %2235 = vmatpush1.msra.mxu0 0.0
  %2236 = vmatprep.subr.mxu0 0.0
  %2237 = vmatpush1.msra.mxu0 0.0
  %2238 = vmatprep.subr.mxu0 0.0
  %2239 = vmatpush1.msra.mxu0 0.0
  %2240 = vmatprep.subr.mxu0 0.0
  %2241 = vmatpush1.msra.mxu0 0.0
  %2242 = vmatprep.subr.mxu0 0.0
  %2243 = vmatpush1.msra.mxu0 0.0
  %2244 = vmatprep.subr.mxu0 0.0
  %2245 = vmatpush1.msra.mxu0 0.0
  %2246 = vmatprep.subr.mxu0 0.0
  %2247 = vmatpush1.msra.mxu0 0.0
  %2248 = vmatprep.subr.mxu0 0.0
  %2249 = vmatpush1.msra.mxu0 0.0
  %2250 = vmatprep.subr.mxu0 0.0
  %2251 = vmatpush1.msra.mxu0 0.0
  %2252 = vmatprep.subr.mxu0 0.0
  %2253 = vmatpush1.msra.mxu0 0.0
  %2254 = vmatprep.subr.mxu0 0.0
  %2255 = vmatpush1.msra.mxu0 0.0
  %2256 = vmatprep.subr.mxu0 0.0
  %2257 = vmatpush1.msra.mxu0 0.0
  %2258 = vmatprep.subr.mxu0 0.0
  %2259 = vmatpush1.msra.mxu0 0.0
  %2260 = vmatprep.subr.mxu0 0.0
  %2261 = vmatpush1.msra.mxu0 0.0
  %2262 = vmatprep.subr.mxu0 0.0
  %2263 = vmatpush1.msra.mxu0 0.0
  %2264 = vmatprep.subr.mxu0 0.0
  %2265 = vmatpush1.msra.mxu0 0.0
  %2266 = vmatprep.subr.mxu0 0.0
  %2267 = vmatpush1.msra.mxu0 0.0
  %2268 = vmatprep.subr.mxu0 0.0
  %2269 = vmatpush1.msra.mxu0 0.0
  %2270 = vmatprep.subr.mxu0 0.0
  %2271 = vmatpush1.msra.mxu0 0.0
  %2272 = vmatprep.subr.mxu0 0.0
  %2273 = vmatpush1.msra.mxu0 0.0
  %2274 = vmatprep.subr.mxu0 0.0
  %2275 = vmatpush1.msra.mxu0 0.0
  %2276 = vmatprep.subr.mxu0 0.0
  %2277 = vmatpush1.msra.mxu0 0.0
  %2278 = vmatprep.mubr.f32.mxu0 0.0
  %2279 = vmatmul.mubr.f32.gmra.mrb[0].mxu0 %v2212
  %v2280 = vpop.f32.mrb[0].mxu0
  %v2281 = vadd.f32 0.0, %v2280
  %v2282 = vpop.f32.mrb[0].mxu0
  %2283 = vdwg.mxu0
  %v2284 = vld [vmem:[%s1 + $0x180] sm:$0xff]
  %v2285 = vld [vmem:[%s1 + $0x188] sm:$0xff]
  %v2286 = vld [vmem:[%s1 + $0x190] sm:$0xff]
  %v2287 = vld [vmem:[%s1 + $0x198] sm:$0xff]
  %v2288 = vld [vmem:[%s1 + $0x1a0] sm:$0xff]
  %v2289 = vld [vmem:[%s1 + $0x1a8] sm:$0xff]
  %v2290 = vld [vmem:[%s1 + $0x1b0] sm:$0xff]
  %v2291 = vld [vmem:[%s1 + $0x1b8] sm:$0xff]
  %v2292 = vld [vmem:[%s1 + $0x1c0] sm:$0xff]
  %v2293 = vld [vmem:[%s1 + $0x1c8] sm:$0xff]
  %v2294 = vld [vmem:[%s1 + $0x1d0] sm:$0xff]
  %v2295 = vld [vmem:[%s1 + $0x1d8] sm:$0xff]
  %v2296 = vld [vmem:[%s1 + $0x1e0] sm:$0xff]
  %v2297 = vld [vmem:[%s1 + $0x1e8] sm:$0xff]
  %v2298 = vld [vmem:[%s1 + $0x1f0] sm:$0xff]
  %v2299 = vld [vmem:[%s1 + $0x1f8] sm:$0xff]
  %v2301 = vsel %vm27, %v1770, 0
  %v2304 = vsel %vm27, %v1843, 0
  %2306 = vmatprep.subr.mxu0 0.0
  %2307 = vmatpush1.msra.mxu0 %v2284
  %2308 = vmatprep.subr.mxu0 0.0
  %2309 = vmatpush1.msra.mxu0 %v2285
  %2310 = vmatprep.subr.mxu0 0.0
  %2311 = vmatpush1.msra.mxu0 %v2286
  %2312 = vmatprep.subr.mxu0 0.0
  %2313 = vmatpush1.msra.mxu0 %v2287
  %2314 = vmatprep.subr.mxu0 0.0
  %2315 = vmatpush1.msra.mxu0 0.0
  %2316 = vmatprep.subr.mxu0 0.0
  %2317 = vmatpush1.msra.mxu0 0.0
  %2318 = vmatprep.subr.mxu0 0.0
  %2319 = vmatpush1.msra.mxu0 0.0
  %2320 = vmatprep.subr.mxu0 0.0
  %2321 = vmatpush1.msra.mxu0 0.0
  %2322 = vmatprep.subr.mxu0 0.0
  %2323 = vmatpush1.msra.mxu0 0.0
  %2324 = vmatprep.subr.mxu0 0.0
  %2325 = vmatpush1.msra.mxu0 0.0
  %2326 = vmatprep.subr.mxu0 0.0
  %2327 = vmatpush1.msra.mxu0 0.0
  %2328 = vmatprep.subr.mxu0 0.0
  %2329 = vmatpush1.msra.mxu0 0.0
  %2330 = vmatprep.subr.mxu0 0.0
  %2331 = vmatpush1.msra.mxu0 0.0
  %2332 = vmatprep.subr.mxu0 0.0
  %2333 = vmatpush1.msra.mxu0 0.0
  %2334 = vmatprep.subr.mxu0 0.0
  %2335 = vmatpush1.msra.mxu0 0.0
  %2336 = vmatprep.subr.mxu0 0.0
  %2337 = vmatpush1.msra.mxu0 0.0
  %2338 = vmatprep.subr.mxu0 0.0
  %2339 = vmatpush1.msra.mxu0 0.0
  %2340 = vmatprep.subr.mxu0 0.0
  %2341 = vmatpush1.msra.mxu0 0.0
  %2342 = vmatprep.subr.mxu0 0.0
  %2343 = vmatpush1.msra.mxu0 0.0
  %2344 = vmatprep.subr.mxu0 0.0
  %2345 = vmatpush1.msra.mxu0 0.0
  %2346 = vmatprep.subr.mxu0 0.0
  %2347 = vmatpush1.msra.mxu0 0.0
  %2348 = vmatprep.subr.mxu0 0.0
  %2349 = vmatpush1.msra.mxu0 0.0
  %2350 = vmatprep.subr.mxu0 0.0
  %2351 = vmatpush1.msra.mxu0 0.0
  %2352 = vmatprep.subr.mxu0 0.0
  %2353 = vmatpush1.msra.mxu0 0.0
  %2354 = vmatprep.subr.mxu0 0.0
  %2355 = vmatpush1.msra.mxu0 0.0
  %2356 = vmatprep.subr.mxu0 0.0
  %2357 = vmatpush1.msra.mxu0 0.0
  %2358 = vmatprep.subr.mxu0 0.0
  %2359 = vmatpush1.msra.mxu0 0.0
  %2360 = vmatprep.subr.mxu0 0.0
  %2361 = vmatpush1.msra.mxu0 0.0
  %2362 = vmatprep.subr.mxu0 0.0
  %2363 = vmatpush1.msra.mxu0 0.0
  %2364 = vmatprep.subr.mxu0 0.0
  %2365 = vmatpush1.msra.mxu0 0.0
  %2366 = vmatprep.subr.mxu0 0.0
  %2367 = vmatpush1.msra.mxu0 0.0
  %2368 = vmatprep.subr.mxu0 0.0
  %2369 = vmatpush1.msra.mxu0 0.0
  %2370 = vmatprep.mubr.f32.mxu0 0.0
  %2371 = vmatmul.mubr.f32.gmra.mrb[0].mxu0 %v2301
  %v2372 = vpop.f32.mrb[0].mxu0
  %v2373 = vadd.f32 0.0, %v2372
  %v2374 = vpop.f32.mrb[0].mxu0
  %2375 = vmatprep.mubr.f32.mxu0 0.0
  %2376 = vmatmul.mubr.f32.gmra.mrb[0].mxu0 %v2304
  %v2377 = vpop.f32.mrb[0].mxu0
  %v2378 = vadd.f32 0.0, %v2377
  %v2379 = vpop.f32.mrb[0].mxu0
  %2380 = vdwg.mxu0
  %v2382 = vsel %vm27, %v1916, 0
  %v2385 = vsel %vm27, %v1989, 0
  %2387 = vmatprep.subr.mxu0 0.0
  %2388 = vmatpush1.msra.mxu0 %v2288
  %2389 = vmatprep.subr.mxu0 0.0
  %2390 = vmatpush1.msra.mxu0 %v2289
  %2391 = vmatprep.subr.mxu0 0.0
  %2392 = vmatpush1.msra.mxu0 %v2290
  %2393 = vmatprep.subr.mxu0 0.0
  %2394 = vmatpush1.msra.mxu0 %v2291
  %2395 = vmatprep.subr.mxu0 0.0
  %2396 = vmatpush1.msra.mxu0 0.0
  %2397 = vmatprep.subr.mxu0 0.0
  %2398 = vmatpush1.msra.mxu0 0.0
  %2399 = vmatprep.subr.mxu0 0.0
  %2400 = vmatpush1.msra.mxu0 0.0
  %2401 = vmatprep.subr.mxu0 0.0
  %2402 = vmatpush1.msra.mxu0 0.0
  %2403 = vmatprep.subr.mxu0 0.0
  %2404 = vmatpush1.msra.mxu0 0.0
  %2405 = vmatprep.subr.mxu0 0.0
  %2406 = vmatpush1.msra.mxu0 0.0
  %2407 = vmatprep.subr.mxu0 0.0
  %2408 = vmatpush1.msra.mxu0 0.0
  %2409 = vmatprep.subr.mxu0 0.0
  %2410 = vmatpush1.msra.mxu0 0.0
  %2411 = vmatprep.subr.mxu0 0.0
  %2412 = vmatpush1.msra.mxu0 0.0
  %2413 = vmatprep.subr.mxu0 0.0
  %2414 = vmatpush1.msra.mxu0 0.0
  %2415 = vmatprep.subr.mxu0 0.0
  %2416 = vmatpush1.msra.mxu0 0.0
  %2417 = vmatprep.subr.mxu0 0.0
  %2418 = vmatpush1.msra.mxu0 0.0
  %2419 = vmatprep.subr.mxu0 0.0
  %2420 = vmatpush1.msra.mxu0 0.0
  %2421 = vmatprep.subr.mxu0 0.0
  %2422 = vmatpush1.msra.mxu0 0.0
  %2423 = vmatprep.subr.mxu0 0.0
  %2424 = vmatpush1.msra.mxu0 0.0
  %2425 = vmatprep.subr.mxu0 0.0
  %2426 = vmatpush1.msra.mxu0 0.0
  %2427 = vmatprep.subr.mxu0 0.0
  %2428 = vmatpush1.msra.mxu0 0.0
  %2429 = vmatprep.subr.mxu0 0.0
  %2430 = vmatpush1.msra.mxu0 0.0
  %2431 = vmatprep.subr.mxu0 0.0
  %2432 = vmatpush1.msra.mxu0 0.0
  %2433 = vmatprep.subr.mxu0 0.0
  %2434 = vmatpush1.msra.mxu0 0.0
  %2435 = vmatprep.subr.mxu0 0.0
  %2436 = vmatpush1.msra.mxu0 0.0
  %2437 = vmatprep.subr.mxu0 0.0
  %2438 = vmatpush1.msra.mxu0 0.0
  %2439 = vmatprep.subr.mxu0 0.0
  %2440 = vmatpush1.msra.mxu0 0.0
  %2441 = vmatprep.subr.mxu0 0.0
  %2442 = vmatpush1.msra.mxu0 0.0
  %2443 = vmatprep.subr.mxu0 0.0
  %2444 = vmatpush1.msra.mxu0 0.0
  %2445 = vmatprep.subr.mxu0 0.0
  %2446 = vmatpush1.msra.mxu0 0.0
  %2447 = vmatprep.subr.mxu0 0.0
  %2448 = vmatpush1.msra.mxu0 0.0
  %2449 = vmatprep.subr.mxu0 0.0
  %2450 = vmatpush1.msra.mxu0 0.0
  %2451 = vmatprep.mubr.f32.mxu0 0.0
  %2452 = vmatmul.mubr.f32.gmra.mrb[0].mxu0 %v2382
  %v2453 = vpop.f32.mrb[0].mxu0
  %v2454 = vadd.f32 0.0, %v2453
  %v2455 = vpop.f32.mrb[0].mxu0
  %2456 = vmatprep.mubr.f32.mxu0 0.0
  %2457 = vmatmul.mubr.f32.gmra.mrb[0].mxu0 %v2385
  %v2458 = vpop.f32.mrb[0].mxu0
  %v2459 = vadd.f32 0.0, %v2458
  %v2460 = vpop.f32.mrb[0].mxu0
  %2461 = vdwg.mxu0
  %v2463 = vsel %vm27, %v2062, 0
  %v2466 = vsel %vm27, %v2135, 0
  %2468 = vmatprep.subr.mxu0 0.0
  %2469 = vmatpush1.msra.mxu0 %v2292
  %2470 = vmatprep.subr.mxu0 0.0
  %2471 = vmatpush1.msra.mxu0 %v2293
  %2472 = vmatprep.subr.mxu0 0.0
  %2473 = vmatpush1.msra.mxu0 %v2294
  %2474 = vmatprep.subr.mxu0 0.0
  %2475 = vmatpush1.msra.mxu0 %v2295
  %2476 = vmatprep.subr.mxu0 0.0
  %2477 = vmatpush1.msra.mxu0 0.0
  %2478 = vmatprep.subr.mxu0 0.0
  %2479 = vmatpush1.msra.mxu0 0.0
  %2480 = vmatprep.subr.mxu0 0.0
  %2481 = vmatpush1.msra.mxu0 0.0
  %2482 = vmatprep.subr.mxu0 0.0
  %2483 = vmatpush1.msra.mxu0 0.0
  %2484 = vmatprep.subr.mxu0 0.0
  %2485 = vmatpush1.msra.mxu0 0.0
  %2486 = vmatprep.subr.mxu0 0.0
  %2487 = vmatpush1.msra.mxu0 0.0
  %2488 = vmatprep.subr.mxu0 0.0
  %2489 = vmatpush1.msra.mxu0 0.0
  %2490 = vmatprep.subr.mxu0 0.0
  %2491 = vmatpush1.msra.mxu0 0.0
  %2492 = vmatprep.subr.mxu0 0.0
  %2493 = vmatpush1.msra.mxu0 0.0
  %2494 = vmatprep.subr.mxu0 0.0
  %2495 = vmatpush1.msra.mxu0 0.0
  %2496 = vmatprep.subr.mxu0 0.0
  %2497 = vmatpush1.msra.mxu0 0.0
  %2498 = vmatprep.subr.mxu0 0.0
  %2499 = vmatpush1.msra.mxu0 0.0
  %2500 = vmatprep.subr.mxu0 0.0
  %2501 = vmatpush1.msra.mxu0 0.0
  %2502 = vmatprep.subr.mxu0 0.0
  %2503 = vmatpush1.msra.mxu0 0.0
  %2504 = vmatprep.subr.mxu0 0.0
  %2505 = vmatpush1.msra.mxu0 0.0
  %2506 = vmatprep.subr.mxu0 0.0
  %2507 = vmatpush1.msra.mxu0 0.0
  %2508 = vmatprep.subr.mxu0 0.0
  %2509 = vmatpush1.msra.mxu0 0.0
  %2510 = vmatprep.subr.mxu0 0.0
  %2511 = vmatpush1.msra.mxu0 0.0
  %2512 = vmatprep.subr.mxu0 0.0
  %2513 = vmatpush1.msra.mxu0 0.0
  %2514 = vmatprep.subr.mxu0 0.0
  %2515 = vmatpush1.msra.mxu0 0.0
  %2516 = vmatprep.subr.mxu0 0.0
  %2517 = vmatpush1.msra.mxu0 0.0
  %2518 = vmatprep.subr.mxu0 0.0
  %2519 = vmatpush1.msra.mxu0 0.0
  %2520 = vmatprep.subr.mxu0 0.0
  %2521 = vmatpush1.msra.mxu0 0.0
  %2522 = vmatprep.subr.mxu0 0.0
  %2523 = vmatpush1.msra.mxu0 0.0
  %2524 = vmatprep.subr.mxu0 0.0
  %2525 = vmatpush1.msra.mxu0 0.0
  %2526 = vmatprep.subr.mxu0 0.0
  %2527 = vmatpush1.msra.mxu0 0.0
  %2528 = vmatprep.subr.mxu0 0.0
  %2529 = vmatpush1.msra.mxu0 0.0
  %2530 = vmatprep.subr.mxu0 0.0
  %2531 = vmatpush1.msra.mxu0 0.0
  %2532 = vmatprep.mubr.f32.mxu0 0.0
  %2533 = vmatmul.mubr.f32.gmra.mrb[0].mxu0 %v2463
  %v2534 = vpop.f32.mrb[0].mxu0
  %v2535 = vadd.f32 0.0, %v2534
  %v2536 = vpop.f32.mrb[0].mxu0
  %2537 = vmatprep.mubr.f32.mxu0 0.0
  %2538 = vmatmul.mubr.f32.gmra.mrb[0].mxu0 %v2466
  %v2539 = vpop.f32.mrb[0].mxu0
  %v2540 = vadd.f32 0.0, %v2539
  %v2541 = vpop.f32.mrb[0].mxu0
  %2542 = vdwg.mxu0
  %v2544 = vsel %vm27, %v2208, 0
  %v2547 = vsel %vm27, %v2281, 0
  %2549 = vmatprep.subr.mxu0 0.0
  %2550 = vmatpush1.msra.mxu0 %v2296
  %2551 = vmatprep.subr.mxu0 0.0
  %2552 = vmatpush1.msra.mxu0 %v2297
  %2553 = vmatprep.subr.mxu0 0.0
  %2554 = vmatpush1.msra.mxu0 %v2298
  %2555 = vmatprep.subr.mxu0 0.0
  %2556 = vmatpush1.msra.mxu0 %v2299
  %2557 = vmatprep.subr.mxu0 0.0
  %2558 = vmatpush1.msra.mxu0 0.0
  %2559 = vmatprep.subr.mxu0 0.0
  %2560 = vmatpush1.msra.mxu0 0.0
  %2561 = vmatprep.subr.mxu0 0.0
  %2562 = vmatpush1.msra.mxu0 0.0
  %2563 = vmatprep.subr.mxu0 0.0
  %2564 = vmatpush1.msra.mxu0 0.0
  %2565 = vmatprep.subr.mxu0 0.0
  %2566 = vmatpush1.msra.mxu0 0.0
  %2567 = vmatprep.subr.mxu0 0.0
  %2568 = vmatpush1.msra.mxu0 0.0
  %2569 = vmatprep.subr.mxu0 0.0
  %2570 = vmatpush1.msra.mxu0 0.0
  %2571 = vmatprep.subr.mxu0 0.0
  %2572 = vmatpush1.msra.mxu0 0.0
  %2573 = vmatprep.subr.mxu0 0.0
  %2574 = vmatpush1.msra.mxu0 0.0
  %2575 = vmatprep.subr.mxu0 0.0
  %2576 = vmatpush1.msra.mxu0 0.0
  %2577 = vmatprep.subr.mxu0 0.0
  %2578 = vmatpush1.msra.mxu0 0.0
  %2579 = vmatprep.subr.mxu0 0.0
  %2580 = vmatpush1.msra.mxu0 0.0
  %2581 = vmatprep.subr.mxu0 0.0
  %2582 = vmatpush1.msra.mxu0 0.0
  %2583 = vmatprep.subr.mxu0 0.0
  %2584 = vmatpush1.msra.mxu0 0.0
  %2585 = vmatprep.subr.mxu0 0.0
  %2586 = vmatpush1.msra.mxu0 0.0
  %2587 = vmatprep.subr.mxu0 0.0
  %2588 = vmatpush1.msra.mxu0 0.0
  %2589 = vmatprep.subr.mxu0 0.0
  %2590 = vmatpush1.msra.mxu0 0.0
  %2591 = vmatprep.subr.mxu0 0.0
  %2592 = vmatpush1.msra.mxu0 0.0
  %2593 = vmatprep.subr.mxu0 0.0
  %2594 = vmatpush1.msra.mxu0 0.0
  %2595 = vmatprep.subr.mxu0 0.0
  %2596 = vmatpush1.msra.mxu0 0.0
  %2597 = vmatprep.subr.mxu0 0.0
  %2598 = vmatpush1.msra.mxu0 0.0
  %2599 = vmatprep.subr.mxu0 0.0
  %2600 = vmatpush1.msra.mxu0 0.0
  %2601 = vmatprep.subr.mxu0 0.0
  %2602 = vmatpush1.msra.mxu0 0.0
  %2603 = vmatprep.subr.mxu0 0.0
  %2604 = vmatpush1.msra.mxu0 0.0
  %2605 = vmatprep.subr.mxu0 0.0
  %2606 = vmatpush1.msra.mxu0 0.0
  %2607 = vmatprep.subr.mxu0 0.0
  %2608 = vmatpush1.msra.mxu0 0.0
  %2609 = vmatprep.subr.mxu0 0.0
  %2610 = vmatpush1.msra.mxu0 0.0
  %2611 = vmatprep.subr.mxu0 0.0
  %2612 = vmatpush1.msra.mxu0 0.0
  %2613 = vmatprep.mubr.f32.mxu0 0.0
  %2614 = vmatmul.mubr.f32.gmra.mrb[0].mxu0 %v2544
  %v2615 = vpop.f32.mrb[0].mxu0
  %v2616 = vadd.f32 0.0, %v2615
  %v2617 = vpop.f32.mrb[0].mxu0
  %2618 = vmatprep.mubr.f32.mxu0 0.0
  %2619 = vmatmul.mubr.f32.gmra.mrb[0].mxu0 %v2547
  %v2620 = vpop.f32.mrb[0].mxu0
  %v2621 = vadd.f32 0.0, %v2620
  %v2622 = vpop.f32.mrb[0].mxu0
  %2623 = vdwg.mxu0
  %v2624 = vsel %vm27, %v2373, 0.0
  %v2625 = vsel %vm27, %v2454, 0.0
  %v2626 = vadd.f32 %v2624, %v2625
  %v2627 = vsel %vm27, %v2535, 0.0
  %v2628 = vadd.f32 %v2626, %v2627
  %v2629 = vsel %vm27, %v2616, 0.0
  %v2630 = vadd.f32 %v2628, %v2629
  %v2631 = vsel %vm27, %v2378, 0.0
  %v2632 = vsel %vm27, %v2459, 0.0
  %v2633 = vadd.f32 %v2631, %v2632
  %v2634 = vsel %vm27, %v2540, 0.0
  %v2635 = vadd.f32 %v2633, %v2634
  %v2636 = vsel %vm27, %v2621, 0.0
  %v2637 = vadd.f32 %v2635, %v2636
  %v2638 = vadd.f32 %v14, %v2630
  %v2639 = vadd.f32 %v15, %v2637
  %v2640 = vld [vmem:[%s1 + $0x248] sm:$0x1]
  %v2641 = vmul.f32 %v2638, %v2638
  %v2642 = vmul.f32 %v2639, %v2639
  %v2643 = vsel %vm27, %v2641, 0.0
  %2644 = vadd.xlane.f32.xlu0 %v2643
  %v2645 = vpop.xlane.xlu0 %2644
  %v2646 = vsel %vm27, %v2642, 0.0
  %2647 = vadd.xlane.f32.xlu0 %v2646
  %v2648 = vpop.xlane.xlu0 %2647
  %v2649 = vmul.f32 %v2645, %v34
  %v2650 = vmul.f32 %v2648, %v34
  %v2651 = vadd.f32 %v2649, 1e-06
  %v2652 = vadd.f32 %v2650, 1e-06
  %v2653 = vrsqrt.pop %v2651
  %v2654 = vrsqrt.pop %v2652
  %v2655 = vmul.f32 %v2638, %v2653
  %v2656 = vmul.f32 %v2639, %v2654
  %v2657 = vlaneseq
  %v2658 = vshrl.u32 %v2657, 7
  %v2659 = vsub.s32 0, %v2658
  %v2660 = vrot.slane %v2640, %v2659
  %v2661 = vmul.f32 %v2655, %v2660
  %v2662 = vmul.f32 %v2656, %v2660
  %v2663 = vld [vmem:[%s2] sm:$0xff]
  %v2664 = vld [vmem:[%s2 + $0x8] sm:$0xff]
  %v2665 = vld [vmem:[%s2 + $0x10] sm:$0xff]
  %v2666 = vld [vmem:[%s2 + $0x18] sm:$0xff]
  %v2668 = vsel %vm27, %v2661, 0
  %v2671 = vsel %vm27, %v2662, 0
  %2673 = vmatprep.subr.mxu0 0.0
  %2674 = vmatpush1.msra.mxu0 %v2663
  %2675 = vmatprep.subr.mxu0 0.0
  %2676 = vmatpush1.msra.mxu0 %v2664
  %2677 = vmatprep.subr.mxu0 0.0
  %2678 = vmatpush1.msra.mxu0 %v2665
  %2679 = vmatprep.subr.mxu0 0.0
  %2680 = vmatpush1.msra.mxu0 %v2666
  %2681 = vmatprep.subr.mxu0 0.0
  %2682 = vmatpush1.msra.mxu0 0.0
  %2683 = vmatprep.subr.mxu0 0.0
  %2684 = vmatpush1.msra.mxu0 0.0
  %2685 = vmatprep.subr.mxu0 0.0
  %2686 = vmatpush1.msra.mxu0 0.0
  %2687 = vmatprep.subr.mxu0 0.0
  %2688 = vmatpush1.msra.mxu0 0.0
  %2689 = vmatprep.subr.mxu0 0.0
  %2690 = vmatpush1.msra.mxu0 0.0
  %2691 = vmatprep.subr.mxu0 0.0
  %2692 = vmatpush1.msra.mxu0 0.0
  %2693 = vmatprep.subr.mxu0 0.0
  %2694 = vmatpush1.msra.mxu0 0.0
  %2695 = vmatprep.subr.mxu0 0.0
  %2696 = vmatpush1.msra.mxu0 0.0
  %2697 = vmatprep.subr.mxu0 0.0
  %2698 = vmatpush1.msra.mxu0 0.0
  %2699 = vmatprep.subr.mxu0 0.0
  %2700 = vmatpush1.msra.mxu0 0.0
  %2701 = vmatprep.subr.mxu0 0.0
  %2702 = vmatpush1.msra.mxu0 0.0
  %2703 = vmatprep.subr.mxu0 0.0
  %2704 = vmatpush1.msra.mxu0 0.0
  %2705 = vmatprep.subr.mxu0 0.0
  %2706 = vmatpush1.msra.mxu0 0.0
  %2707 = vmatprep.subr.mxu0 0.0
  %2708 = vmatpush1.msra.mxu0 0.0
  %2709 = vmatprep.subr.mxu0 0.0
  %2710 = vmatpush1.msra.mxu0 0.0
  %2711 = vmatprep.subr.mxu0 0.0
  %2712 = vmatpush1.msra.mxu0 0.0
  %2713 = vmatprep.subr.mxu0 0.0
  %2714 = vmatpush1.msra.mxu0 0.0
  %2715 = vmatprep.subr.mxu0 0.0
  %2716 = vmatpush1.msra.mxu0 0.0
  %2717 = vmatprep.subr.mxu0 0.0
  %2718 = vmatpush1.msra.mxu0 0.0
  %2719 = vmatprep.subr.mxu0 0.0
  %2720 = vmatpush1.msra.mxu0 0.0
  %2721 = vmatprep.subr.mxu0 0.0
  %2722 = vmatpush1.msra.mxu0 0.0
  %2723 = vmatprep.subr.mxu0 0.0
  %2724 = vmatpush1.msra.mxu0 0.0
  %2725 = vmatprep.subr.mxu0 0.0
  %2726 = vmatpush1.msra.mxu0 0.0
  %2727 = vmatprep.subr.mxu0 0.0
  %2728 = vmatpush1.msra.mxu0 0.0
  %2729 = vmatprep.subr.mxu0 0.0
  %2730 = vmatpush1.msra.mxu0 0.0
  %2731 = vmatprep.subr.mxu0 0.0
  %2732 = vmatpush1.msra.mxu0 0.0
  %2733 = vmatprep.subr.mxu0 0.0
  %2734 = vmatpush1.msra.mxu0 0.0
  %2735 = vmatprep.subr.mxu0 0.0
  %2736 = vmatpush1.msra.mxu0 0.0
  %2737 = vmatprep.mubr.f32.mxu0 0.0
  %2738 = vmatmul.mubr.f32.gmra.mrb[0].mxu0 %v2668
  %v2739 = vpop.f32.mrb[0].mxu0
  %v2740 = vadd.f32 0.0, %v2739
  %v2741 = vpop.f32.mrb[0].mxu0
  %2742 = vmatprep.mubr.f32.mxu0 0.0
  %2743 = vmatmul.mubr.f32.gmra.mrb[0].mxu0 %v2671
  %v2744 = vpop.f32.mrb[0].mxu0
  %v2745 = vadd.f32 0.0, %v2744
  %v2746 = vpop.f32.mrb[0].mxu0
  %2747 = vdwg.mxu0
  %v2748 = vmul.f32 %v2740, 0.5
  %v2749 = vmul.f32 %v2745, 0.5
  %v2750 = vmul.f32 %v2740, 0.044715
  %v2751 = vmul.f32 %v2745, 0.044715
  %v2752 = vmul.f32 %v2750, %v2740
  %v2753 = vmul.f32 %v2751, %v2745
  %v2754 = vmul.f32 %v2752, %v2740
  %v2755 = vmul.f32 %v2753, %v2745
  %v2756 = vadd.f32 %v2740, %v2754
  %v2757 = vadd.f32 %v2745, %v2755
  %v2758 = vmul.f32 %v2756, 0.7978846
  %v2759 = vmul.f32 %v2757, 0.7978846
  %v2760 = vtanh.pop %v2758
  %v2761 = vtanh.pop %v2759
  %v2762 = vadd.f32 %v2760, 1.0
  %v2763 = vadd.f32 %v2761, 1.0
  %v2764 = vmul.f32 %v2748, %v2762
  %v2765 = vmul.f32 %v2749, %v2763
  %2768 = vrot.lane.b32.xlu0 %v2740, 64
  %v2769 = vpop.permute.xlu0 %2768
  %2770 = vrot.lane.b32.xlu0 %v2745, 64
  %v2771 = vpop.permute.xlu0 %2770
  %v2774 = vmul.f32 %v2764, %v2769
  %v2775 = vmul.f32 %v2765, %v2771
  %v2776 = vld [vmem:[%s1 + $0x200] sm:$0xff]
  %v2777 = vld [vmem:[%s1 + $0x208] sm:$0xff]
  %v2778 = vld [vmem:[%s1 + $0x210] sm:$0xff]
  %v2779 = vld [vmem:[%s1 + $0x218] sm:$0xff]
  %v2780 = vld [vmem:[%s1 + $0x220] sm:$0xff]
  %v2781 = vld [vmem:[%s1 + $0x228] sm:$0xff]
  %v2782 = vld [vmem:[%s1 + $0x230] sm:$0xff]
  %v2783 = vld [vmem:[%s1 + $0x238] sm:$0xff]
  %vm2784 = vcmask 523264
  %v2786 = vsel %vm2784, %v2774, 0
  %v2789 = vsel %vm2784, %v2775, 0
  %2791 = vmatprep.subr.mxu0 0.0
  %2792 = vmatpush1.msra.mxu0 %v2776
  %2793 = vmatprep.subr.mxu0 0.0
  %2794 = vmatpush1.msra.mxu0 %v2777
  %2795 = vmatprep.subr.mxu0 0.0
  %2796 = vmatpush1.msra.mxu0 %v2778
  %2797 = vmatprep.subr.mxu0 0.0
  %2798 = vmatpush1.msra.mxu0 %v2779
  %2799 = vmatprep.subr.mxu0 0.0
  %2800 = vmatpush1.msra.mxu0 %v2780
  %2801 = vmatprep.subr.mxu0 0.0
  %2802 = vmatpush1.msra.mxu0 %v2781
  %2803 = vmatprep.subr.mxu0 0.0
  %2804 = vmatpush1.msra.mxu0 %v2782
  %2805 = vmatprep.subr.mxu0 0.0
  %2806 = vmatpush1.msra.mxu0 %v2783
  %2807 = vmatprep.subr.mxu0 0.0
  %2808 = vmatpush1.msra.mxu0 0.0
  %2809 = vmatprep.subr.mxu0 0.0
  %2810 = vmatpush1.msra.mxu0 0.0
  %2811 = vmatprep.subr.mxu0 0.0
  %2812 = vmatpush1.msra.mxu0 0.0
  %2813 = vmatprep.subr.mxu0 0.0
  %2814 = vmatpush1.msra.mxu0 0.0
  %2815 = vmatprep.subr.mxu0 0.0
  %2816 = vmatpush1.msra.mxu0 0.0
  %2817 = vmatprep.subr.mxu0 0.0
  %2818 = vmatpush1.msra.mxu0 0.0
  %2819 = vmatprep.subr.mxu0 0.0
  %2820 = vmatpush1.msra.mxu0 0.0
  %2821 = vmatprep.subr.mxu0 0.0
  %2822 = vmatpush1.msra.mxu0 0.0
  %2823 = vmatprep.subr.mxu0 0.0
  %2824 = vmatpush1.msra.mxu0 0.0
  %2825 = vmatprep.subr.mxu0 0.0
  %2826 = vmatpush1.msra.mxu0 0.0
  %2827 = vmatprep.subr.mxu0 0.0
  %2828 = vmatpush1.msra.mxu0 0.0
  %2829 = vmatprep.subr.mxu0 0.0
  %2830 = vmatpush1.msra.mxu0 0.0
  %2831 = vmatprep.subr.mxu0 0.0
  %2832 = vmatpush1.msra.mxu0 0.0
  %2833 = vmatprep.subr.mxu0 0.0
  %2834 = vmatpush1.msra.mxu0 0.0
  %2835 = vmatprep.subr.mxu0 0.0
  %2836 = vmatpush1.msra.mxu0 0.0
  %2837 = vmatprep.subr.mxu0 0.0
  %2838 = vmatpush1.msra.mxu0 0.0
  %2839 = vmatprep.subr.mxu0 0.0
  %2840 = vmatpush1.msra.mxu0 0.0
  %2841 = vmatprep.subr.mxu0 0.0
  %2842 = vmatpush1.msra.mxu0 0.0
  %2843 = vmatprep.subr.mxu0 0.0
  %2844 = vmatpush1.msra.mxu0 0.0
  %2845 = vmatprep.subr.mxu0 0.0
  %2846 = vmatpush1.msra.mxu0 0.0
  %2847 = vmatprep.subr.mxu0 0.0
  %2848 = vmatpush1.msra.mxu0 0.0
  %2849 = vmatprep.subr.mxu0 0.0
  %2850 = vmatpush1.msra.mxu0 0.0
  %2851 = vmatprep.subr.mxu0 0.0
  %2852 = vmatpush1.msra.mxu0 0.0
  %2853 = vmatprep.subr.mxu0 0.0
  %2854 = vmatpush1.msra.mxu0 0.0
  %2855 = vmatprep.mubr.f32.mxu0 0.0
  %2856 = vmatmul.mubr.f32.gmra.mrb[0].mxu0 %v2786
  %v2857 = vpop.f32.mrb[0].mxu0
  %v2858 = vadd.f32 0.0, %v2857
  %v2859 = vpop.f32.mrb[0].mxu0
  %2860 = vmatprep.mubr.f32.mxu0 0.0
  %2861 = vmatmul.mubr.f32.gmra.mrb[0].mxu0 %v2789
  %v2862 = vpop.f32.mrb[0].mxu0
  %v2863 = vadd.f32 0.0, %v2862
  %v2864 = vpop.f32.mrb[0].mxu0
  %2865 = vdwg.mxu0
  %v2866 = vadd.f32 %v2638, %v2858
  %v2867 = vadd.f32 %v2639, %v2863
  %v2868 = vld [vmem:[%s1 + $0x490] sm:$0x1]
  %v2869 = vmul.f32 %v2866, %v2866
  %v2870 = vmul.f32 %v2867, %v2867
  %v2871 = vsel %vm27, %v2869, 0.0
  %2872 = vadd.xlane.f32.xlu0 %v2871
  %v2873 = vpop.xlane.xlu0 %2872
  %v2874 = vsel %vm27, %v2870, 0.0
  %2875 = vadd.xlane.f32.xlu0 %v2874
  %v2876 = vpop.xlane.xlu0 %2875
  %v2877 = vmul.f32 %v2873, %v34
  %v2878 = vmul.f32 %v2876, %v34
  %v2879 = vadd.f32 %v2877, 1e-06
  %v2880 = vadd.f32 %v2878, 1e-06
  %v2881 = vrsqrt.pop %v2879
  %v2882 = vrsqrt.pop %v2880
  %v2883 = vmul.f32 %v2866, %v2881
  %v2884 = vmul.f32 %v2867, %v2882
  %v2885 = vlaneseq
  %v2886 = vshrl.u32 %v2885, 7
  %v2887 = vsub.s32 0, %v2886
  %v2888 = vrot.slane %v2868, %v2887
  %v2889 = vmul.f32 %v2883, %v2888
  %v2890 = vmul.f32 %v2884, %v2888
  %v2891 = vld [vmem:[%s1 + $0x250] sm:$0xff]
  %v2892 = vld [vmem:[%s1 + $0x258] sm:$0xff]
  %v2893 = vld [vmem:[%s1 + $0x260] sm:$0xff]
  %v2894 = vld [vmem:[%s1 + $0x268] sm:$0xff]
  %v2895 = vld [vmem:[%s1 + $0x270] sm:$0xff]
  %v2896 = vld [vmem:[%s1 + $0x278] sm:$0xff]
  %v2897 = vld [vmem:[%s1 + $0x280] sm:$0xff]
  %v2898 = vld [vmem:[%s1 + $0x288] sm:$0xff]
  %v2899 = vld [vmem:[%s1 + $0x290] sm:$0xff]
  %v2900 = vld [vmem:[%s1 + $0x298] sm:$0xff]
  %v2901 = vld [vmem:[%s1 + $0x2a0] sm:$0xff]
  %v2902 = vld [vmem:[%s1 + $0x2a8] sm:$0xff]
  %v2903 = vld [vmem:[%s1 + $0x2b0] sm:$0xff]
  %v2904 = vld [vmem:[%s1 + $0x2b8] sm:$0xff]
  %v2905 = vld [vmem:[%s1 + $0x2c0] sm:$0xff]
  %v2906 = vld [vmem:[%s1 + $0x2c8] sm:$0xff]
  %v2907 = vld [vmem:[%s1 + $0x2d0] sm:$0xff]
  %v2908 = vld [vmem:[%s1 + $0x2d8] sm:$0xff]
  %v2909 = vld [vmem:[%s1 + $0x2e0] sm:$0xff]
  %v2910 = vld [vmem:[%s1 + $0x2e8] sm:$0xff]
  %v2911 = vld [vmem:[%s1 + $0x2f0] sm:$0xff]
  %v2912 = vld [vmem:[%s1 + $0x2f8] sm:$0xff]
  %v2913 = vld [vmem:[%s1 + $0x300] sm:$0xff]
  %v2914 = vld [vmem:[%s1 + $0x308] sm:$0xff]
  %v2915 = vld [vmem:[%s1 + $0x310] sm:$0xff]
  %v2916 = vld [vmem:[%s1 + $0x318] sm:$0xff]
  %v2917 = vld [vmem:[%s1 + $0x320] sm:$0xff]
  %v2918 = vld [vmem:[%s1 + $0x328] sm:$0xff]
  %v2919 = vld [vmem:[%s1 + $0x330] sm:$0xff]
  %v2920 = vld [vmem:[%s1 + $0x338] sm:$0xff]
  %v2921 = vld [vmem:[%s1 + $0x340] sm:$0xff]
  %v2922 = vld [vmem:[%s1 + $0x348] sm:$0xff]
  %v2923 = vld [vmem:[%s1 + $0x350] sm:$0xff]
  %v2924 = vld [vmem:[%s1 + $0x358] sm:$0xff]
  %v2925 = vld [vmem:[%s1 + $0x360] sm:$0xff]
  %v2926 = vld [vmem:[%s1 + $0x368] sm:$0xff]
  %v2927 = vld [vmem:[%s1 + $0x370] sm:$0xff]
  %v2928 = vld [vmem:[%s1 + $0x378] sm:$0xff]
  %v2929 = vld [vmem:[%s1 + $0x380] sm:$0xff]
  %v2930 = vld [vmem:[%s1 + $0x388] sm:$0xff]
  %v2931 = vld [vmem:[%s1 + $0x390] sm:$0xff]
  %v2932 = vld [vmem:[%s1 + $0x398] sm:$0xff]
  %v2933 = vld [vmem:[%s1 + $0x3a0] sm:$0xff]
  %v2934 = vld [vmem:[%s1 + $0x3a8] sm:$0xff]
  %v2935 = vld [vmem:[%s1 + $0x3b0] sm:$0xff]
  %v2936 = vld [vmem:[%s1 + $0x3b8] sm:$0xff]
  %v2937 = vld [vmem:[%s1 + $0x3c0] sm:$0xff]
  %v2938 = vld [vmem:[%s1 + $0x3c8] sm:$0xff]
  %v2940 = vsel %vm27, %v2889, 0
  %v2943 = vsel %vm27, %v2890, 0
  %2945 = vmatprep.subr.mxu0 0.0
  %2946 = vmatpush1.msra.mxu0 %v2891
  %2947 = vmatprep.subr.mxu0 0.0
  %2948 = vmatpush1.msra.mxu0 %v2892
  %2949 = vmatprep.subr.mxu0 0.0
  %2950 = vmatpush1.msra.mxu0 %v2893
  %2951 = vmatprep.subr.mxu0 0.0
  %2952 = vmatpush1.msra.mxu0 %v2894
  %2953 = vmatprep.subr.mxu0 0.0
  %2954 = vmatpush1.msra.mxu0 0.0
  %2955 = vmatprep.subr.mxu0 0.0
  %2956 = vmatpush1.msra.mxu0 0.0
  %2957 = vmatprep.subr.mxu0 0.0
  %2958 = vmatpush1.msra.mxu0 0.0
  %2959 = vmatprep.subr.mxu0 0.0
  %2960 = vmatpush1.msra.mxu0 0.0
  %2961 = vmatprep.subr.mxu0 0.0
  %2962 = vmatpush1.msra.mxu0 0.0
  %2963 = vmatprep.subr.mxu0 0.0
  %2964 = vmatpush1.msra.mxu0 0.0
  %2965 = vmatprep.subr.mxu0 0.0
  %2966 = vmatpush1.msra.mxu0 0.0
  %2967 = vmatprep.subr.mxu0 0.0
  %2968 = vmatpush1.msra.mxu0 0.0
  %2969 = vmatprep.subr.mxu0 0.0
  %2970 = vmatpush1.msra.mxu0 0.0
  %2971 = vmatprep.subr.mxu0 0.0
  %2972 = vmatpush1.msra.mxu0 0.0
  %2973 = vmatprep.subr.mxu0 0.0
  %2974 = vmatpush1.msra.mxu0 0.0
  %2975 = vmatprep.subr.mxu0 0.0
  %2976 = vmatpush1.msra.mxu0 0.0
  %2977 = vmatprep.subr.mxu0 0.0
  %2978 = vmatpush1.msra.mxu0 0.0
  %2979 = vmatprep.subr.mxu0 0.0
  %2980 = vmatpush1.msra.mxu0 0.0
  %2981 = vmatprep.subr.mxu0 0.0
  %2982 = vmatpush1.msra.mxu0 0.0
  %2983 = vmatprep.subr.mxu0 0.0
  %2984 = vmatpush1.msra.mxu0 0.0
  %2985 = vmatprep.subr.mxu0 0.0
  %2986 = vmatpush1.msra.mxu0 0.0
  %2987 = vmatprep.subr.mxu0 0.0
  %2988 = vmatpush1.msra.mxu0 0.0
  %2989 = vmatprep.subr.mxu0 0.0
  %2990 = vmatpush1.msra.mxu0 0.0
  %2991 = vmatprep.subr.mxu0 0.0
  %2992 = vmatpush1.msra.mxu0 0.0
  %2993 = vmatprep.subr.mxu0 0.0
  %2994 = vmatpush1.msra.mxu0 0.0
  %2995 = vmatprep.subr.mxu0 0.0
  %2996 = vmatpush1.msra.mxu0 0.0
  %2997 = vmatprep.subr.mxu0 0.0
  %2998 = vmatpush1.msra.mxu0 0.0
  %2999 = vmatprep.subr.mxu0 0.0
  %3000 = vmatpush1.msra.mxu0 0.0
  %3001 = vmatprep.subr.mxu0 0.0
  %3002 = vmatpush1.msra.mxu0 0.0
  %3003 = vmatprep.subr.mxu0 0.0
  %3004 = vmatpush1.msra.mxu0 0.0
  %3005 = vmatprep.subr.mxu0 0.0
  %3006 = vmatpush1.msra.mxu0 0.0
  %3007 = vmatprep.subr.mxu0 0.0
  %3008 = vmatpush1.msra.mxu0 0.0
  %3009 = vmatprep.mubr.f32.mxu0 0.0
  %3010 = vmatmul.mubr.f32.gmra.mrb[0].mxu0 %v2940
  %v3011 = vpop.f32.mrb[0].mxu0
  %v3012 = vadd.f32 0.0, %v3011
  %v3013 = vpop.f32.mrb[0].mxu0
  %3014 = vmatprep.mubr.f32.mxu0 0.0
  %3015 = vmatmul.mubr.f32.gmra.mrb[0].mxu0 %v2943
  %v3016 = vpop.f32.mrb[0].mxu0
  %v3017 = vadd.f32 0.0, %v3016
  %v3018 = vpop.f32.mrb[0].mxu0
  %3019 = vdwg.mxu0
  %3020 = vmatprep.subr.mxu0 0.0
  %3021 = vmatpush1.msra.mxu0 %v2895
  %3022 = vmatprep.subr.mxu0 0.0
  %3023 = vmatpush1.msra.mxu0 %v2896
  %3024 = vmatprep.subr.mxu0 0.0
  %3025 = vmatpush1.msra.mxu0 %v2897
  %3026 = vmatprep.subr.mxu0 0.0
  %3027 = vmatpush1.msra.mxu0 %v2898
  %3028 = vmatprep.subr.mxu0 0.0
  %3029 = vmatpush1.msra.mxu0 0.0
  %3030 = vmatprep.subr.mxu0 0.0
  %3031 = vmatpush1.msra.mxu0 0.0
  %3032 = vmatprep.subr.mxu0 0.0
  %3033 = vmatpush1.msra.mxu0 0.0
  %3034 = vmatprep.subr.mxu0 0.0
  %3035 = vmatpush1.msra.mxu0 0.0
  %3036 = vmatprep.subr.mxu0 0.0
  %3037 = vmatpush1.msra.mxu0 0.0
  %3038 = vmatprep.subr.mxu0 0.0
  %3039 = vmatpush1.msra.mxu0 0.0
  %3040 = vmatprep.subr.mxu0 0.0
  %3041 = vmatpush1.msra.mxu0 0.0
  %3042 = vmatprep.subr.mxu0 0.0
  %3043 = vmatpush1.msra.mxu0 0.0
  %3044 = vmatprep.subr.mxu0 0.0
  %3045 = vmatpush1.msra.mxu0 0.0
  %3046 = vmatprep.subr.mxu0 0.0
  %3047 = vmatpush1.msra.mxu0 0.0
  %3048 = vmatprep.subr.mxu0 0.0
  %3049 = vmatpush1.msra.mxu0 0.0
  %3050 = vmatprep.subr.mxu0 0.0
  %3051 = vmatpush1.msra.mxu0 0.0
  %3052 = vmatprep.subr.mxu0 0.0
  %3053 = vmatpush1.msra.mxu0 0.0
  %3054 = vmatprep.subr.mxu0 0.0
  %3055 = vmatpush1.msra.mxu0 0.0
  %3056 = vmatprep.subr.mxu0 0.0
  %3057 = vmatpush1.msra.mxu0 0.0
  %3058 = vmatprep.subr.mxu0 0.0
  %3059 = vmatpush1.msra.mxu0 0.0
  %3060 = vmatprep.subr.mxu0 0.0
  %3061 = vmatpush1.msra.mxu0 0.0
  %3062 = vmatprep.subr.mxu0 0.0
  %3063 = vmatpush1.msra.mxu0 0.0
  %3064 = vmatprep.subr.mxu0 0.0
  %3065 = vmatpush1.msra.mxu0 0.0
  %3066 = vmatprep.subr.mxu0 0.0
  %3067 = vmatpush1.msra.mxu0 0.0
  %3068 = vmatprep.subr.mxu0 0.0
  %3069 = vmatpush1.msra.mxu0 0.0
  %3070 = vmatprep.subr.mxu0 0.0
  %3071 = vmatpush1.msra.mxu0 0.0
  %3072 = vmatprep.subr.mxu0 0.0
  %3073 = vmatpush1.msra.mxu0 0.0
  %3074 = vmatprep.subr.mxu0 0.0
  %3075 = vmatpush1.msra.mxu0 0.0
  %3076 = vmatprep.subr.mxu0 0.0
  %3077 = vmatpush1.msra.mxu0 0.0
  %3078 = vmatprep.subr.mxu0 0.0
  %3079 = vmatpush1.msra.mxu0 0.0
  %3080 = vmatprep.subr.mxu0 0.0
  %3081 = vmatpush1.msra.mxu0 0.0
  %3082 = vmatprep.subr.mxu0 0.0
  %3083 = vmatpush1.msra.mxu0 0.0
  %3084 = vmatprep.mubr.f32.mxu0 0.0
  %3085 = vmatmul.mubr.f32.gmra.mrb[0].mxu0 %v2940
  %v3086 = vpop.f32.mrb[0].mxu0
  %v3087 = vadd.f32 0.0, %v3086
  %v3088 = vpop.f32.mrb[0].mxu0
  %3089 = vmatprep.mubr.f32.mxu0 0.0
  %3090 = vmatmul.mubr.f32.gmra.mrb[0].mxu0 %v2943
  %v3091 = vpop.f32.mrb[0].mxu0
  %v3092 = vadd.f32 0.0, %v3091
  %v3093 = vpop.f32.mrb[0].mxu0
  %3094 = vdwg.mxu0
  %3095 = vmatprep.subr.mxu0 0.0
  %3096 = vmatpush1.msra.mxu0 %v2899
  %3097 = vmatprep.subr.mxu0 0.0
  %3098 = vmatpush1.msra.mxu0 %v2900
  %3099 = vmatprep.subr.mxu0 0.0
  %3100 = vmatpush1.msra.mxu0 %v2901
  %3101 = vmatprep.subr.mxu0 0.0
  %3102 = vmatpush1.msra.mxu0 %v2902
  %3103 = vmatprep.subr.mxu0 0.0
  %3104 = vmatpush1.msra.mxu0 0.0
  %3105 = vmatprep.subr.mxu0 0.0
  %3106 = vmatpush1.msra.mxu0 0.0
  %3107 = vmatprep.subr.mxu0 0.0
  %3108 = vmatpush1.msra.mxu0 0.0
  %3109 = vmatprep.subr.mxu0 0.0
  %3110 = vmatpush1.msra.mxu0 0.0
  %3111 = vmatprep.subr.mxu0 0.0
  %3112 = vmatpush1.msra.mxu0 0.0
  %3113 = vmatprep.subr.mxu0 0.0
  %3114 = vmatpush1.msra.mxu0 0.0
  %3115 = vmatprep.subr.mxu0 0.0
  %3116 = vmatpush1.msra.mxu0 0.0
  %3117 = vmatprep.subr.mxu0 0.0
  %3118 = vmatpush1.msra.mxu0 0.0
  %3119 = vmatprep.subr.mxu0 0.0
  %3120 = vmatpush1.msra.mxu0 0.0
  %3121 = vmatprep.subr.mxu0 0.0
  %3122 = vmatpush1.msra.mxu0 0.0
  %3123 = vmatprep.subr.mxu0 0.0
  %3124 = vmatpush1.msra.mxu0 0.0
  %3125 = vmatprep.subr.mxu0 0.0
  %3126 = vmatpush1.msra.mxu0 0.0
  %3127 = vmatprep.subr.mxu0 0.0
  %3128 = vmatpush1.msra.mxu0 0.0
  %3129 = vmatprep.subr.mxu0 0.0
  %3130 = vmatpush1.msra.mxu0 0.0
  %3131 = vmatprep.subr.mxu0 0.0
  %3132 = vmatpush1.msra.mxu0 0.0
  %3133 = vmatprep.subr.mxu0 0.0
  %3134 = vmatpush1.msra.mxu0 0.0
  %3135 = vmatprep.subr.mxu0 0.0
  %3136 = vmatpush1.msra.mxu0 0.0
  %3137 = vmatprep.subr.mxu0 0.0
  %3138 = vmatpush1.msra.mxu0 0.0
  %3139 = vmatprep.subr.mxu0 0.0
  %3140 = vmatpush1.msra.mxu0 0.0
  %3141 = vmatprep.subr.mxu0 0.0
  %3142 = vmatpush1.msra.mxu0 0.0
  %3143 = vmatprep.subr.mxu0 0.0
  %3144 = vmatpush1.msra.mxu0 0.0
  %3145 = vmatprep.subr.mxu0 0.0
  %3146 = vmatpush1.msra.mxu0 0.0
  %3147 = vmatprep.subr.mxu0 0.0
  %3148 = vmatpush1.msra.mxu0 0.0
  %3149 = vmatprep.subr.mxu0 0.0
  %3150 = vmatpush1.msra.mxu0 0.0
  %3151 = vmatprep.subr.mxu0 0.0
  %3152 = vmatpush1.msra.mxu0 0.0
  %3153 = vmatprep.subr.mxu0 0.0
  %3154 = vmatpush1.msra.mxu0 0.0
  %3155 = vmatprep.subr.mxu0 0.0
  %3156 = vmatpush1.msra.mxu0 0.0
  %3157 = vmatprep.subr.mxu0 0.0
  %3158 = vmatpush1.msra.mxu0 0.0
  %3159 = vmatprep.mubr.f32.mxu0 0.0
  %3160 = vmatmul.mubr.f32.gmra.mrb[0].mxu0 %v2940
  %v3161 = vpop.f32.mrb[0].mxu0
  %v3162 = vadd.f32 0.0, %v3161
  %v3163 = vpop.f32.mrb[0].mxu0
  %3164 = vmatprep.mubr.f32.mxu0 0.0
  %3165 = vmatmul.mubr.f32.gmra.mrb[0].mxu0 %v2943
  %v3166 = vpop.f32.mrb[0].mxu0
  %v3167 = vadd.f32 0.0, %v3166
  %v3168 = vpop.f32.mrb[0].mxu0
  %3169 = vdwg.mxu0
  %3170 = vmatprep.subr.mxu0 0.0
  %3171 = vmatpush1.msra.mxu0 %v2903
  %3172 = vmatprep.subr.mxu0 0.0
  %3173 = vmatpush1.msra.mxu0 %v2904
  %3174 = vmatprep.subr.mxu0 0.0
  %3175 = vmatpush1.msra.mxu0 %v2905
  %3176 = vmatprep.subr.mxu0 0.0
  %3177 = vmatpush1.msra.mxu0 %v2906
  %3178 = vmatprep.subr.mxu0 0.0
  %3179 = vmatpush1.msra.mxu0 0.0
  %3180 = vmatprep.subr.mxu0 0.0
  %3181 = vmatpush1.msra.mxu0 0.0
  %3182 = vmatprep.subr.mxu0 0.0
  %3183 = vmatpush1.msra.mxu0 0.0
  %3184 = vmatprep.subr.mxu0 0.0
  %3185 = vmatpush1.msra.mxu0 0.0
  %3186 = vmatprep.subr.mxu0 0.0
  %3187 = vmatpush1.msra.mxu0 0.0
  %3188 = vmatprep.subr.mxu0 0.0
  %3189 = vmatpush1.msra.mxu0 0.0
  %3190 = vmatprep.subr.mxu0 0.0
  %3191 = vmatpush1.msra.mxu0 0.0
  %3192 = vmatprep.subr.mxu0 0.0
  %3193 = vmatpush1.msra.mxu0 0.0
  %3194 = vmatprep.subr.mxu0 0.0
  %3195 = vmatpush1.msra.mxu0 0.0
  %3196 = vmatprep.subr.mxu0 0.0
  %3197 = vmatpush1.msra.mxu0 0.0
  %3198 = vmatprep.subr.mxu0 0.0
  %3199 = vmatpush1.msra.mxu0 0.0
  %3200 = vmatprep.subr.mxu0 0.0
  %3201 = vmatpush1.msra.mxu0 0.0
  %3202 = vmatprep.subr.mxu0 0.0
  %3203 = vmatpush1.msra.mxu0 0.0
  %3204 = vmatprep.subr.mxu0 0.0
  %3205 = vmatpush1.msra.mxu0 0.0
  %3206 = vmatprep.subr.mxu0 0.0
  %3207 = vmatpush1.msra.mxu0 0.0
  %3208 = vmatprep.subr.mxu0 0.0
  %3209 = vmatpush1.msra.mxu0 0.0
  %3210 = vmatprep.subr.mxu0 0.0
  %3211 = vmatpush1.msra.mxu0 0.0
  %3212 = vmatprep.subr.mxu0 0.0
  %3213 = vmatpush1.msra.mxu0 0.0
  %3214 = vmatprep.subr.mxu0 0.0
  %3215 = vmatpush1.msra.mxu0 0.0
  %3216 = vmatprep.subr.mxu0 0.0
  %3217 = vmatpush1.msra.mxu0 0.0
  %3218 = vmatprep.subr.mxu0 0.0
  %3219 = vmatpush1.msra.mxu0 0.0
  %3220 = vmatprep.subr.mxu0 0.0
  %3221 = vmatpush1.msra.mxu0 0.0
  %3222 = vmatprep.subr.mxu0 0.0
  %3223 = vmatpush1.msra.mxu0 0.0
  %3224 = vmatprep.subr.mxu0 0.0
  %3225 = vmatpush1.msra.mxu0 0.0
  %3226 = vmatprep.subr.mxu0 0.0
  %3227 = vmatpush1.msra.mxu0 0.0
  %3228 = vmatprep.subr.mxu0 0.0
  %3229 = vmatpush1.msra.mxu0 0.0
  %3230 = vmatprep.subr.mxu0 0.0
  %3231 = vmatpush1.msra.mxu0 0.0
  %3232 = vmatprep.subr.mxu0 0.0
  %3233 = vmatpush1.msra.mxu0 0.0
  %3234 = vmatprep.mubr.f32.mxu0 0.0
  %3235 = vmatmul.mubr.f32.gmra.mrb[0].mxu0 %v2940
  %v3236 = vpop.f32.mrb[0].mxu0
  %v3237 = vadd.f32 0.0, %v3236
  %v3238 = vpop.f32.mrb[0].mxu0
  %3239 = vmatprep.mubr.f32.mxu0 0.0
  %3240 = vmatmul.mubr.f32.gmra.mrb[0].mxu0 %v2943
  %v3241 = vpop.f32.mrb[0].mxu0
  %v3242 = vadd.f32 0.0, %v3241
  %v3243 = vpop.f32.mrb[0].mxu0
  %3244 = vdwg.mxu0
  %3245 = vmatprep.subr.mxu0 0.0
  %3246 = vmatpush1.msra.mxu0 %v2907
  %3247 = vmatprep.subr.mxu0 0.0
  %3248 = vmatpush1.msra.mxu0 %v2908
  %3249 = vmatprep.subr.mxu0 0.0
  %3250 = vmatpush1.msra.mxu0 %v2909
  %3251 = vmatprep.subr.mxu0 0.0
  %3252 = vmatpush1.msra.mxu0 %v2910
  %3253 = vmatprep.subr.mxu0 0.0
  %3254 = vmatpush1.msra.mxu0 0.0
  %3255 = vmatprep.subr.mxu0 0.0
  %3256 = vmatpush1.msra.mxu0 0.0
  %3257 = vmatprep.subr.mxu0 0.0
  %3258 = vmatpush1.msra.mxu0 0.0
  %3259 = vmatprep.subr.mxu0 0.0
  %3260 = vmatpush1.msra.mxu0 0.0
  %3261 = vmatprep.subr.mxu0 0.0
  %3262 = vmatpush1.msra.mxu0 0.0
  %3263 = vmatprep.subr.mxu0 0.0
  %3264 = vmatpush1.msra.mxu0 0.0
  %3265 = vmatprep.subr.mxu0 0.0
  %3266 = vmatpush1.msra.mxu0 0.0
  %3267 = vmatprep.subr.mxu0 0.0
  %3268 = vmatpush1.msra.mxu0 0.0
  %3269 = vmatprep.subr.mxu0 0.0
  %3270 = vmatpush1.msra.mxu0 0.0
  %3271 = vmatprep.subr.mxu0 0.0
  %3272 = vmatpush1.msra.mxu0 0.0
  %3273 = vmatprep.subr.mxu0 0.0
  %3274 = vmatpush1.msra.mxu0 0.0
  %3275 = vmatprep.subr.mxu0 0.0
  %3276 = vmatpush1.msra.mxu0 0.0
  %3277 = vmatprep.subr.mxu0 0.0
  %3278 = vmatpush1.msra.mxu0 0.0
  %3279 = vmatprep.subr.mxu0 0.0
  %3280 = vmatpush1.msra.mxu0 0.0
  %3281 = vmatprep.subr.mxu0 0.0
  %3282 = vmatpush1.msra.mxu0 0.0
  %3283 = vmatprep.subr.mxu0 0.0
  %3284 = vmatpush1.msra.mxu0 0.0
  %3285 = vmatprep.subr.mxu0 0.0
  %3286 = vmatpush1.msra.mxu0 0.0
  %3287 = vmatprep.subr.mxu0 0.0
  %3288 = vmatpush1.msra.mxu0 0.0
  %3289 = vmatprep.subr.mxu0 0.0
  %3290 = vmatpush1.msra.mxu0 0.0
  %3291 = vmatprep.subr.mxu0 0.0
  %3292 = vmatpush1.msra.mxu0 0.0
  %3293 = vmatprep.subr.mxu0 0.0
  %3294 = vmatpush1.msra.mxu0 0.0
  %3295 = vmatprep.subr.mxu0 0.0
  %3296 = vmatpush1.msra.mxu0 0.0
  %3297 = vmatprep.subr.mxu0 0.0
  %3298 = vmatpush1.msra.mxu0 0.0
  %3299 = vmatprep.subr.mxu0 0.0
  %3300 = vmatpush1.msra.mxu0 0.0
  %3301 = vmatprep.subr.mxu0 0.0
  %3302 = vmatpush1.msra.mxu0 0.0
  %3303 = vmatprep.subr.mxu0 0.0
  %3304 = vmatpush1.msra.mxu0 0.0
  %3305 = vmatprep.subr.mxu0 0.0
  %3306 = vmatpush1.msra.mxu0 0.0
  %3307 = vmatprep.subr.mxu0 0.0
  %3308 = vmatpush1.msra.mxu0 0.0
  %3309 = vmatprep.mubr.f32.mxu0 0.0
  %3310 = vmatmul.mubr.f32.gmra.mrb[0].mxu0 %v2940
  %v3311 = vpop.f32.mrb[0].mxu0
  %v3312 = vadd.f32 0.0, %v3311
  %v3313 = vpop.f32.mrb[0].mxu0
  %3314 = vmatprep.mubr.f32.mxu0 0.0
  %3315 = vmatmul.mubr.f32.gmra.mrb[0].mxu0 %v2943
  %v3316 = vpop.f32.mrb[0].mxu0
  %v3317 = vadd.f32 0.0, %v3316
  %v3318 = vpop.f32.mrb[0].mxu0
  %3319 = vdwg.mxu0
  %3320 = vmatprep.subr.mxu0 0.0
  %3321 = vmatpush1.msra.mxu0 %v2911
  %3322 = vmatprep.subr.mxu0 0.0
  %3323 = vmatpush1.msra.mxu0 %v2912
  %3324 = vmatprep.subr.mxu0 0.0
  %3325 = vmatpush1.msra.mxu0 %v2913
  %3326 = vmatprep.subr.mxu0 0.0
  %3327 = vmatpush1.msra.mxu0 %v2914
  %3328 = vmatprep.subr.mxu0 0.0
  %3329 = vmatpush1.msra.mxu0 0.0
  %3330 = vmatprep.subr.mxu0 0.0
  %3331 = vmatpush1.msra.mxu0 0.0
  %3332 = vmatprep.subr.mxu0 0.0
  %3333 = vmatpush1.msra.mxu0 0.0
  %3334 = vmatprep.subr.mxu0 0.0
  %3335 = vmatpush1.msra.mxu0 0.0
  %3336 = vmatprep.subr.mxu0 0.0
  %3337 = vmatpush1.msra.mxu0 0.0
  %3338 = vmatprep.subr.mxu0 0.0
  %3339 = vmatpush1.msra.mxu0 0.0
  %3340 = vmatprep.subr.mxu0 0.0
  %3341 = vmatpush1.msra.mxu0 0.0
  %3342 = vmatprep.subr.mxu0 0.0
  %3343 = vmatpush1.msra.mxu0 0.0
  %3344 = vmatprep.subr.mxu0 0.0
  %3345 = vmatpush1.msra.mxu0 0.0
  %3346 = vmatprep.subr.mxu0 0.0
  %3347 = vmatpush1.msra.mxu0 0.0
  %3348 = vmatprep.subr.mxu0 0.0
  %3349 = vmatpush1.msra.mxu0 0.0
  %3350 = vmatprep.subr.mxu0 0.0
  %3351 = vmatpush1.msra.mxu0 0.0
  %3352 = vmatprep.subr.mxu0 0.0
  %3353 = vmatpush1.msra.mxu0 0.0
  %3354 = vmatprep.subr.mxu0 0.0
  %3355 = vmatpush1.msra.mxu0 0.0
  %3356 = vmatprep.subr.mxu0 0.0
  %3357 = vmatpush1.msra.mxu0 0.0
  %3358 = vmatprep.subr.mxu0 0.0
  %3359 = vmatpush1.msra.mxu0 0.0
  %3360 = vmatprep.subr.mxu0 0.0
  %3361 = vmatpush1.msra.mxu0 0.0
  %3362 = vmatprep.subr.mxu0 0.0
  %3363 = vmatpush1.msra.mxu0 0.0
  %3364 = vmatprep.subr.mxu0 0.0
  %3365 = vmatpush1.msra.mxu0 0.0
  %3366 = vmatprep.subr.mxu0 0.0
  %3367 = vmatpush1.msra.mxu0 0.0
  %3368 = vmatprep.subr.mxu0 0.0
  %3369 = vmatpush1.msra.mxu0 0.0
  %3370 = vmatprep.subr.mxu0 0.0
  %3371 = vmatpush1.msra.mxu0 0.0
  %3372 = vmatprep.subr.mxu0 0.0
  %3373 = vmatpush1.msra.mxu0 0.0
  %3374 = vmatprep.subr.mxu0 0.0
  %3375 = vmatpush1.msra.mxu0 0.0
  %3376 = vmatprep.subr.mxu0 0.0
  %3377 = vmatpush1.msra.mxu0 0.0
  %3378 = vmatprep.subr.mxu0 0.0
  %3379 = vmatpush1.msra.mxu0 0.0
  %3380 = vmatprep.subr.mxu0 0.0
  %3381 = vmatpush1.msra.mxu0 0.0
  %3382 = vmatprep.subr.mxu0 0.0
  %3383 = vmatpush1.msra.mxu0 0.0
  %3384 = vmatprep.mubr.f32.mxu0 0.0
  %3385 = vmatmul.mubr.f32.gmra.mrb[0].mxu0 %v2940
  %v3386 = vpop.f32.mrb[0].mxu0
  %v3387 = vadd.f32 0.0, %v3386
  %v3388 = vpop.f32.mrb[0].mxu0
  %3389 = vmatprep.mubr.f32.mxu0 0.0
  %3390 = vmatmul.mubr.f32.gmra.mrb[0].mxu0 %v2943
  %v3391 = vpop.f32.mrb[0].mxu0
  %v3392 = vadd.f32 0.0, %v3391
  %v3393 = vpop.f32.mrb[0].mxu0
  %3394 = vdwg.mxu0
  %3395 = vmatprep.subr.mxu0 0.0
  %3396 = vmatpush1.msra.mxu0 %v2915
  %3397 = vmatprep.subr.mxu0 0.0
  %3398 = vmatpush1.msra.mxu0 %v2916
  %3399 = vmatprep.subr.mxu0 0.0
  %3400 = vmatpush1.msra.mxu0 %v2917
  %3401 = vmatprep.subr.mxu0 0.0
  %3402 = vmatpush1.msra.mxu0 %v2918
  %3403 = vmatprep.subr.mxu0 0.0
  %3404 = vmatpush1.msra.mxu0 0.0
  %3405 = vmatprep.subr.mxu0 0.0
  %3406 = vmatpush1.msra.mxu0 0.0
  %3407 = vmatprep.subr.mxu0 0.0
  %3408 = vmatpush1.msra.mxu0 0.0
  %3409 = vmatprep.subr.mxu0 0.0
  %3410 = vmatpush1.msra.mxu0 0.0
  %3411 = vmatprep.subr.mxu0 0.0
  %3412 = vmatpush1.msra.mxu0 0.0
  %3413 = vmatprep.subr.mxu0 0.0
  %3414 = vmatpush1.msra.mxu0 0.0
  %3415 = vmatprep.subr.mxu0 0.0
  %3416 = vmatpush1.msra.mxu0 0.0
  %3417 = vmatprep.subr.mxu0 0.0
  %3418 = vmatpush1.msra.mxu0 0.0
  %3419 = vmatprep.subr.mxu0 0.0
  %3420 = vmatpush1.msra.mxu0 0.0
  %3421 = vmatprep.subr.mxu0 0.0
  %3422 = vmatpush1.msra.mxu0 0.0
  %3423 = vmatprep.subr.mxu0 0.0
  %3424 = vmatpush1.msra.mxu0 0.0
  %3425 = vmatprep.subr.mxu0 0.0
  %3426 = vmatpush1.msra.mxu0 0.0
  %3427 = vmatprep.subr.mxu0 0.0
  %3428 = vmatpush1.msra.mxu0 0.0
  %3429 = vmatprep.subr.mxu0 0.0
  %3430 = vmatpush1.msra.mxu0 0.0
  %3431 = vmatprep.subr.mxu0 0.0
  %3432 = vmatpush1.msra.mxu0 0.0
  %3433 = vmatprep.subr.mxu0 0.0
  %3434 = vmatpush1.msra.mxu0 0.0
  %3435 = vmatprep.subr.mxu0 0.0
  %3436 = vmatpush1.msra.mxu0 0.0
  %3437 = vmatprep.subr.mxu0 0.0
  %3438 = vmatpush1.msra.mxu0 0.0
  %3439 = vmatprep.subr.mxu0 0.0
  %3440 = vmatpush1.msra.mxu0 0.0
  %3441 = vmatprep.subr.mxu0 0.0
  %3442 = vmatpush1.msra.mxu0 0.0
  %3443 = vmatprep.subr.mxu0 0.0
  %3444 = vmatpush1.msra.mxu0 0.0
  %3445 = vmatprep.subr.mxu0 0.0
  %3446 = vmatpush1.msra.mxu0 0.0
  %3447 = vmatprep.subr.mxu0 0.0
  %3448 = vmatpush1.msra.mxu0 0.0
  %3449 = vmatprep.subr.mxu0 0.0
  %3450 = vmatpush1.msra.mxu0 0.0
  %3451 = vmatprep.subr.mxu0 0.0
  %3452 = vmatpush1.msra.mxu0 0.0
  %3453 = vmatprep.subr.mxu0 0.0
  %3454 = vmatpush1.msra.mxu0 0.0
  %3455 = vmatprep.subr.mxu0 0.0
  %3456 = vmatpush1.msra.mxu0 0.0
  %3457 = vmatprep.subr.mxu0 0.0
  %3458 = vmatpush1.msra.mxu0 0.0
  %3459 = vmatprep.mubr.f32.mxu0 0.0
  %3460 = vmatmul.mubr.f32.gmra.mrb[0].mxu0 %v2940
  %v3461 = vpop.f32.mrb[0].mxu0
  %v3462 = vadd.f32 0.0, %v3461
  %v3463 = vpop.f32.mrb[0].mxu0
  %3464 = vmatprep.mubr.f32.mxu0 0.0
  %3465 = vmatmul.mubr.f32.gmra.mrb[0].mxu0 %v2943
  %v3466 = vpop.f32.mrb[0].mxu0
  %v3467 = vadd.f32 0.0, %v3466
  %v3468 = vpop.f32.mrb[0].mxu0
  %3469 = vdwg.mxu0
  %3470 = vmatprep.subr.mxu0 0.0
  %3471 = vmatpush1.msra.mxu0 %v2919
  %3472 = vmatprep.subr.mxu0 0.0
  %3473 = vmatpush1.msra.mxu0 %v2920
  %3474 = vmatprep.subr.mxu0 0.0
  %3475 = vmatpush1.msra.mxu0 %v2921
  %3476 = vmatprep.subr.mxu0 0.0
  %3477 = vmatpush1.msra.mxu0 %v2922
  %3478 = vmatprep.subr.mxu0 0.0
  %3479 = vmatpush1.msra.mxu0 0.0
  %3480 = vmatprep.subr.mxu0 0.0
  %3481 = vmatpush1.msra.mxu0 0.0
  %3482 = vmatprep.subr.mxu0 0.0
  %3483 = vmatpush1.msra.mxu0 0.0
  %3484 = vmatprep.subr.mxu0 0.0
  %3485 = vmatpush1.msra.mxu0 0.0
  %3486 = vmatprep.subr.mxu0 0.0
  %3487 = vmatpush1.msra.mxu0 0.0
  %3488 = vmatprep.subr.mxu0 0.0
  %3489 = vmatpush1.msra.mxu0 0.0
  %3490 = vmatprep.subr.mxu0 0.0
  %3491 = vmatpush1.msra.mxu0 0.0
  %3492 = vmatprep.subr.mxu0 0.0
  %3493 = vmatpush1.msra.mxu0 0.0
  %3494 = vmatprep.subr.mxu0 0.0
  %3495 = vmatpush1.msra.mxu0 0.0
  %3496 = vmatprep.subr.mxu0 0.0
  %3497 = vmatpush1.msra.mxu0 0.0
  %3498 = vmatprep.subr.mxu0 0.0
  %3499 = vmatpush1.msra.mxu0 0.0
  %3500 = vmatprep.subr.mxu0 0.0
  %3501 = vmatpush1.msra.mxu0 0.0
  %3502 = vmatprep.subr.mxu0 0.0
  %3503 = vmatpush1.msra.mxu0 0.0
  %3504 = vmatprep.subr.mxu0 0.0
  %3505 = vmatpush1.msra.mxu0 0.0
  %3506 = vmatprep.subr.mxu0 0.0
  %3507 = vmatpush1.msra.mxu0 0.0
  %3508 = vmatprep.subr.mxu0 0.0
  %3509 = vmatpush1.msra.mxu0 0.0
  %3510 = vmatprep.subr.mxu0 0.0
  %3511 = vmatpush1.msra.mxu0 0.0
  %3512 = vmatprep.subr.mxu0 0.0
  %3513 = vmatpush1.msra.mxu0 0.0
  %3514 = vmatprep.subr.mxu0 0.0
  %3515 = vmatpush1.msra.mxu0 0.0
  %3516 = vmatprep.subr.mxu0 0.0
  %3517 = vmatpush1.msra.mxu0 0.0
  %3518 = vmatprep.subr.mxu0 0.0
  %3519 = vmatpush1.msra.mxu0 0.0
  %3520 = vmatprep.subr.mxu0 0.0
  %3521 = vmatpush1.msra.mxu0 0.0
  %3522 = vmatprep.subr.mxu0 0.0
  %3523 = vmatpush1.msra.mxu0 0.0
  %3524 = vmatprep.subr.mxu0 0.0
  %3525 = vmatpush1.msra.mxu0 0.0
  %3526 = vmatprep.subr.mxu0 0.0
  %3527 = vmatpush1.msra.mxu0 0.0
  %3528 = vmatprep.subr.mxu0 0.0
  %3529 = vmatpush1.msra.mxu0 0.0
  %3530 = vmatprep.subr.mxu0 0.0
  %3531 = vmatpush1.msra.mxu0 0.0
  %3532 = vmatprep.subr.mxu0 0.0
  %3533 = vmatpush1.msra.mxu0 0.0
  %3534 = vmatprep.mubr.f32.mxu0 0.0
  %3535 = vmatmul.mubr.f32.gmra.mrb[0].mxu0 %v2940
  %v3536 = vpop.f32.mrb[0].mxu0
  %v3537 = vadd.f32 0.0, %v3536
  %v3538 = vpop.f32.mrb[0].mxu0
  %3539 = vmatprep.mubr.f32.mxu0 0.0
  %3540 = vmatmul.mubr.f32.gmra.mrb[0].mxu0 %v2943
  %v3541 = vpop.f32.mrb[0].mxu0
  %v3542 = vadd.f32 0.0, %v3541
  %v3543 = vpop.f32.mrb[0].mxu0
  %3544 = vdwg.mxu0
  %3545 = vmatprep.subr.mxu0 0.0
  %3546 = vmatpush1.msra.mxu0 %v2923
  %3547 = vmatprep.subr.mxu0 0.0
  %3548 = vmatpush1.msra.mxu0 %v2924
  %3549 = vmatprep.subr.mxu0 0.0
  %3550 = vmatpush1.msra.mxu0 %v2925
  %3551 = vmatprep.subr.mxu0 0.0
  %3552 = vmatpush1.msra.mxu0 %v2926
  %3553 = vmatprep.subr.mxu0 0.0
  %3554 = vmatpush1.msra.mxu0 0.0
  %3555 = vmatprep.subr.mxu0 0.0
  %3556 = vmatpush1.msra.mxu0 0.0
  %3557 = vmatprep.subr.mxu0 0.0
  %3558 = vmatpush1.msra.mxu0 0.0
  %3559 = vmatprep.subr.mxu0 0.0
  %3560 = vmatpush1.msra.mxu0 0.0
  %3561 = vmatprep.subr.mxu0 0.0
  %3562 = vmatpush1.msra.mxu0 0.0
  %3563 = vmatprep.subr.mxu0 0.0
  %3564 = vmatpush1.msra.mxu0 0.0
  %3565 = vmatprep.subr.mxu0 0.0
  %3566 = vmatpush1.msra.mxu0 0.0
  %3567 = vmatprep.subr.mxu0 0.0
  %3568 = vmatpush1.msra.mxu0 0.0
  %3569 = vmatprep.subr.mxu0 0.0
  %3570 = vmatpush1.msra.mxu0 0.0
  %3571 = vmatprep.subr.mxu0 0.0
  %3572 = vmatpush1.msra.mxu0 0.0
  %3573 = vmatprep.subr.mxu0 0.0
  %3574 = vmatpush1.msra.mxu0 0.0
  %3575 = vmatprep.subr.mxu0 0.0
  %3576 = vmatpush1.msra.mxu0 0.0
  %3577 = vmatprep.subr.mxu0 0.0
  %3578 = vmatpush1.msra.mxu0 0.0
  %3579 = vmatprep.subr.mxu0 0.0
  %3580 = vmatpush1.msra.mxu0 0.0
  %3581 = vmatprep.subr.mxu0 0.0
  %3582 = vmatpush1.msra.mxu0 0.0
  %3583 = vmatprep.subr.mxu0 0.0
  %3584 = vmatpush1.msra.mxu0 0.0
  %3585 = vmatprep.subr.mxu0 0.0
  %3586 = vmatpush1.msra.mxu0 0.0
  %3587 = vmatprep.subr.mxu0 0.0
  %3588 = vmatpush1.msra.mxu0 0.0
  %3589 = vmatprep.subr.mxu0 0.0
  %3590 = vmatpush1.msra.mxu0 0.0
  %3591 = vmatprep.subr.mxu0 0.0
  %3592 = vmatpush1.msra.mxu0 0.0
  %3593 = vmatprep.subr.mxu0 0.0
  %3594 = vmatpush1.msra.mxu0 0.0
  %3595 = vmatprep.subr.mxu0 0.0
  %3596 = vmatpush1.msra.mxu0 0.0
  %3597 = vmatprep.subr.mxu0 0.0
  %3598 = vmatpush1.msra.mxu0 0.0
  %3599 = vmatprep.subr.mxu0 0.0
  %3600 = vmatpush1.msra.mxu0 0.0
  %3601 = vmatprep.subr.mxu0 0.0
  %3602 = vmatpush1.msra.mxu0 0.0
  %3603 = vmatprep.subr.mxu0 0.0
  %3604 = vmatpush1.msra.mxu0 0.0
  %3605 = vmatprep.subr.mxu0 0.0
  %3606 = vmatpush1.msra.mxu0 0.0
  %3607 = vmatprep.subr.mxu0 0.0
  %3608 = vmatpush1.msra.mxu0 0.0
  %3609 = vmatprep.mubr.f32.mxu0 0.0
  %3610 = vmatmul.mubr.f32.gmra.mrb[0].mxu0 %v2940
  %v3611 = vpop.f32.mrb[0].mxu0
  %v3612 = vadd.f32 0.0, %v3611
  %v3613 = vpop.f32.mrb[0].mxu0
  %3614 = vmatprep.mubr.f32.mxu0 0.0
  %3615 = vmatmul.mubr.f32.gmra.mrb[0].mxu0 %v2943
  %v3616 = vpop.f32.mrb[0].mxu0
  %v3617 = vadd.f32 0.0, %v3616
  %v3618 = vpop.f32.mrb[0].mxu0
  %3619 = vdwg.mxu0
  %3620 = vmatprep.subr.mxu0 0.0
  %3621 = vmatpush1.msra.mxu0 %v2927
  %3622 = vmatprep.subr.mxu0 0.0
  %3623 = vmatpush1.msra.mxu0 %v2928
  %3624 = vmatprep.subr.mxu0 0.0
  %3625 = vmatpush1.msra.mxu0 %v2929
  %3626 = vmatprep.subr.mxu0 0.0
  %3627 = vmatpush1.msra.mxu0 %v2930
  %3628 = vmatprep.subr.mxu0 0.0
  %3629 = vmatpush1.msra.mxu0 0.0
  %3630 = vmatprep.subr.mxu0 0.0
  %3631 = vmatpush1.msra.mxu0 0.0
  %3632 = vmatprep.subr.mxu0 0.0
  %3633 = vmatpush1.msra.mxu0 0.0
  %3634 = vmatprep.subr.mxu0 0.0
  %3635 = vmatpush1.msra.mxu0 0.0
  %3636 = vmatprep.subr.mxu0 0.0
  %3637 = vmatpush1.msra.mxu0 0.0
  %3638 = vmatprep.subr.mxu0 0.0
  %3639 = vmatpush1.msra.mxu0 0.0
  %3640 = vmatprep.subr.mxu0 0.0
  %3641 = vmatpush1.msra.mxu0 0.0
  %3642 = vmatprep.subr.mxu0 0.0
  %3643 = vmatpush1.msra.mxu0 0.0
  %3644 = vmatprep.subr.mxu0 0.0
  %3645 = vmatpush1.msra.mxu0 0.0
  %3646 = vmatprep.subr.mxu0 0.0
  %3647 = vmatpush1.msra.mxu0 0.0
  %3648 = vmatprep.subr.mxu0 0.0
  %3649 = vmatpush1.msra.mxu0 0.0
  %3650 = vmatprep.subr.mxu0 0.0
  %3651 = vmatpush1.msra.mxu0 0.0
  %3652 = vmatprep.subr.mxu0 0.0
  %3653 = vmatpush1.msra.mxu0 0.0
  %3654 = vmatprep.subr.mxu0 0.0
  %3655 = vmatpush1.msra.mxu0 0.0
  %3656 = vmatprep.subr.mxu0 0.0
  %3657 = vmatpush1.msra.mxu0 0.0
  %3658 = vmatprep.subr.mxu0 0.0
  %3659 = vmatpush1.msra.mxu0 0.0
  %3660 = vmatprep.subr.mxu0 0.0
  %3661 = vmatpush1.msra.mxu0 0.0
  %3662 = vmatprep.subr.mxu0 0.0
  %3663 = vmatpush1.msra.mxu0 0.0
  %3664 = vmatprep.subr.mxu0 0.0
  %3665 = vmatpush1.msra.mxu0 0.0
  %3666 = vmatprep.subr.mxu0 0.0
  %3667 = vmatpush1.msra.mxu0 0.0
  %3668 = vmatprep.subr.mxu0 0.0
  %3669 = vmatpush1.msra.mxu0 0.0
  %3670 = vmatprep.subr.mxu0 0.0
  %3671 = vmatpush1.msra.mxu0 0.0
  %3672 = vmatprep.subr.mxu0 0.0
  %3673 = vmatpush1.msra.mxu0 0.0
  %3674 = vmatprep.subr.mxu0 0.0
  %3675 = vmatpush1.msra.mxu0 0.0
  %3676 = vmatprep.subr.mxu0 0.0
  %3677 = vmatpush1.msra.mxu0 0.0
  %3678 = vmatprep.subr.mxu0 0.0
  %3679 = vmatpush1.msra.mxu0 0.0
  %3680 = vmatprep.subr.mxu0 0.0
  %3681 = vmatpush1.msra.mxu0 0.0
  %3682 = vmatprep.subr.mxu0 0.0
  %3683 = vmatpush1.msra.mxu0 0.0
  %3684 = vmatprep.mubr.f32.mxu0 0.0
  %3685 = vmatmul.mubr.f32.gmra.mrb[0].mxu0 %v2940
  %v3686 = vpop.f32.mrb[0].mxu0
  %v3687 = vadd.f32 0.0, %v3686
  %v3688 = vpop.f32.mrb[0].mxu0
  %3689 = vmatprep.mubr.f32.mxu0 0.0
  %3690 = vmatmul.mubr.f32.gmra.mrb[0].mxu0 %v2943
  %v3691 = vpop.f32.mrb[0].mxu0
  %v3692 = vadd.f32 0.0, %v3691
  %v3693 = vpop.f32.mrb[0].mxu0
  %3694 = vdwg.mxu0
  %3695 = vmatprep.subr.mxu0 0.0
  %3696 = vmatpush1.msra.mxu0 %v2931
  %3697 = vmatprep.subr.mxu0 0.0
  %3698 = vmatpush1.msra.mxu0 %v2932
  %3699 = vmatprep.subr.mxu0 0.0
  %3700 = vmatpush1.msra.mxu0 %v2933
  %3701 = vmatprep.subr.mxu0 0.0
  %3702 = vmatpush1.msra.mxu0 %v2934
  %3703 = vmatprep.subr.mxu0 0.0
  %3704 = vmatpush1.msra.mxu0 0.0
  %3705 = vmatprep.subr.mxu0 0.0
  %3706 = vmatpush1.msra.mxu0 0.0
  %3707 = vmatprep.subr.mxu0 0.0
  %3708 = vmatpush1.msra.mxu0 0.0
  %3709 = vmatprep.subr.mxu0 0.0
  %3710 = vmatpush1.msra.mxu0 0.0
  %3711 = vmatprep.subr.mxu0 0.0
  %3712 = vmatpush1.msra.mxu0 0.0
  %3713 = vmatprep.subr.mxu0 0.0
  %3714 = vmatpush1.msra.mxu0 0.0
  %3715 = vmatprep.subr.mxu0 0.0
  %3716 = vmatpush1.msra.mxu0 0.0
  %3717 = vmatprep.subr.mxu0 0.0
  %3718 = vmatpush1.msra.mxu0 0.0
  %3719 = vmatprep.subr.mxu0 0.0
  %3720 = vmatpush1.msra.mxu0 0.0
  %3721 = vmatprep.subr.mxu0 0.0
  %3722 = vmatpush1.msra.mxu0 0.0
  %3723 = vmatprep.subr.mxu0 0.0
  %3724 = vmatpush1.msra.mxu0 0.0
  %3725 = vmatprep.subr.mxu0 0.0
  %3726 = vmatpush1.msra.mxu0 0.0
  %3727 = vmatprep.subr.mxu0 0.0
  %3728 = vmatpush1.msra.mxu0 0.0
  %3729 = vmatprep.subr.mxu0 0.0
  %3730 = vmatpush1.msra.mxu0 0.0
  %3731 = vmatprep.subr.mxu0 0.0
  %3732 = vmatpush1.msra.mxu0 0.0
  %3733 = vmatprep.subr.mxu0 0.0
  %3734 = vmatpush1.msra.mxu0 0.0
  %3735 = vmatprep.subr.mxu0 0.0
  %3736 = vmatpush1.msra.mxu0 0.0
  %3737 = vmatprep.subr.mxu0 0.0
  %3738 = vmatpush1.msra.mxu0 0.0
  %3739 = vmatprep.subr.mxu0 0.0
  %3740 = vmatpush1.msra.mxu0 0.0
  %3741 = vmatprep.subr.mxu0 0.0
  %3742 = vmatpush1.msra.mxu0 0.0
  %3743 = vmatprep.subr.mxu0 0.0
  %3744 = vmatpush1.msra.mxu0 0.0
  %3745 = vmatprep.subr.mxu0 0.0
  %3746 = vmatpush1.msra.mxu0 0.0
  %3747 = vmatprep.subr.mxu0 0.0
  %3748 = vmatpush1.msra.mxu0 0.0
  %3749 = vmatprep.subr.mxu0 0.0
  %3750 = vmatpush1.msra.mxu0 0.0
  %3751 = vmatprep.subr.mxu0 0.0
  %3752 = vmatpush1.msra.mxu0 0.0
  %3753 = vmatprep.subr.mxu0 0.0
  %3754 = vmatpush1.msra.mxu0 0.0
  %3755 = vmatprep.subr.mxu0 0.0
  %3756 = vmatpush1.msra.mxu0 0.0
  %3757 = vmatprep.subr.mxu0 0.0
  %3758 = vmatpush1.msra.mxu0 0.0
  %3759 = vmatprep.mubr.f32.mxu0 0.0
  %3760 = vmatmul.mubr.f32.gmra.mrb[0].mxu0 %v2940
  %v3761 = vpop.f32.mrb[0].mxu0
  %v3762 = vadd.f32 0.0, %v3761
  %v3763 = vpop.f32.mrb[0].mxu0
  %3764 = vmatprep.mubr.f32.mxu0 0.0
  %3765 = vmatmul.mubr.f32.gmra.mrb[0].mxu0 %v2943
  %v3766 = vpop.f32.mrb[0].mxu0
  %v3767 = vadd.f32 0.0, %v3766
  %v3768 = vpop.f32.mrb[0].mxu0
  %3769 = vdwg.mxu0
  %3770 = vmatprep.subr.mxu0 0.0
  %3771 = vmatpush1.msra.mxu0 %v2935
  %3772 = vmatprep.subr.mxu0 0.0
  %3773 = vmatpush1.msra.mxu0 %v2936
  %3774 = vmatprep.subr.mxu0 0.0
  %3775 = vmatpush1.msra.mxu0 %v2937
  %3776 = vmatprep.subr.mxu0 0.0
  %3777 = vmatpush1.msra.mxu0 %v2938
  %3778 = vmatprep.subr.mxu0 0.0
  %3779 = vmatpush1.msra.mxu0 0.0
  %3780 = vmatprep.subr.mxu0 0.0
  %3781 = vmatpush1.msra.mxu0 0.0
  %3782 = vmatprep.subr.mxu0 0.0
  %3783 = vmatpush1.msra.mxu0 0.0
  %3784 = vmatprep.subr.mxu0 0.0
  %3785 = vmatpush1.msra.mxu0 0.0
  %3786 = vmatprep.subr.mxu0 0.0
  %3787 = vmatpush1.msra.mxu0 0.0
  %3788 = vmatprep.subr.mxu0 0.0
  %3789 = vmatpush1.msra.mxu0 0.0
  %3790 = vmatprep.subr.mxu0 0.0
  %3791 = vmatpush1.msra.mxu0 0.0
  %3792 = vmatprep.subr.mxu0 0.0
  %3793 = vmatpush1.msra.mxu0 0.0
  %3794 = vmatprep.subr.mxu0 0.0
  %3795 = vmatpush1.msra.mxu0 0.0
  %3796 = vmatprep.subr.mxu0 0.0
  %3797 = vmatpush1.msra.mxu0 0.0
  %3798 = vmatprep.subr.mxu0 0.0
  %3799 = vmatpush1.msra.mxu0 0.0
  %3800 = vmatprep.subr.mxu0 0.0
  %3801 = vmatpush1.msra.mxu0 0.0
  %3802 = vmatprep.subr.mxu0 0.0
  %3803 = vmatpush1.msra.mxu0 0.0
  %3804 = vmatprep.subr.mxu0 0.0
  %3805 = vmatpush1.msra.mxu0 0.0
  %3806 = vmatprep.subr.mxu0 0.0
  %3807 = vmatpush1.msra.mxu0 0.0
  %3808 = vmatprep.subr.mxu0 0.0
  %3809 = vmatpush1.msra.mxu0 0.0
  %3810 = vmatprep.subr.mxu0 0.0
  %3811 = vmatpush1.msra.mxu0 0.0
  %3812 = vmatprep.subr.mxu0 0.0
  %3813 = vmatpush1.msra.mxu0 0.0
  %3814 = vmatprep.subr.mxu0 0.0
  %3815 = vmatpush1.msra.mxu0 0.0
  %3816 = vmatprep.subr.mxu0 0.0
  %3817 = vmatpush1.msra.mxu0 0.0
  %3818 = vmatprep.subr.mxu0 0.0
  %3819 = vmatpush1.msra.mxu0 0.0
  %3820 = vmatprep.subr.mxu0 0.0
  %3821 = vmatpush1.msra.mxu0 0.0
  %3822 = vmatprep.subr.mxu0 0.0
  %3823 = vmatpush1.msra.mxu0 0.0
  %3824 = vmatprep.subr.mxu0 0.0
  %3825 = vmatpush1.msra.mxu0 0.0
  %3826 = vmatprep.subr.mxu0 0.0
  %3827 = vmatpush1.msra.mxu0 0.0
  %3828 = vmatprep.subr.mxu0 0.0
  %3829 = vmatpush1.msra.mxu0 0.0
  %3830 = vmatprep.subr.mxu0 0.0
  %3831 = vmatpush1.msra.mxu0 0.0
  %3832 = vmatprep.subr.mxu0 0.0
  %3833 = vmatpush1.msra.mxu0 0.0
  %3834 = vmatprep.mubr.f32.mxu0 0.0
  %3835 = vmatmul.mubr.f32.gmra.mrb[0].mxu0 %v2940
  %v3836 = vpop.f32.mrb[0].mxu0
  %v3837 = vadd.f32 0.0, %v3836
  %v3838 = vpop.f32.mrb[0].mxu0
  %3839 = vmatprep.mubr.f32.mxu0 0.0
  %3840 = vmatmul.mubr.f32.gmra.mrb[0].mxu0 %v2943
  %v3841 = vpop.f32.mrb[0].mxu0
  %v3842 = vadd.f32 0.0, %v3841
  %v3843 = vpop.f32.mrb[0].mxu0
  %3844 = vdwg.mxu0
  %v3846 = vsel %vm27, %v3012, 0
  %v3849 = vsel %vm27, %v3312, 0
  %3851 = vmatprep.subr.mxu0 0.0
  %3852 = vmatpush1.xpose.msra.mxu0 %v3849
  %3853 = vmatprep.subr.mxu0 0.0
  %3854 = vmatpush1.xpose.msra.mxu0 0.0
  %3855 = vmatprep.subr.mxu0 0.0
  %3856 = vmatpush1.xpose.msra.mxu0 0.0
  %3857 = vmatprep.subr.mxu0 0.0
  %3858 = vmatpush1.xpose.msra.mxu0 0.0
  %3859 = vmatprep.subr.mxu0 0.0
  %3860 = vmatpush1.xpose.msra.mxu0 0.0
  %3861 = vmatprep.subr.mxu0 0.0
  %3862 = vmatpush1.xpose.msra.mxu0 0.0
  %3863 = vmatprep.subr.mxu0 0.0
  %3864 = vmatpush1.xpose.msra.mxu0 0.0
  %3865 = vmatprep.subr.mxu0 0.0
  %3866 = vmatpush1.xpose.msra.mxu0 0.0
  %3867 = vmatprep.subr.mxu0 0.0
  %3868 = vmatpush1.xpose.msra.mxu0 0.0
  %3869 = vmatprep.subr.mxu0 0.0
  %3870 = vmatpush1.xpose.msra.mxu0 0.0
  %3871 = vmatprep.subr.mxu0 0.0
  %3872 = vmatpush1.xpose.msra.mxu0 0.0
  %3873 = vmatprep.subr.mxu0 0.0
  %3874 = vmatpush1.xpose.msra.mxu0 0.0
  %3875 = vmatprep.subr.mxu0 0.0
  %3876 = vmatpush1.xpose.msra.mxu0 0.0
  %3877 = vmatprep.subr.mxu0 0.0
  %3878 = vmatpush1.xpose.msra.mxu0 0.0
  %3879 = vmatprep.subr.mxu0 0.0
  %3880 = vmatpush1.xpose.msra.mxu0 0.0
  %3881 = vmatprep.subr.mxu0 0.0
  %3882 = vmatpush1.xpose.msra.mxu0 0.0
  %3883 = vmatprep.subr.mxu0 0.0
  %3884 = vmatpush1.xpose.msra.mxu0 0.0
  %3885 = vmatprep.subr.mxu0 0.0
  %3886 = vmatpush1.xpose.msra.mxu0 0.0
  %3887 = vmatprep.subr.mxu0 0.0
  %3888 = vmatpush1.xpose.msra.mxu0 0.0
  %3889 = vmatprep.subr.mxu0 0.0
  %3890 = vmatpush1.xpose.msra.mxu0 0.0
  %3891 = vmatprep.subr.mxu0 0.0
  %3892 = vmatpush1.xpose.msra.mxu0 0.0
  %3893 = vmatprep.subr.mxu0 0.0
  %3894 = vmatpush1.xpose.msra.mxu0 0.0
  %3895 = vmatprep.subr.mxu0 0.0
  %3896 = vmatpush1.xpose.msra.mxu0 0.0
  %3897 = vmatprep.subr.mxu0 0.0
  %3898 = vmatpush1.xpose.msra.mxu0 0.0
  %3899 = vmatprep.subr.mxu0 0.0
  %3900 = vmatpush1.xpose.msra.mxu0 0.0
  %3901 = vmatprep.subr.mxu0 0.0
  %3902 = vmatpush1.xpose.msra.mxu0 0.0
  %3903 = vmatprep.subr.mxu0 0.0
  %3904 = vmatpush1.xpose.msra.mxu0 0.0
  %3905 = vmatprep.subr.mxu0 0.0
  %3906 = vmatpush1.xpose.msra.mxu0 0.0
  %3907 = vmatprep.subr.mxu0 0.0
  %3908 = vmatpush1.xpose.msra.mxu0 0.0
  %3909 = vmatprep.subr.mxu0 0.0
  %3910 = vmatpush1.xpose.msra.mxu0 0.0
  %3911 = vmatprep.subr.mxu0 0.0
  %3912 = vmatpush1.xpose.msra.mxu0 0.0
  %3913 = vmatprep.subr.mxu0 0.0
  %3914 = vmatpush1.xpose.msra.mxu0 0.0
  %3915 = vmatprep.mubr.f32.mxu0 0.0
  %3916 = vmatmul.mubr.f32.gmra.mrb[0].mxu0 %v3846
  %v3917 = vpop.f32.mrb[0].mxu0
  %v3918 = vadd.f32 %v16, %v3917
  %v3919 = vpop.f32.mrb[0].mxu0
  %3920 = vdwg.mxu0
  %v3922 = vsel %vm27, %v3017, 0
  %v3925 = vsel %vm27, %v3317, 0
  %3927 = vmatprep.subr.mxu0 0.0
  %3928 = vmatpush1.xpose.msra.mxu0 %v3925
  %3929 = vmatprep.subr.mxu0 0.0
  %3930 = vmatpush1.xpose.msra.mxu0 0.0
  %3931 = vmatprep.subr.mxu0 0.0
  %3932 = vmatpush1.xpose.msra.mxu0 0.0
  %3933 = vmatprep.subr.mxu0 0.0
  %3934 = vmatpush1.xpose.msra.mxu0 0.0
  %3935 = vmatprep.subr.mxu0 0.0
  %3936 = vmatpush1.xpose.msra.mxu0 0.0
  %3937 = vmatprep.subr.mxu0 0.0
  %3938 = vmatpush1.xpose.msra.mxu0 0.0
  %3939 = vmatprep.subr.mxu0 0.0
  %3940 = vmatpush1.xpose.msra.mxu0 0.0
  %3941 = vmatprep.subr.mxu0 0.0
  %3942 = vmatpush1.xpose.msra.mxu0 0.0
  %3943 = vmatprep.subr.mxu0 0.0
  %3944 = vmatpush1.xpose.msra.mxu0 0.0
  %3945 = vmatprep.subr.mxu0 0.0
  %3946 = vmatpush1.xpose.msra.mxu0 0.0
  %3947 = vmatprep.subr.mxu0 0.0
  %3948 = vmatpush1.xpose.msra.mxu0 0.0
  %3949 = vmatprep.subr.mxu0 0.0
  %3950 = vmatpush1.xpose.msra.mxu0 0.0
  %3951 = vmatprep.subr.mxu0 0.0
  %3952 = vmatpush1.xpose.msra.mxu0 0.0
  %3953 = vmatprep.subr.mxu0 0.0
  %3954 = vmatpush1.xpose.msra.mxu0 0.0
  %3955 = vmatprep.subr.mxu0 0.0
  %3956 = vmatpush1.xpose.msra.mxu0 0.0
  %3957 = vmatprep.subr.mxu0 0.0
  %3958 = vmatpush1.xpose.msra.mxu0 0.0
  %3959 = vmatprep.subr.mxu0 0.0
  %3960 = vmatpush1.xpose.msra.mxu0 0.0
  %3961 = vmatprep.subr.mxu0 0.0
  %3962 = vmatpush1.xpose.msra.mxu0 0.0
  %3963 = vmatprep.subr.mxu0 0.0
  %3964 = vmatpush1.xpose.msra.mxu0 0.0
  %3965 = vmatprep.subr.mxu0 0.0
  %3966 = vmatpush1.xpose.msra.mxu0 0.0
  %3967 = vmatprep.subr.mxu0 0.0
  %3968 = vmatpush1.xpose.msra.mxu0 0.0
  %3969 = vmatprep.subr.mxu0 0.0
  %3970 = vmatpush1.xpose.msra.mxu0 0.0
  %3971 = vmatprep.subr.mxu0 0.0
  %3972 = vmatpush1.xpose.msra.mxu0 0.0
  %3973 = vmatprep.subr.mxu0 0.0
  %3974 = vmatpush1.xpose.msra.mxu0 0.0
  %3975 = vmatprep.subr.mxu0 0.0
  %3976 = vmatpush1.xpose.msra.mxu0 0.0
  %3977 = vmatprep.subr.mxu0 0.0
  %3978 = vmatpush1.xpose.msra.mxu0 0.0
  %3979 = vmatprep.subr.mxu0 0.0
  %3980 = vmatpush1.xpose.msra.mxu0 0.0
  %3981 = vmatprep.subr.mxu0 0.0
  %3982 = vmatpush1.xpose.msra.mxu0 0.0
  %3983 = vmatprep.subr.mxu0 0.0
  %3984 = vmatpush1.xpose.msra.mxu0 0.0
  %3985 = vmatprep.subr.mxu0 0.0
  %3986 = vmatpush1.xpose.msra.mxu0 0.0
  %3987 = vmatprep.subr.mxu0 0.0
  %3988 = vmatpush1.xpose.msra.mxu0 0.0
  %3989 = vmatprep.subr.mxu0 0.0
  %3990 = vmatpush1.xpose.msra.mxu0 0.0
  %3991 = vmatprep.mubr.f32.mxu0 0.0
  %3992 = vmatmul.mubr.f32.gmra.mrb[0].mxu0 %v3922
  %v3993 = vpop.f32.mrb[0].mxu0
  %v3994 = vadd.f32 %v17, %v3993
  %v3995 = vpop.f32.mrb[0].mxu0
  %3996 = vdwg.mxu0
  %v3998 = vsel %vm27, %v3087, 0
  %v4001 = vsel %vm27, %v3387, 0
  %4003 = vmatprep.subr.mxu0 0.0
  %4004 = vmatpush1.xpose.msra.mxu0 %v4001
  %4005 = vmatprep.subr.mxu0 0.0
  %4006 = vmatpush1.xpose.msra.mxu0 0.0
  %4007 = vmatprep.subr.mxu0 0.0
  %4008 = vmatpush1.xpose.msra.mxu0 0.0
  %4009 = vmatprep.subr.mxu0 0.0
  %4010 = vmatpush1.xpose.msra.mxu0 0.0
  %4011 = vmatprep.subr.mxu0 0.0
  %4012 = vmatpush1.xpose.msra.mxu0 0.0
  %4013 = vmatprep.subr.mxu0 0.0
  %4014 = vmatpush1.xpose.msra.mxu0 0.0
  %4015 = vmatprep.subr.mxu0 0.0
  %4016 = vmatpush1.xpose.msra.mxu0 0.0
  %4017 = vmatprep.subr.mxu0 0.0
  %4018 = vmatpush1.xpose.msra.mxu0 0.0
  %4019 = vmatprep.subr.mxu0 0.0
  %4020 = vmatpush1.xpose.msra.mxu0 0.0
  %4021 = vmatprep.subr.mxu0 0.0
  %4022 = vmatpush1.xpose.msra.mxu0 0.0
  %4023 = vmatprep.subr.mxu0 0.0
  %4024 = vmatpush1.xpose.msra.mxu0 0.0
  %4025 = vmatprep.subr.mxu0 0.0
  %4026 = vmatpush1.xpose.msra.mxu0 0.0
  %4027 = vmatprep.subr.mxu0 0.0
  %4028 = vmatpush1.xpose.msra.mxu0 0.0
  %4029 = vmatprep.subr.mxu0 0.0
  %4030 = vmatpush1.xpose.msra.mxu0 0.0
  %4031 = vmatprep.subr.mxu0 0.0
  %4032 = vmatpush1.xpose.msra.mxu0 0.0
  %4033 = vmatprep.subr.mxu0 0.0
  %4034 = vmatpush1.xpose.msra.mxu0 0.0
  %4035 = vmatprep.subr.mxu0 0.0
  %4036 = vmatpush1.xpose.msra.mxu0 0.0
  %4037 = vmatprep.subr.mxu0 0.0
  %4038 = vmatpush1.xpose.msra.mxu0 0.0
  %4039 = vmatprep.subr.mxu0 0.0
  %4040 = vmatpush1.xpose.msra.mxu0 0.0
  %4041 = vmatprep.subr.mxu0 0.0
  %4042 = vmatpush1.xpose.msra.mxu0 0.0
  %4043 = vmatprep.subr.mxu0 0.0
  %4044 = vmatpush1.xpose.msra.mxu0 0.0
  %4045 = vmatprep.subr.mxu0 0.0
  %4046 = vmatpush1.xpose.msra.mxu0 0.0
  %4047 = vmatprep.subr.mxu0 0.0
  %4048 = vmatpush1.xpose.msra.mxu0 0.0
  %4049 = vmatprep.subr.mxu0 0.0
  %4050 = vmatpush1.xpose.msra.mxu0 0.0
  %4051 = vmatprep.subr.mxu0 0.0
  %4052 = vmatpush1.xpose.msra.mxu0 0.0
  %4053 = vmatprep.subr.mxu0 0.0
  %4054 = vmatpush1.xpose.msra.mxu0 0.0
  %4055 = vmatprep.subr.mxu0 0.0
  %4056 = vmatpush1.xpose.msra.mxu0 0.0
  %4057 = vmatprep.subr.mxu0 0.0
  %4058 = vmatpush1.xpose.msra.mxu0 0.0
  %4059 = vmatprep.subr.mxu0 0.0
  %4060 = vmatpush1.xpose.msra.mxu0 0.0
  %4061 = vmatprep.subr.mxu0 0.0
  %4062 = vmatpush1.xpose.msra.mxu0 0.0
  %4063 = vmatprep.subr.mxu0 0.0
  %4064 = vmatpush1.xpose.msra.mxu0 0.0
  %4065 = vmatprep.subr.mxu0 0.0
  %4066 = vmatpush1.xpose.msra.mxu0 0.0
  %4067 = vmatprep.mubr.f32.mxu0 0.0
  %4068 = vmatmul.mubr.f32.gmra.mrb[0].mxu0 %v3998
  %v4069 = vpop.f32.mrb[0].mxu0
  %v4070 = vadd.f32 %v18, %v4069
  %v4071 = vpop.f32.mrb[0].mxu0
  %4072 = vdwg.mxu0
  %v4074 = vsel %vm27, %v3092, 0
  %v4077 = vsel %vm27, %v3392, 0
  %4079 = vmatprep.subr.mxu0 0.0
  %4080 = vmatpush1.xpose.msra.mxu0 %v4077
  %4081 = vmatprep.subr.mxu0 0.0
  %4082 = vmatpush1.xpose.msra.mxu0 0.0
  %4083 = vmatprep.subr.mxu0 0.0
  %4084 = vmatpush1.xpose.msra.mxu0 0.0
  %4085 = vmatprep.subr.mxu0 0.0
  %4086 = vmatpush1.xpose.msra.mxu0 0.0
  %4087 = vmatprep.subr.mxu0 0.0
  %4088 = vmatpush1.xpose.msra.mxu0 0.0
  %4089 = vmatprep.subr.mxu0 0.0
  %4090 = vmatpush1.xpose.msra.mxu0 0.0
  %4091 = vmatprep.subr.mxu0 0.0
  %4092 = vmatpush1.xpose.msra.mxu0 0.0
  %4093 = vmatprep.subr.mxu0 0.0
  %4094 = vmatpush1.xpose.msra.mxu0 0.0
  %4095 = vmatprep.subr.mxu0 0.0
  %4096 = vmatpush1.xpose.msra.mxu0 0.0
  %4097 = vmatprep.subr.mxu0 0.0
  %4098 = vmatpush1.xpose.msra.mxu0 0.0
  %4099 = vmatprep.subr.mxu0 0.0
  %4100 = vmatpush1.xpose.msra.mxu0 0.0
  %4101 = vmatprep.subr.mxu0 0.0
  %4102 = vmatpush1.xpose.msra.mxu0 0.0
  %4103 = vmatprep.subr.mxu0 0.0
  %4104 = vmatpush1.xpose.msra.mxu0 0.0
  %4105 = vmatprep.subr.mxu0 0.0
  %4106 = vmatpush1.xpose.msra.mxu0 0.0
  %4107 = vmatprep.subr.mxu0 0.0
  %4108 = vmatpush1.xpose.msra.mxu0 0.0
  %4109 = vmatprep.subr.mxu0 0.0
  %4110 = vmatpush1.xpose.msra.mxu0 0.0
  %4111 = vmatprep.subr.mxu0 0.0
  %4112 = vmatpush1.xpose.msra.mxu0 0.0
  %4113 = vmatprep.subr.mxu0 0.0
  %4114 = vmatpush1.xpose.msra.mxu0 0.0
  %4115 = vmatprep.subr.mxu0 0.0
  %4116 = vmatpush1.xpose.msra.mxu0 0.0
  %4117 = vmatprep.subr.mxu0 0.0
  %4118 = vmatpush1.xpose.msra.mxu0 0.0
  %4119 = vmatprep.subr.mxu0 0.0
  %4120 = vmatpush1.xpose.msra.mxu0 0.0
  %4121 = vmatprep.subr.mxu0 0.0
  %4122 = vmatpush1.xpose.msra.mxu0 0.0
  %4123 = vmatprep.subr.mxu0 0.0
  %4124 = vmatpush1.xpose.msra.mxu0 0.0
  %4125 = vmatprep.subr.mxu0 0.0
  %4126 = vmatpush1.xpose.msra.mxu0 0.0
  %4127 = vmatprep.subr.mxu0 0.0
  %4128 = vmatpush1.xpose.msra.mxu0 0.0
  %4129 = vmatprep.subr.mxu0 0.0
  %4130 = vmatpush1.xpose.msra.mxu0 0.0
  %4131 = vmatprep.subr.mxu0 0.0
  %4132 = vmatpush1.xpose.msra.mxu0 0.0
  %4133 = vmatprep.subr.mxu0 0.0
  %4134 = vmatpush1.xpose.msra.mxu0 0.0
  %4135 = vmatprep.subr.mxu0 0.0
  %4136 = vmatpush1.xpose.msra.mxu0 0.0
  %4137 = vmatprep.subr.mxu0 0.0
  %4138 = vmatpush1.xpose.msra.mxu0 0.0
  %4139 = vmatprep.subr.mxu0 0.0
  %4140 = vmatpush1.xpose.msra.mxu0 0.0
  %4141 = vmatprep.subr.mxu0 0.0
  %4142 = vmatpush1.xpose.msra.mxu0 0.0
  %4143 = vmatprep.mubr.f32.mxu0 0.0
  %4144 = vmatmul.mubr.f32.gmra.mrb[0].mxu0 %v4074
  %v4145 = vpop.f32.mrb[0].mxu0
  %v4146 = vadd.f32 %v19, %v4145
  %v4147 = vpop.f32.mrb[0].mxu0
  %4148 = vdwg.mxu0
  %v4150 = vsel %vm27, %v3162, 0
  %v4153 = vsel %vm27, %v3462, 0
  %4155 = vmatprep.subr.mxu0 0.0
  %4156 = vmatpush1.xpose.msra.mxu0 %v4153
  %4157 = vmatprep.subr.mxu0 0.0
  %4158 = vmatpush1.xpose.msra.mxu0 0.0
  %4159 = vmatprep.subr.mxu0 0.0
  %4160 = vmatpush1.xpose.msra.mxu0 0.0
  %4161 = vmatprep.subr.mxu0 0.0
  %4162 = vmatpush1.xpose.msra.mxu0 0.0
  %4163 = vmatprep.subr.mxu0 0.0
  %4164 = vmatpush1.xpose.msra.mxu0 0.0
  %4165 = vmatprep.subr.mxu0 0.0
  %4166 = vmatpush1.xpose.msra.mxu0 0.0
  %4167 = vmatprep.subr.mxu0 0.0
  %4168 = vmatpush1.xpose.msra.mxu0 0.0
  %4169 = vmatprep.subr.mxu0 0.0
  %4170 = vmatpush1.xpose.msra.mxu0 0.0
  %4171 = vmatprep.subr.mxu0 0.0
  %4172 = vmatpush1.xpose.msra.mxu0 0.0
  %4173 = vmatprep.subr.mxu0 0.0
  %4174 = vmatpush1.xpose.msra.mxu0 0.0
  %4175 = vmatprep.subr.mxu0 0.0
  %4176 = vmatpush1.xpose.msra.mxu0 0.0
  %4177 = vmatprep.subr.mxu0 0.0
  %4178 = vmatpush1.xpose.msra.mxu0 0.0
  %4179 = vmatprep.subr.mxu0 0.0
  %4180 = vmatpush1.xpose.msra.mxu0 0.0
  %4181 = vmatprep.subr.mxu0 0.0
  %4182 = vmatpush1.xpose.msra.mxu0 0.0
  %4183 = vmatprep.subr.mxu0 0.0
  %4184 = vmatpush1.xpose.msra.mxu0 0.0
  %4185 = vmatprep.subr.mxu0 0.0
  %4186 = vmatpush1.xpose.msra.mxu0 0.0
  %4187 = vmatprep.subr.mxu0 0.0
  %4188 = vmatpush1.xpose.msra.mxu0 0.0
  %4189 = vmatprep.subr.mxu0 0.0
  %4190 = vmatpush1.xpose.msra.mxu0 0.0
  %4191 = vmatprep.subr.mxu0 0.0
  %4192 = vmatpush1.xpose.msra.mxu0 0.0
  %4193 = vmatprep.subr.mxu0 0.0
  %4194 = vmatpush1.xpose.msra.mxu0 0.0
  %4195 = vmatprep.subr.mxu0 0.0
  %4196 = vmatpush1.xpose.msra.mxu0 0.0
  %4197 = vmatprep.subr.mxu0 0.0
  %4198 = vmatpush1.xpose.msra.mxu0 0.0
  %4199 = vmatprep.subr.mxu0 0.0
  %4200 = vmatpush1.xpose.msra.mxu0 0.0
  %4201 = vmatprep.subr.mxu0 0.0
  %4202 = vmatpush1.xpose.msra.mxu0 0.0
  %4203 = vmatprep.subr.mxu0 0.0
  %4204 = vmatpush1.xpose.msra.mxu0 0.0
  %4205 = vmatprep.subr.mxu0 0.0
  %4206 = vmatpush1.xpose.msra.mxu0 0.0
  %4207 = vmatprep.subr.mxu0 0.0
  %4208 = vmatpush1.xpose.msra.mxu0 0.0
  %4209 = vmatprep.subr.mxu0 0.0
  %4210 = vmatpush1.xpose.msra.mxu0 0.0
  %4211 = vmatprep.subr.mxu0 0.0
  %4212 = vmatpush1.xpose.msra.mxu0 0.0
  %4213 = vmatprep.subr.mxu0 0.0
  %4214 = vmatpush1.xpose.msra.mxu0 0.0
  %4215 = vmatprep.subr.mxu0 0.0
  %4216 = vmatpush1.xpose.msra.mxu0 0.0
  %4217 = vmatprep.subr.mxu0 0.0
  %4218 = vmatpush1.xpose.msra.mxu0 0.0
  %4219 = vmatprep.mubr.f32.mxu0 0.0
  %4220 = vmatmul.mubr.f32.gmra.mrb[0].mxu0 %v4150
  %v4221 = vpop.f32.mrb[0].mxu0
  %v4222 = vadd.f32 %v20, %v4221
  %v4223 = vpop.f32.mrb[0].mxu0
  %4224 = vdwg.mxu0
  %v4226 = vsel %vm27, %v3167, 0
  %v4229 = vsel %vm27, %v3467, 0
  %4231 = vmatprep.subr.mxu0 0.0
  %4232 = vmatpush1.xpose.msra.mxu0 %v4229
  %4233 = vmatprep.subr.mxu0 0.0
  %4234 = vmatpush1.xpose.msra.mxu0 0.0
  %4235 = vmatprep.subr.mxu0 0.0
  %4236 = vmatpush1.xpose.msra.mxu0 0.0
  %4237 = vmatprep.subr.mxu0 0.0
  %4238 = vmatpush1.xpose.msra.mxu0 0.0
  %4239 = vmatprep.subr.mxu0 0.0
  %4240 = vmatpush1.xpose.msra.mxu0 0.0
  %4241 = vmatprep.subr.mxu0 0.0
  %4242 = vmatpush1.xpose.msra.mxu0 0.0
  %4243 = vmatprep.subr.mxu0 0.0
  %4244 = vmatpush1.xpose.msra.mxu0 0.0
  %4245 = vmatprep.subr.mxu0 0.0
  %4246 = vmatpush1.xpose.msra.mxu0 0.0
  %4247 = vmatprep.subr.mxu0 0.0
  %4248 = vmatpush1.xpose.msra.mxu0 0.0
  %4249 = vmatprep.subr.mxu0 0.0
  %4250 = vmatpush1.xpose.msra.mxu0 0.0
  %4251 = vmatprep.subr.mxu0 0.0
  %4252 = vmatpush1.xpose.msra.mxu0 0.0
  %4253 = vmatprep.subr.mxu0 0.0
  %4254 = vmatpush1.xpose.msra.mxu0 0.0
  %4255 = vmatprep.subr.mxu0 0.0
  %4256 = vmatpush1.xpose.msra.mxu0 0.0
  %4257 = vmatprep.subr.mxu0 0.0
  %4258 = vmatpush1.xpose.msra.mxu0 0.0
  %4259 = vmatprep.subr.mxu0 0.0
  %4260 = vmatpush1.xpose.msra.mxu0 0.0
  %4261 = vmatprep.subr.mxu0 0.0
  %4262 = vmatpush1.xpose.msra.mxu0 0.0
  %4263 = vmatprep.subr.mxu0 0.0
  %4264 = vmatpush1.xpose.msra.mxu0 0.0
  %4265 = vmatprep.subr.mxu0 0.0
  %4266 = vmatpush1.xpose.msra.mxu0 0.0
  %4267 = vmatprep.subr.mxu0 0.0
  %4268 = vmatpush1.xpose.msra.mxu0 0.0
  %4269 = vmatprep.subr.mxu0 0.0
  %4270 = vmatpush1.xpose.msra.mxu0 0.0
  %4271 = vmatprep.subr.mxu0 0.0
  %4272 = vmatpush1.xpose.msra.mxu0 0.0
  %4273 = vmatprep.subr.mxu0 0.0
  %4274 = vmatpush1.xpose.msra.mxu0 0.0
  %4275 = vmatprep.subr.mxu0 0.0
  %4276 = vmatpush1.xpose.msra.mxu0 0.0
  %4277 = vmatprep.subr.mxu0 0.0
  %4278 = vmatpush1.xpose.msra.mxu0 0.0
  %4279 = vmatprep.subr.mxu0 0.0
  %4280 = vmatpush1.xpose.msra.mxu0 0.0
  %4281 = vmatprep.subr.mxu0 0.0
  %4282 = vmatpush1.xpose.msra.mxu0 0.0
  %4283 = vmatprep.subr.mxu0 0.0
  %4284 = vmatpush1.xpose.msra.mxu0 0.0
  %4285 = vmatprep.subr.mxu0 0.0
  %4286 = vmatpush1.xpose.msra.mxu0 0.0
  %4287 = vmatprep.subr.mxu0 0.0
  %4288 = vmatpush1.xpose.msra.mxu0 0.0
  %4289 = vmatprep.subr.mxu0 0.0
  %4290 = vmatpush1.xpose.msra.mxu0 0.0
  %4291 = vmatprep.subr.mxu0 0.0
  %4292 = vmatpush1.xpose.msra.mxu0 0.0
  %4293 = vmatprep.subr.mxu0 0.0
  %4294 = vmatpush1.xpose.msra.mxu0 0.0
  %4295 = vmatprep.mubr.f32.mxu0 0.0
  %4296 = vmatmul.mubr.f32.gmra.mrb[0].mxu0 %v4226
  %v4297 = vpop.f32.mrb[0].mxu0
  %v4298 = vadd.f32 %v21, %v4297
  %v4299 = vpop.f32.mrb[0].mxu0
  %4300 = vdwg.mxu0
  %v4302 = vsel %vm27, %v3237, 0
  %v4305 = vsel %vm27, %v3537, 0
  %4307 = vmatprep.subr.mxu0 0.0
  %4308 = vmatpush1.xpose.msra.mxu0 %v4305
  %4309 = vmatprep.subr.mxu0 0.0
  %4310 = vmatpush1.xpose.msra.mxu0 0.0
  %4311 = vmatprep.subr.mxu0 0.0
  %4312 = vmatpush1.xpose.msra.mxu0 0.0
  %4313 = vmatprep.subr.mxu0 0.0
  %4314 = vmatpush1.xpose.msra.mxu0 0.0
  %4315 = vmatprep.subr.mxu0 0.0
  %4316 = vmatpush1.xpose.msra.mxu0 0.0
  %4317 = vmatprep.subr.mxu0 0.0
  %4318 = vmatpush1.xpose.msra.mxu0 0.0
  %4319 = vmatprep.subr.mxu0 0.0
  %4320 = vmatpush1.xpose.msra.mxu0 0.0
  %4321 = vmatprep.subr.mxu0 0.0
  %4322 = vmatpush1.xpose.msra.mxu0 0.0
  %4323 = vmatprep.subr.mxu0 0.0
  %4324 = vmatpush1.xpose.msra.mxu0 0.0
  %4325 = vmatprep.subr.mxu0 0.0
  %4326 = vmatpush1.xpose.msra.mxu0 0.0
  %4327 = vmatprep.subr.mxu0 0.0
  %4328 = vmatpush1.xpose.msra.mxu0 0.0
  %4329 = vmatprep.subr.mxu0 0.0
  %4330 = vmatpush1.xpose.msra.mxu0 0.0
  %4331 = vmatprep.subr.mxu0 0.0
  %4332 = vmatpush1.xpose.msra.mxu0 0.0
  %4333 = vmatprep.subr.mxu0 0.0
  %4334 = vmatpush1.xpose.msra.mxu0 0.0
  %4335 = vmatprep.subr.mxu0 0.0
  %4336 = vmatpush1.xpose.msra.mxu0 0.0
  %4337 = vmatprep.subr.mxu0 0.0
  %4338 = vmatpush1.xpose.msra.mxu0 0.0
  %4339 = vmatprep.subr.mxu0 0.0
  %4340 = vmatpush1.xpose.msra.mxu0 0.0
  %4341 = vmatprep.subr.mxu0 0.0
  %4342 = vmatpush1.xpose.msra.mxu0 0.0
  %4343 = vmatprep.subr.mxu0 0.0
  %4344 = vmatpush1.xpose.msra.mxu0 0.0
  %4345 = vmatprep.subr.mxu0 0.0
  %4346 = vmatpush1.xpose.msra.mxu0 0.0
  %4347 = vmatprep.subr.mxu0 0.0
  %4348 = vmatpush1.xpose.msra.mxu0 0.0
  %4349 = vmatprep.subr.mxu0 0.0
  %4350 = vmatpush1.xpose.msra.mxu0 0.0
  %4351 = vmatprep.subr.mxu0 0.0
  %4352 = vmatpush1.xpose.msra.mxu0 0.0
  %4353 = vmatprep.subr.mxu0 0.0
  %4354 = vmatpush1.xpose.msra.mxu0 0.0
  %4355 = vmatprep.subr.mxu0 0.0
  %4356 = vmatpush1.xpose.msra.mxu0 0.0
  %4357 = vmatprep.subr.mxu0 0.0
  %4358 = vmatpush1.xpose.msra.mxu0 0.0
  %4359 = vmatprep.subr.mxu0 0.0
  %4360 = vmatpush1.xpose.msra.mxu0 0.0
  %4361 = vmatprep.subr.mxu0 0.0
  %4362 = vmatpush1.xpose.msra.mxu0 0.0
  %4363 = vmatprep.subr.mxu0 0.0
  %4364 = vmatpush1.xpose.msra.mxu0 0.0
  %4365 = vmatprep.subr.mxu0 0.0
  %4366 = vmatpush1.xpose.msra.mxu0 0.0
  %4367 = vmatprep.subr.mxu0 0.0
  %4368 = vmatpush1.xpose.msra.mxu0 0.0
  %4369 = vmatprep.subr.mxu0 0.0
  %4370 = vmatpush1.xpose.msra.mxu0 0.0
  %4371 = vmatprep.mubr.f32.mxu0 0.0
  %4372 = vmatmul.mubr.f32.gmra.mrb[0].mxu0 %v4302
  %v4373 = vpop.f32.mrb[0].mxu0
  %v4374 = vadd.f32 %v22, %v4373
  %v4375 = vpop.f32.mrb[0].mxu0
  %4376 = vdwg.mxu0
  %v4378 = vsel %vm27, %v3242, 0
  %v4381 = vsel %vm27, %v3542, 0
  %4383 = vmatprep.subr.mxu0 0.0
  %4384 = vmatpush1.xpose.msra.mxu0 %v4381
  %4385 = vmatprep.subr.mxu0 0.0
  %4386 = vmatpush1.xpose.msra.mxu0 0.0
  %4387 = vmatprep.subr.mxu0 0.0
  %4388 = vmatpush1.xpose.msra.mxu0 0.0
  %4389 = vmatprep.subr.mxu0 0.0
  %4390 = vmatpush1.xpose.msra.mxu0 0.0
  %4391 = vmatprep.subr.mxu0 0.0
  %4392 = vmatpush1.xpose.msra.mxu0 0.0
  %4393 = vmatprep.subr.mxu0 0.0
  %4394 = vmatpush1.xpose.msra.mxu0 0.0
  %4395 = vmatprep.subr.mxu0 0.0
  %4396 = vmatpush1.xpose.msra.mxu0 0.0
  %4397 = vmatprep.subr.mxu0 0.0
  %4398 = vmatpush1.xpose.msra.mxu0 0.0
  %4399 = vmatprep.subr.mxu0 0.0
  %4400 = vmatpush1.xpose.msra.mxu0 0.0
  %4401 = vmatprep.subr.mxu0 0.0
  %4402 = vmatpush1.xpose.msra.mxu0 0.0
  %4403 = vmatprep.subr.mxu0 0.0
  %4404 = vmatpush1.xpose.msra.mxu0 0.0
  %4405 = vmatprep.subr.mxu0 0.0
  %4406 = vmatpush1.xpose.msra.mxu0 0.0
  %4407 = vmatprep.subr.mxu0 0.0
  %4408 = vmatpush1.xpose.msra.mxu0 0.0
  %4409 = vmatprep.subr.mxu0 0.0
  %4410 = vmatpush1.xpose.msra.mxu0 0.0
  %4411 = vmatprep.subr.mxu0 0.0
  %4412 = vmatpush1.xpose.msra.mxu0 0.0
  %4413 = vmatprep.subr.mxu0 0.0
  %4414 = vmatpush1.xpose.msra.mxu0 0.0
  %4415 = vmatprep.subr.mxu0 0.0
  %4416 = vmatpush1.xpose.msra.mxu0 0.0
  %4417 = vmatprep.subr.mxu0 0.0
  %4418 = vmatpush1.xpose.msra.mxu0 0.0
  %4419 = vmatprep.subr.mxu0 0.0
  %4420 = vmatpush1.xpose.msra.mxu0 0.0
  %4421 = vmatprep.subr.mxu0 0.0
  %4422 = vmatpush1.xpose.msra.mxu0 0.0
  %4423 = vmatprep.subr.mxu0 0.0
  %4424 = vmatpush1.xpose.msra.mxu0 0.0
  %4425 = vmatprep.subr.mxu0 0.0
  %4426 = vmatpush1.xpose.msra.mxu0 0.0
  %4427 = vmatprep.subr.mxu0 0.0
  %4428 = vmatpush1.xpose.msra.mxu0 0.0
  %4429 = vmatprep.subr.mxu0 0.0
  %4430 = vmatpush1.xpose.msra.mxu0 0.0
  %4431 = vmatprep.subr.mxu0 0.0
  %4432 = vmatpush1.xpose.msra.mxu0 0.0
  %4433 = vmatprep.subr.mxu0 0.0
  %4434 = vmatpush1.xpose.msra.mxu0 0.0
  %4435 = vmatprep.subr.mxu0 0.0
  %4436 = vmatpush1.xpose.msra.mxu0 0.0
  %4437 = vmatprep.subr.mxu0 0.0
  %4438 = vmatpush1.xpose.msra.mxu0 0.0
  %4439 = vmatprep.subr.mxu0 0.0
  %4440 = vmatpush1.xpose.msra.mxu0 0.0
  %4441 = vmatprep.subr.mxu0 0.0
  %4442 = vmatpush1.xpose.msra.mxu0 0.0
  %4443 = vmatprep.subr.mxu0 0.0
  %4444 = vmatpush1.xpose.msra.mxu0 0.0
  %4445 = vmatprep.subr.mxu0 0.0
  %4446 = vmatpush1.xpose.msra.mxu0 0.0
  %4447 = vmatprep.mubr.f32.mxu0 0.0
  %4448 = vmatmul.mubr.f32.gmra.mrb[0].mxu0 %v4378
  %v4449 = vpop.f32.mrb[0].mxu0
  %v4450 = vadd.f32 %v23, %v4449
  %v4451 = vpop.f32.mrb[0].mxu0
  %4452 = vdwg.mxu0
  %v4453 = vsel %vm1611, %v3918, -inf
  %4454 = vmax.xlane.f32.xlu0 %v4453
  %v4455 = vpop.xlane.xlu0 %4454
  %v4456 = vsel %vm1611, %v3994, -inf
  %4457 = vmax.xlane.f32.xlu0 %v4456
  %v4458 = vpop.xlane.xlu0 %4457
  %v4459 = vsel %vm1611, %v4070, -inf
  %4460 = vmax.xlane.f32.xlu0 %v4459
  %v4461 = vpop.xlane.xlu0 %4460
  %v4462 = vsel %vm1611, %v4146, -inf
  %4463 = vmax.xlane.f32.xlu0 %v4462
  %v4464 = vpop.xlane.xlu0 %4463
  %v4465 = vsel %vm1611, %v4222, -inf
  %4466 = vmax.xlane.f32.xlu0 %v4465
  %v4467 = vpop.xlane.xlu0 %4466
  %v4468 = vsel %vm1611, %v4298, -inf
  %4469 = vmax.xlane.f32.xlu0 %v4468
  %v4470 = vpop.xlane.xlu0 %4469
  %v4471 = vsel %vm1611, %v4374, -inf
  %4472 = vmax.xlane.f32.xlu0 %v4471
  %v4473 = vpop.xlane.xlu0 %4472
  %v4474 = vsel %vm1611, %v4450, -inf
  %4475 = vmax.xlane.f32.xlu0 %v4474
  %v4476 = vpop.xlane.xlu0 %4475
  %v4477 = vsub.f32 %v3918, %v4455
  %v4478 = vsub.f32 %v3994, %v4458
  %v4479 = vsub.f32 %v4070, %v4461
  %v4480 = vsub.f32 %v4146, %v4464
  %v4481 = vsub.f32 %v4222, %v4467
  %v4482 = vsub.f32 %v4298, %v4470
  %v4483 = vsub.f32 %v4374, %v4473
  %v4484 = vsub.f32 %v4450, %v4476
  %v4485 = vmul.f32 %v4477, 1.442695
  %v4486 = vpow.pop %v4485
  %v4487 = vmul.f32 %v4478, 1.442695
  %v4488 = vpow.pop %v4487
  %v4489 = vmul.f32 %v4479, 1.442695
  %v4490 = vpow.pop %v4489
  %v4491 = vmul.f32 %v4480, 1.442695
  %v4492 = vpow.pop %v4491
  %v4493 = vmul.f32 %v4481, 1.442695
  %v4494 = vpow.pop %v4493
  %v4495 = vmul.f32 %v4482, 1.442695
  %v4496 = vpow.pop %v4495
  %v4497 = vmul.f32 %v4483, 1.442695
  %v4498 = vpow.pop %v4497
  %v4499 = vmul.f32 %v4484, 1.442695
  %v4500 = vpow.pop %v4499
  %v4501 = vsel %vm1611, %v4486, 0.0
  %4502 = vadd.xlane.f32.xlu0 %v4501
  %v4503 = vpop.xlane.xlu0 %4502
  %v4504 = vsel %vm1611, %v4488, 0.0
  %4505 = vadd.xlane.f32.xlu0 %v4504
  %v4506 = vpop.xlane.xlu0 %4505
  %v4507 = vsel %vm1611, %v4490, 0.0
  %4508 = vadd.xlane.f32.xlu0 %v4507
  %v4509 = vpop.xlane.xlu0 %4508
  %v4510 = vsel %vm1611, %v4492, 0.0
  %4511 = vadd.xlane.f32.xlu0 %v4510
  %v4512 = vpop.xlane.xlu0 %4511
  %v4513 = vsel %vm1611, %v4494, 0.0
  %4514 = vadd.xlane.f32.xlu0 %v4513
  %v4515 = vpop.xlane.xlu0 %4514
  %v4516 = vsel %vm1611, %v4496, 0.0
  %4517 = vadd.xlane.f32.xlu0 %v4516
  %v4518 = vpop.xlane.xlu0 %4517
  %v4519 = vsel %vm1611, %v4498, 0.0
  %4520 = vadd.xlane.f32.xlu0 %v4519
  %v4521 = vpop.xlane.xlu0 %4520
  %v4522 = vsel %vm1611, %v4500, 0.0
  %4523 = vadd.xlane.f32.xlu0 %v4522
  %v4524 = vpop.xlane.xlu0 %4523
  %v4525 = vrcp.pop %v4503
  %v4526 = vrcp.pop %v4506
  %v4527 = vrcp.pop %v4509
  %v4528 = vrcp.pop %v4512
  %v4529 = vrcp.pop %v4515
  %v4530 = vrcp.pop %v4518
  %v4531 = vrcp.pop %v4521
  %v4532 = vrcp.pop %v4524
  %v4533 = vmul.f32 %v4486, %v4525
  %v4534 = vmul.f32 %v4488, %v4526
  %v4535 = vmul.f32 %v4490, %v4527
  %v4536 = vmul.f32 %v4492, %v4528
  %v4537 = vmul.f32 %v4494, %v4529
  %v4538 = vmul.f32 %v4496, %v4530
  %v4539 = vmul.f32 %v4498, %v4531
  %v4540 = vmul.f32 %v4500, %v4532
  %v4542 = vsel %vm1611, %v4533, 0
  %4544 = vmatprep.subr.mxu0 0.0
  %4545 = vmatpush1.msra.mxu0 %v3612
  %4546 = vmatprep.subr.mxu0 0.0
  %4547 = vmatpush1.msra.mxu0 0.0
  %4548 = vmatprep.subr.mxu0 0.0
  %4549 = vmatpush1.msra.mxu0 0.0
  %4550 = vmatprep.subr.mxu0 0.0
  %4551 = vmatpush1.msra.mxu0 0.0
  %4552 = vmatprep.subr.mxu0 0.0
  %4553 = vmatpush1.msra.mxu0 0.0
  %4554 = vmatprep.subr.mxu0 0.0
  %4555 = vmatpush1.msra.mxu0 0.0
  %4556 = vmatprep.subr.mxu0 0.0
  %4557 = vmatpush1.msra.mxu0 0.0
  %4558 = vmatprep.subr.mxu0 0.0
  %4559 = vmatpush1.msra.mxu0 0.0
  %4560 = vmatprep.subr.mxu0 0.0
  %4561 = vmatpush1.msra.mxu0 0.0
  %4562 = vmatprep.subr.mxu0 0.0
  %4563 = vmatpush1.msra.mxu0 0.0
  %4564 = vmatprep.subr.mxu0 0.0
  %4565 = vmatpush1.msra.mxu0 0.0
  %4566 = vmatprep.subr.mxu0 0.0
  %4567 = vmatpush1.msra.mxu0 0.0
  %4568 = vmatprep.subr.mxu0 0.0
  %4569 = vmatpush1.msra.mxu0 0.0
  %4570 = vmatprep.subr.mxu0 0.0
  %4571 = vmatpush1.msra.mxu0 0.0
  %4572 = vmatprep.subr.mxu0 0.0
  %4573 = vmatpush1.msra.mxu0 0.0
  %4574 = vmatprep.subr.mxu0 0.0
  %4575 = vmatpush1.msra.mxu0 0.0
  %4576 = vmatprep.subr.mxu0 0.0
  %4577 = vmatpush1.msra.mxu0 0.0
  %4578 = vmatprep.subr.mxu0 0.0
  %4579 = vmatpush1.msra.mxu0 0.0
  %4580 = vmatprep.subr.mxu0 0.0
  %4581 = vmatpush1.msra.mxu0 0.0
  %4582 = vmatprep.subr.mxu0 0.0
  %4583 = vmatpush1.msra.mxu0 0.0
  %4584 = vmatprep.subr.mxu0 0.0
  %4585 = vmatpush1.msra.mxu0 0.0
  %4586 = vmatprep.subr.mxu0 0.0
  %4587 = vmatpush1.msra.mxu0 0.0
  %4588 = vmatprep.subr.mxu0 0.0
  %4589 = vmatpush1.msra.mxu0 0.0
  %4590 = vmatprep.subr.mxu0 0.0
  %4591 = vmatpush1.msra.mxu0 0.0
  %4592 = vmatprep.subr.mxu0 0.0
  %4593 = vmatpush1.msra.mxu0 0.0
  %4594 = vmatprep.subr.mxu0 0.0
  %4595 = vmatpush1.msra.mxu0 0.0
  %4596 = vmatprep.subr.mxu0 0.0
  %4597 = vmatpush1.msra.mxu0 0.0
  %4598 = vmatprep.subr.mxu0 0.0
  %4599 = vmatpush1.msra.mxu0 0.0
  %4600 = vmatprep.subr.mxu0 0.0
  %4601 = vmatpush1.msra.mxu0 0.0
  %4602 = vmatprep.subr.mxu0 0.0
  %4603 = vmatpush1.msra.mxu0 0.0
  %4604 = vmatprep.subr.mxu0 0.0
  %4605 = vmatpush1.msra.mxu0 0.0
  %4606 = vmatprep.subr.mxu0 0.0
  %4607 = vmatpush1.msra.mxu0 0.0
  %4608 = vmatprep.mubr.f32.mxu0 0.0
  %4609 = vmatmul.mubr.f32.gmra.mrb[0].mxu0 %v4542
  %v4610 = vpop.f32.mrb[0].mxu0
  %v4611 = vadd.f32 0.0, %v4610
  %v4612 = vpop.f32.mrb[0].mxu0
  %4613 = vdwg.mxu0
  %v4615 = vsel %vm1611, %v4534, 0
  %4617 = vmatprep.subr.mxu0 0.0
  %4618 = vmatpush1.msra.mxu0 %v3617
  %4619 = vmatprep.subr.mxu0 0.0
  %4620 = vmatpush1.msra.mxu0 0.0
  %4621 = vmatprep.subr.mxu0 0.0
  %4622 = vmatpush1.msra.mxu0 0.0
  %4623 = vmatprep.subr.mxu0 0.0
  %4624 = vmatpush1.msra.mxu0 0.0
  %4625 = vmatprep.subr.mxu0 0.0
  %4626 = vmatpush1.msra.mxu0 0.0
  %4627 = vmatprep.subr.mxu0 0.0
  %4628 = vmatpush1.msra.mxu0 0.0
  %4629 = vmatprep.subr.mxu0 0.0
  %4630 = vmatpush1.msra.mxu0 0.0
  %4631 = vmatprep.subr.mxu0 0.0
  %4632 = vmatpush1.msra.mxu0 0.0
  %4633 = vmatprep.subr.mxu0 0.0
  %4634 = vmatpush1.msra.mxu0 0.0
  %4635 = vmatprep.subr.mxu0 0.0
  %4636 = vmatpush1.msra.mxu0 0.0
  %4637 = vmatprep.subr.mxu0 0.0
  %4638 = vmatpush1.msra.mxu0 0.0
  %4639 = vmatprep.subr.mxu0 0.0
  %4640 = vmatpush1.msra.mxu0 0.0
  %4641 = vmatprep.subr.mxu0 0.0
  %4642 = vmatpush1.msra.mxu0 0.0
  %4643 = vmatprep.subr.mxu0 0.0
  %4644 = vmatpush1.msra.mxu0 0.0
  %4645 = vmatprep.subr.mxu0 0.0
  %4646 = vmatpush1.msra.mxu0 0.0
  %4647 = vmatprep.subr.mxu0 0.0
  %4648 = vmatpush1.msra.mxu0 0.0
  %4649 = vmatprep.subr.mxu0 0.0
  %4650 = vmatpush1.msra.mxu0 0.0
  %4651 = vmatprep.subr.mxu0 0.0
  %4652 = vmatpush1.msra.mxu0 0.0
  %4653 = vmatprep.subr.mxu0 0.0
  %4654 = vmatpush1.msra.mxu0 0.0
  %4655 = vmatprep.subr.mxu0 0.0
  %4656 = vmatpush1.msra.mxu0 0.0
  %4657 = vmatprep.subr.mxu0 0.0
  %4658 = vmatpush1.msra.mxu0 0.0
  %4659 = vmatprep.subr.mxu0 0.0
  %4660 = vmatpush1.msra.mxu0 0.0
  %4661 = vmatprep.subr.mxu0 0.0
  %4662 = vmatpush1.msra.mxu0 0.0
  %4663 = vmatprep.subr.mxu0 0.0
  %4664 = vmatpush1.msra.mxu0 0.0
  %4665 = vmatprep.subr.mxu0 0.0
  %4666 = vmatpush1.msra.mxu0 0.0
  %4667 = vmatprep.subr.mxu0 0.0
  %4668 = vmatpush1.msra.mxu0 0.0
  %4669 = vmatprep.subr.mxu0 0.0
  %4670 = vmatpush1.msra.mxu0 0.0
  %4671 = vmatprep.subr.mxu0 0.0
  %4672 = vmatpush1.msra.mxu0 0.0
  %4673 = vmatprep.subr.mxu0 0.0
  %4674 = vmatpush1.msra.mxu0 0.0
  %4675 = vmatprep.subr.mxu0 0.0
  %4676 = vmatpush1.msra.mxu0 0.0
  %4677 = vmatprep.subr.mxu0 0.0
  %4678 = vmatpush1.msra.mxu0 0.0
  %4679 = vmatprep.subr.mxu0 0.0
  %4680 = vmatpush1.msra.mxu0 0.0
  %4681 = vmatprep.mubr.f32.mxu0 0.0
  %4682 = vmatmul.mubr.f32.gmra.mrb[0].mxu0 %v4615
  %v4683 = vpop.f32.mrb[0].mxu0
  %v4684 = vadd.f32 0.0, %v4683
  %v4685 = vpop.f32.mrb[0].mxu0
  %4686 = vdwg.mxu0
  %v4688 = vsel %vm1611, %v4535, 0
  %4690 = vmatprep.subr.mxu0 0.0
  %4691 = vmatpush1.msra.mxu0 %v3687
  %4692 = vmatprep.subr.mxu0 0.0
  %4693 = vmatpush1.msra.mxu0 0.0
  %4694 = vmatprep.subr.mxu0 0.0
  %4695 = vmatpush1.msra.mxu0 0.0
  %4696 = vmatprep.subr.mxu0 0.0
  %4697 = vmatpush1.msra.mxu0 0.0
  %4698 = vmatprep.subr.mxu0 0.0
  %4699 = vmatpush1.msra.mxu0 0.0
  %4700 = vmatprep.subr.mxu0 0.0
  %4701 = vmatpush1.msra.mxu0 0.0
  %4702 = vmatprep.subr.mxu0 0.0
  %4703 = vmatpush1.msra.mxu0 0.0
  %4704 = vmatprep.subr.mxu0 0.0
  %4705 = vmatpush1.msra.mxu0 0.0
  %4706 = vmatprep.subr.mxu0 0.0
  %4707 = vmatpush1.msra.mxu0 0.0
  %4708 = vmatprep.subr.mxu0 0.0
  %4709 = vmatpush1.msra.mxu0 0.0
  %4710 = vmatprep.subr.mxu0 0.0
  %4711 = vmatpush1.msra.mxu0 0.0
  %4712 = vmatprep.subr.mxu0 0.0
  %4713 = vmatpush1.msra.mxu0 0.0
  %4714 = vmatprep.subr.mxu0 0.0
  %4715 = vmatpush1.msra.mxu0 0.0
  %4716 = vmatprep.subr.mxu0 0.0
  %4717 = vmatpush1.msra.mxu0 0.0
  %4718 = vmatprep.subr.mxu0 0.0
  %4719 = vmatpush1.msra.mxu0 0.0
  %4720 = vmatprep.subr.mxu0 0.0
  %4721 = vmatpush1.msra.mxu0 0.0
  %4722 = vmatprep.subr.mxu0 0.0
  %4723 = vmatpush1.msra.mxu0 0.0
  %4724 = vmatprep.subr.mxu0 0.0
  %4725 = vmatpush1.msra.mxu0 0.0
  %4726 = vmatprep.subr.mxu0 0.0
  %4727 = vmatpush1.msra.mxu0 0.0
  %4728 = vmatprep.subr.mxu0 0.0
  %4729 = vmatpush1.msra.mxu0 0.0
  %4730 = vmatprep.subr.mxu0 0.0
  %4731 = vmatpush1.msra.mxu0 0.0
  %4732 = vmatprep.subr.mxu0 0.0
  %4733 = vmatpush1.msra.mxu0 0.0
  %4734 = vmatprep.subr.mxu0 0.0
  %4735 = vmatpush1.msra.mxu0 0.0
  %4736 = vmatprep.subr.mxu0 0.0
  %4737 = vmatpush1.msra.mxu0 0.0
  %4738 = vmatprep.subr.mxu0 0.0
  %4739 = vmatpush1.msra.mxu0 0.0
  %4740 = vmatprep.subr.mxu0 0.0
  %4741 = vmatpush1.msra.mxu0 0.0
  %4742 = vmatprep.subr.mxu0 0.0
  %4743 = vmatpush1.msra.mxu0 0.0
  %4744 = vmatprep.subr.mxu0 0.0
  %4745 = vmatpush1.msra.mxu0 0.0
  %4746 = vmatprep.subr.mxu0 0.0
  %4747 = vmatpush1.msra.mxu0 0.0
  %4748 = vmatprep.subr.mxu0 0.0
  %4749 = vmatpush1.msra.mxu0 0.0
  %4750 = vmatprep.subr.mxu0 0.0
  %4751 = vmatpush1.msra.mxu0 0.0
  %4752 = vmatprep.subr.mxu0 0.0
  %4753 = vmatpush1.msra.mxu0 0.0
  %4754 = vmatprep.mubr.f32.mxu0 0.0
  %4755 = vmatmul.mubr.f32.gmra.mrb[0].mxu0 %v4688
  %v4756 = vpop.f32.mrb[0].mxu0
  %v4757 = vadd.f32 0.0, %v4756
  %v4758 = vpop.f32.mrb[0].mxu0
  %4759 = vdwg.mxu0
  %v4761 = vsel %vm1611, %v4536, 0
  %4763 = vmatprep.subr.mxu0 0.0
  %4764 = vmatpush1.msra.mxu0 %v3692
  %4765 = vmatprep.subr.mxu0 0.0
  %4766 = vmatpush1.msra.mxu0 0.0
  %4767 = vmatprep.subr.mxu0 0.0
  %4768 = vmatpush1.msra.mxu0 0.0
  %4769 = vmatprep.subr.mxu0 0.0
  %4770 = vmatpush1.msra.mxu0 0.0
  %4771 = vmatprep.subr.mxu0 0.0
  %4772 = vmatpush1.msra.mxu0 0.0
  %4773 = vmatprep.subr.mxu0 0.0
  %4774 = vmatpush1.msra.mxu0 0.0
  %4775 = vmatprep.subr.mxu0 0.0
  %4776 = vmatpush1.msra.mxu0 0.0
  %4777 = vmatprep.subr.mxu0 0.0
  %4778 = vmatpush1.msra.mxu0 0.0
  %4779 = vmatprep.subr.mxu0 0.0
  %4780 = vmatpush1.msra.mxu0 0.0
  %4781 = vmatprep.subr.mxu0 0.0
  %4782 = vmatpush1.msra.mxu0 0.0
  %4783 = vmatprep.subr.mxu0 0.0
  %4784 = vmatpush1.msra.mxu0 0.0
  %4785 = vmatprep.subr.mxu0 0.0
  %4786 = vmatpush1.msra.mxu0 0.0
  %4787 = vmatprep.subr.mxu0 0.0
  %4788 = vmatpush1.msra.mxu0 0.0
  %4789 = vmatprep.subr.mxu0 0.0
  %4790 = vmatpush1.msra.mxu0 0.0
  %4791 = vmatprep.subr.mxu0 0.0
  %4792 = vmatpush1.msra.mxu0 0.0
  %4793 = vmatprep.subr.mxu0 0.0
  %4794 = vmatpush1.msra.mxu0 0.0
  %4795 = vmatprep.subr.mxu0 0.0
  %4796 = vmatpush1.msra.mxu0 0.0
  %4797 = vmatprep.subr.mxu0 0.0
  %4798 = vmatpush1.msra.mxu0 0.0
  %4799 = vmatprep.subr.mxu0 0.0
  %4800 = vmatpush1.msra.mxu0 0.0
  %4801 = vmatprep.subr.mxu0 0.0
  %4802 = vmatpush1.msra.mxu0 0.0
  %4803 = vmatprep.subr.mxu0 0.0
  %4804 = vmatpush1.msra.mxu0 0.0
  %4805 = vmatprep.subr.mxu0 0.0
  %4806 = vmatpush1.msra.mxu0 0.0
  %4807 = vmatprep.subr.mxu0 0.0
  %4808 = vmatpush1.msra.mxu0 0.0
  %4809 = vmatprep.subr.mxu0 0.0
  %4810 = vmatpush1.msra.mxu0 0.0
  %4811 = vmatprep.subr.mxu0 0.0
  %4812 = vmatpush1.msra.mxu0 0.0
  %4813 = vmatprep.subr.mxu0 0.0
  %4814 = vmatpush1.msra.mxu0 0.0
  %4815 = vmatprep.subr.mxu0 0.0
  %4816 = vmatpush1.msra.mxu0 0.0
  %4817 = vmatprep.subr.mxu0 0.0
  %4818 = vmatpush1.msra.mxu0 0.0
  %4819 = vmatprep.subr.mxu0 0.0
  %4820 = vmatpush1.msra.mxu0 0.0
  %4821 = vmatprep.subr.mxu0 0.0
  %4822 = vmatpush1.msra.mxu0 0.0
  %4823 = vmatprep.subr.mxu0 0.0
  %4824 = vmatpush1.msra.mxu0 0.0
  %4825 = vmatprep.subr.mxu0 0.0
  %4826 = vmatpush1.msra.mxu0 0.0
  %4827 = vmatprep.mubr.f32.mxu0 0.0
  %4828 = vmatmul.mubr.f32.gmra.mrb[0].mxu0 %v4761
  %v4829 = vpop.f32.mrb[0].mxu0
  %v4830 = vadd.f32 0.0, %v4829
  %v4831 = vpop.f32.mrb[0].mxu0
  %4832 = vdwg.mxu0
  %v4834 = vsel %vm1611, %v4537, 0
  %4836 = vmatprep.subr.mxu0 0.0
  %4837 = vmatpush1.msra.mxu0 %v3762
  %4838 = vmatprep.subr.mxu0 0.0
  %4839 = vmatpush1.msra.mxu0 0.0
  %4840 = vmatprep.subr.mxu0 0.0
  %4841 = vmatpush1.msra.mxu0 0.0
  %4842 = vmatprep.subr.mxu0 0.0
  %4843 = vmatpush1.msra.mxu0 0.0
  %4844 = vmatprep.subr.mxu0 0.0
  %4845 = vmatpush1.msra.mxu0 0.0
  %4846 = vmatprep.subr.mxu0 0.0
  %4847 = vmatpush1.msra.mxu0 0.0
  %4848 = vmatprep.subr.mxu0 0.0
  %4849 = vmatpush1.msra.mxu0 0.0
  %4850 = vmatprep.subr.mxu0 0.0
  %4851 = vmatpush1.msra.mxu0 0.0
  %4852 = vmatprep.subr.mxu0 0.0
  %4853 = vmatpush1.msra.mxu0 0.0
  %4854 = vmatprep.subr.mxu0 0.0
  %4855 = vmatpush1.msra.mxu0 0.0
  %4856 = vmatprep.subr.mxu0 0.0
  %4857 = vmatpush1.msra.mxu0 0.0
  %4858 = vmatprep.subr.mxu0 0.0
  %4859 = vmatpush1.msra.mxu0 0.0
  %4860 = vmatprep.subr.mxu0 0.0
  %4861 = vmatpush1.msra.mxu0 0.0
  %4862 = vmatprep.subr.mxu0 0.0
  %4863 = vmatpush1.msra.mxu0 0.0
  %4864 = vmatprep.subr.mxu0 0.0
  %4865 = vmatpush1.msra.mxu0 0.0
  %4866 = vmatprep.subr.mxu0 0.0
  %4867 = vmatpush1.msra.mxu0 0.0
  %4868 = vmatprep.subr.mxu0 0.0
  %4869 = vmatpush1.msra.mxu0 0.0
  %4870 = vmatprep.subr.mxu0 0.0
  %4871 = vmatpush1.msra.mxu0 0.0
  %4872 = vmatprep.subr.mxu0 0.0
  %4873 = vmatpush1.msra.mxu0 0.0
  %4874 = vmatprep.subr.mxu0 0.0
  %4875 = vmatpush1.msra.mxu0 0.0
  %4876 = vmatprep.subr.mxu0 0.0
  %4877 = vmatpush1.msra.mxu0 0.0
  %4878 = vmatprep.subr.mxu0 0.0
  %4879 = vmatpush1.msra.mxu0 0.0
  %4880 = vmatprep.subr.mxu0 0.0
  %4881 = vmatpush1.msra.mxu0 0.0
  %4882 = vmatprep.subr.mxu0 0.0
  %4883 = vmatpush1.msra.mxu0 0.0
  %4884 = vmatprep.subr.mxu0 0.0
  %4885 = vmatpush1.msra.mxu0 0.0
  %4886 = vmatprep.subr.mxu0 0.0
  %4887 = vmatpush1.msra.mxu0 0.0
  %4888 = vmatprep.subr.mxu0 0.0
  %4889 = vmatpush1.msra.mxu0 0.0
  %4890 = vmatprep.subr.mxu0 0.0
  %4891 = vmatpush1.msra.mxu0 0.0
  %4892 = vmatprep.subr.mxu0 0.0
  %4893 = vmatpush1.msra.mxu0 0.0
  %4894 = vmatprep.subr.mxu0 0.0
  %4895 = vmatpush1.msra.mxu0 0.0
  %4896 = vmatprep.subr.mxu0 0.0
  %4897 = vmatpush1.msra.mxu0 0.0
  %4898 = vmatprep.subr.mxu0 0.0
  %4899 = vmatpush1.msra.mxu0 0.0
  %4900 = vmatprep.mubr.f32.mxu0 0.0
  %4901 = vmatmul.mubr.f32.gmra.mrb[0].mxu0 %v4834
  %v4902 = vpop.f32.mrb[0].mxu0
  %v4903 = vadd.f32 0.0, %v4902
  %v4904 = vpop.f32.mrb[0].mxu0
  %4905 = vdwg.mxu0
  %v4907 = vsel %vm1611, %v4538, 0
  %4909 = vmatprep.subr.mxu0 0.0
  %4910 = vmatpush1.msra.mxu0 %v3767
  %4911 = vmatprep.subr.mxu0 0.0
  %4912 = vmatpush1.msra.mxu0 0.0
  %4913 = vmatprep.subr.mxu0 0.0
  %4914 = vmatpush1.msra.mxu0 0.0
  %4915 = vmatprep.subr.mxu0 0.0
  %4916 = vmatpush1.msra.mxu0 0.0
  %4917 = vmatprep.subr.mxu0 0.0
  %4918 = vmatpush1.msra.mxu0 0.0
  %4919 = vmatprep.subr.mxu0 0.0
  %4920 = vmatpush1.msra.mxu0 0.0
  %4921 = vmatprep.subr.mxu0 0.0
  %4922 = vmatpush1.msra.mxu0 0.0
  %4923 = vmatprep.subr.mxu0 0.0
  %4924 = vmatpush1.msra.mxu0 0.0
  %4925 = vmatprep.subr.mxu0 0.0
  %4926 = vmatpush1.msra.mxu0 0.0
  %4927 = vmatprep.subr.mxu0 0.0
  %4928 = vmatpush1.msra.mxu0 0.0
  %4929 = vmatprep.subr.mxu0 0.0
  %4930 = vmatpush1.msra.mxu0 0.0
  %4931 = vmatprep.subr.mxu0 0.0
  %4932 = vmatpush1.msra.mxu0 0.0
  %4933 = vmatprep.subr.mxu0 0.0
  %4934 = vmatpush1.msra.mxu0 0.0
  %4935 = vmatprep.subr.mxu0 0.0
  %4936 = vmatpush1.msra.mxu0 0.0
  %4937 = vmatprep.subr.mxu0 0.0
  %4938 = vmatpush1.msra.mxu0 0.0
  %4939 = vmatprep.subr.mxu0 0.0
  %4940 = vmatpush1.msra.mxu0 0.0
  %4941 = vmatprep.subr.mxu0 0.0
  %4942 = vmatpush1.msra.mxu0 0.0
  %4943 = vmatprep.subr.mxu0 0.0
  %4944 = vmatpush1.msra.mxu0 0.0
  %4945 = vmatprep.subr.mxu0 0.0
  %4946 = vmatpush1.msra.mxu0 0.0
  %4947 = vmatprep.subr.mxu0 0.0
  %4948 = vmatpush1.msra.mxu0 0.0
  %4949 = vmatprep.subr.mxu0 0.0
  %4950 = vmatpush1.msra.mxu0 0.0
  %4951 = vmatprep.subr.mxu0 0.0
  %4952 = vmatpush1.msra.mxu0 0.0
  %4953 = vmatprep.subr.mxu0 0.0
  %4954 = vmatpush1.msra.mxu0 0.0
  %4955 = vmatprep.subr.mxu0 0.0
  %4956 = vmatpush1.msra.mxu0 0.0
  %4957 = vmatprep.subr.mxu0 0.0
  %4958 = vmatpush1.msra.mxu0 0.0
  %4959 = vmatprep.subr.mxu0 0.0
  %4960 = vmatpush1.msra.mxu0 0.0
  %4961 = vmatprep.subr.mxu0 0.0
  %4962 = vmatpush1.msra.mxu0 0.0
  %4963 = vmatprep.subr.mxu0 0.0
  %4964 = vmatpush1.msra.mxu0 0.0
  %4965 = vmatprep.subr.mxu0 0.0
  %4966 = vmatpush1.msra.mxu0 0.0
  %4967 = vmatprep.subr.mxu0 0.0
  %4968 = vmatpush1.msra.mxu0 0.0
  %4969 = vmatprep.subr.mxu0 0.0
  %4970 = vmatpush1.msra.mxu0 0.0
  %4971 = vmatprep.subr.mxu0 0.0
  %4972 = vmatpush1.msra.mxu0 0.0
  %4973 = vmatprep.mubr.f32.mxu0 0.0
  %4974 = vmatmul.mubr.f32.gmra.mrb[0].mxu0 %v4907
  %v4975 = vpop.f32.mrb[0].mxu0
  %v4976 = vadd.f32 0.0, %v4975
  %v4977 = vpop.f32.mrb[0].mxu0
  %4978 = vdwg.mxu0
  %v4980 = vsel %vm1611, %v4539, 0
  %4982 = vmatprep.subr.mxu0 0.0
  %4983 = vmatpush1.msra.mxu0 %v3837
  %4984 = vmatprep.subr.mxu0 0.0
  %4985 = vmatpush1.msra.mxu0 0.0
  %4986 = vmatprep.subr.mxu0 0.0
  %4987 = vmatpush1.msra.mxu0 0.0
  %4988 = vmatprep.subr.mxu0 0.0
  %4989 = vmatpush1.msra.mxu0 0.0
  %4990 = vmatprep.subr.mxu0 0.0
  %4991 = vmatpush1.msra.mxu0 0.0
  %4992 = vmatprep.subr.mxu0 0.0
  %4993 = vmatpush1.msra.mxu0 0.0
  %4994 = vmatprep.subr.mxu0 0.0
  %4995 = vmatpush1.msra.mxu0 0.0
  %4996 = vmatprep.subr.mxu0 0.0
  %4997 = vmatpush1.msra.mxu0 0.0
  %4998 = vmatprep.subr.mxu0 0.0
  %4999 = vmatpush1.msra.mxu0 0.0
  %5000 = vmatprep.subr.mxu0 0.0
  %5001 = vmatpush1.msra.mxu0 0.0
  %5002 = vmatprep.subr.mxu0 0.0
  %5003 = vmatpush1.msra.mxu0 0.0
  %5004 = vmatprep.subr.mxu0 0.0
  %5005 = vmatpush1.msra.mxu0 0.0
  %5006 = vmatprep.subr.mxu0 0.0
  %5007 = vmatpush1.msra.mxu0 0.0
  %5008 = vmatprep.subr.mxu0 0.0
  %5009 = vmatpush1.msra.mxu0 0.0
  %5010 = vmatprep.subr.mxu0 0.0
  %5011 = vmatpush1.msra.mxu0 0.0
  %5012 = vmatprep.subr.mxu0 0.0
  %5013 = vmatpush1.msra.mxu0 0.0
  %5014 = vmatprep.subr.mxu0 0.0
  %5015 = vmatpush1.msra.mxu0 0.0
  %5016 = vmatprep.subr.mxu0 0.0
  %5017 = vmatpush1.msra.mxu0 0.0
  %5018 = vmatprep.subr.mxu0 0.0
  %5019 = vmatpush1.msra.mxu0 0.0
  %5020 = vmatprep.subr.mxu0 0.0
  %5021 = vmatpush1.msra.mxu0 0.0
  %5022 = vmatprep.subr.mxu0 0.0
  %5023 = vmatpush1.msra.mxu0 0.0
  %5024 = vmatprep.subr.mxu0 0.0
  %5025 = vmatpush1.msra.mxu0 0.0
  %5026 = vmatprep.subr.mxu0 0.0
  %5027 = vmatpush1.msra.mxu0 0.0
  %5028 = vmatprep.subr.mxu0 0.0
  %5029 = vmatpush1.msra.mxu0 0.0
  %5030 = vmatprep.subr.mxu0 0.0
  %5031 = vmatpush1.msra.mxu0 0.0
  %5032 = vmatprep.subr.mxu0 0.0
  %5033 = vmatpush1.msra.mxu0 0.0
  %5034 = vmatprep.subr.mxu0 0.0
  %5035 = vmatpush1.msra.mxu0 0.0
  %5036 = vmatprep.subr.mxu0 0.0
  %5037 = vmatpush1.msra.mxu0 0.0
  %5038 = vmatprep.subr.mxu0 0.0
  %5039 = vmatpush1.msra.mxu0 0.0
  %5040 = vmatprep.subr.mxu0 0.0
  %5041 = vmatpush1.msra.mxu0 0.0
  %5042 = vmatprep.subr.mxu0 0.0
  %5043 = vmatpush1.msra.mxu0 0.0
  %5044 = vmatprep.subr.mxu0 0.0
  %5045 = vmatpush1.msra.mxu0 0.0
  %5046 = vmatprep.mubr.f32.mxu0 0.0
  %5047 = vmatmul.mubr.f32.gmra.mrb[0].mxu0 %v4980
  %v5048 = vpop.f32.mrb[0].mxu0
  %v5049 = vadd.f32 0.0, %v5048
  %v5050 = vpop.f32.mrb[0].mxu0
  %5051 = vdwg.mxu0
  %v5053 = vsel %vm1611, %v4540, 0
  %5055 = vmatprep.subr.mxu0 0.0
  %5056 = vmatpush1.msra.mxu0 %v3842
  %5057 = vmatprep.subr.mxu0 0.0
  %5058 = vmatpush1.msra.mxu0 0.0
  %5059 = vmatprep.subr.mxu0 0.0
  %5060 = vmatpush1.msra.mxu0 0.0
  %5061 = vmatprep.subr.mxu0 0.0
  %5062 = vmatpush1.msra.mxu0 0.0
  %5063 = vmatprep.subr.mxu0 0.0
  %5064 = vmatpush1.msra.mxu0 0.0
  %5065 = vmatprep.subr.mxu0 0.0
  %5066 = vmatpush1.msra.mxu0 0.0
  %5067 = vmatprep.subr.mxu0 0.0
  %5068 = vmatpush1.msra.mxu0 0.0
  %5069 = vmatprep.subr.mxu0 0.0
  %5070 = vmatpush1.msra.mxu0 0.0
  %5071 = vmatprep.subr.mxu0 0.0
  %5072 = vmatpush1.msra.mxu0 0.0
  %5073 = vmatprep.subr.mxu0 0.0
  %5074 = vmatpush1.msra.mxu0 0.0
  %5075 = vmatprep.subr.mxu0 0.0
  %5076 = vmatpush1.msra.mxu0 0.0
  %5077 = vmatprep.subr.mxu0 0.0
  %5078 = vmatpush1.msra.mxu0 0.0
  %5079 = vmatprep.subr.mxu0 0.0
  %5080 = vmatpush1.msra.mxu0 0.0
  %5081 = vmatprep.subr.mxu0 0.0
  %5082 = vmatpush1.msra.mxu0 0.0
  %5083 = vmatprep.subr.mxu0 0.0
  %5084 = vmatpush1.msra.mxu0 0.0
  %5085 = vmatprep.subr.mxu0 0.0
  %5086 = vmatpush1.msra.mxu0 0.0
  %5087 = vmatprep.subr.mxu0 0.0
  %5088 = vmatpush1.msra.mxu0 0.0
  %5089 = vmatprep.subr.mxu0 0.0
  %5090 = vmatpush1.msra.mxu0 0.0
  %5091 = vmatprep.subr.mxu0 0.0
  %5092 = vmatpush1.msra.mxu0 0.0
  %5093 = vmatprep.subr.mxu0 0.0
  %5094 = vmatpush1.msra.mxu0 0.0
  %5095 = vmatprep.subr.mxu0 0.0
  %5096 = vmatpush1.msra.mxu0 0.0
  %5097 = vmatprep.subr.mxu0 0.0
  %5098 = vmatpush1.msra.mxu0 0.0
  %5099 = vmatprep.subr.mxu0 0.0
  %5100 = vmatpush1.msra.mxu0 0.0
  %5101 = vmatprep.subr.mxu0 0.0
  %5102 = vmatpush1.msra.mxu0 0.0
  %5103 = vmatprep.subr.mxu0 0.0
  %5104 = vmatpush1.msra.mxu0 0.0
  %5105 = vmatprep.subr.mxu0 0.0
  %5106 = vmatpush1.msra.mxu0 0.0
  %5107 = vmatprep.subr.mxu0 0.0
  %5108 = vmatpush1.msra.mxu0 0.0
  %5109 = vmatprep.subr.mxu0 0.0
  %5110 = vmatpush1.msra.mxu0 0.0
  %5111 = vmatprep.subr.mxu0 0.0
  %5112 = vmatpush1.msra.mxu0 0.0
  %5113 = vmatprep.subr.mxu0 0.0
  %5114 = vmatpush1.msra.mxu0 0.0
  %5115 = vmatprep.subr.mxu0 0.0
  %5116 = vmatpush1.msra.mxu0 0.0
  %5117 = vmatprep.subr.mxu0 0.0
  %5118 = vmatpush1.msra.mxu0 0.0
  %5119 = vmatprep.mubr.f32.mxu0 0.0
  %5120 = vmatmul.mubr.f32.gmra.mrb[0].mxu0 %v5053
  %v5121 = vpop.f32.mrb[0].mxu0
  %v5122 = vadd.f32 0.0, %v5121
  %v5123 = vpop.f32.mrb[0].mxu0
  %5124 = vdwg.mxu0
  %v5125 = vld [vmem:[%s1 + $0x3d0] sm:$0xff]
  %v5126 = vld [vmem:[%s1 + $0x3d8] sm:$0xff]
  %v5127 = vld [vmem:[%s1 + $0x3e0] sm:$0xff]
  %v5128 = vld [vmem:[%s1 + $0x3e8] sm:$0xff]
  %v5129 = vld [vmem:[%s1 + $0x3f0] sm:$0xff]
  %v5130 = vld [vmem:[%s1 + $0x3f8] sm:$0xff]
  %v5131 = vld [vmem:[%s1 + $0x400] sm:$0xff]
  %v5132 = vld [vmem:[%s1 + $0x408] sm:$0xff]
  %v5133 = vld [vmem:[%s1 + $0x410] sm:$0xff]
  %v5134 = vld [vmem:[%s1 + $0x418] sm:$0xff]
  %v5135 = vld [vmem:[%s1 + $0x420] sm:$0xff]
  %v5136 = vld [vmem:[%s1 + $0x428] sm:$0xff]
  %v5137 = vld [vmem:[%s1 + $0x430] sm:$0xff]
  %v5138 = vld [vmem:[%s1 + $0x438] sm:$0xff]
  %v5139 = vld [vmem:[%s1 + $0x440] sm:$0xff]
  %v5140 = vld [vmem:[%s1 + $0x448] sm:$0xff]
  %v5142 = vsel %vm27, %v4611, 0
  %v5145 = vsel %vm27, %v4684, 0
  %5147 = vmatprep.subr.mxu0 0.0
  %5148 = vmatpush1.msra.mxu0 %v5125
  %5149 = vmatprep.subr.mxu0 0.0
  %5150 = vmatpush1.msra.mxu0 %v5126
  %5151 = vmatprep.subr.mxu0 0.0
  %5152 = vmatpush1.msra.mxu0 %v5127
  %5153 = vmatprep.subr.mxu0 0.0
  %5154 = vmatpush1.msra.mxu0 %v5128
  %5155 = vmatprep.subr.mxu0 0.0
  %5156 = vmatpush1.msra.mxu0 0.0
  %5157 = vmatprep.subr.mxu0 0.0
  %5158 = vmatpush1.msra.mxu0 0.0
  %5159 = vmatprep.subr.mxu0 0.0
  %5160 = vmatpush1.msra.mxu0 0.0
  %5161 = vmatprep.subr.mxu0 0.0
  %5162 = vmatpush1.msra.mxu0 0.0
  %5163 = vmatprep.subr.mxu0 0.0
  %5164 = vmatpush1.msra.mxu0 0.0
  %5165 = vmatprep.subr.mxu0 0.0
  %5166 = vmatpush1.msra.mxu0 0.0
  %5167 = vmatprep.subr.mxu0 0.0
  %5168 = vmatpush1.msra.mxu0 0.0
  %5169 = vmatprep.subr.mxu0 0.0
  %5170 = vmatpush1.msra.mxu0 0.0
  %5171 = vmatprep.subr.mxu0 0.0
  %5172 = vmatpush1.msra.mxu0 0.0
  %5173 = vmatprep.subr.mxu0 0.0
  %5174 = vmatpush1.msra.mxu0 0.0
  %5175 = vmatprep.subr.mxu0 0.0
  %5176 = vmatpush1.msra.mxu0 0.0
  %5177 = vmatprep.subr.mxu0 0.0
  %5178 = vmatpush1.msra.mxu0 0.0
  %5179 = vmatprep.subr.mxu0 0.0
  %5180 = vmatpush1.msra.mxu0 0.0
  %5181 = vmatprep.subr.mxu0 0.0
  %5182 = vmatpush1.msra.mxu0 0.0
  %5183 = vmatprep.subr.mxu0 0.0
  %5184 = vmatpush1.msra.mxu0 0.0
  %5185 = vmatprep.subr.mxu0 0.0
  %5186 = vmatpush1.msra.mxu0 0.0
  %5187 = vmatprep.subr.mxu0 0.0
  %5188 = vmatpush1.msra.mxu0 0.0
  %5189 = vmatprep.subr.mxu0 0.0
  %5190 = vmatpush1.msra.mxu0 0.0
  %5191 = vmatprep.subr.mxu0 0.0
  %5192 = vmatpush1.msra.mxu0 0.0
  %5193 = vmatprep.subr.mxu0 0.0
  %5194 = vmatpush1.msra.mxu0 0.0
  %5195 = vmatprep.subr.mxu0 0.0
  %5196 = vmatpush1.msra.mxu0 0.0
  %5197 = vmatprep.subr.mxu0 0.0
  %5198 = vmatpush1.msra.mxu0 0.0
  %5199 = vmatprep.subr.mxu0 0.0
  %5200 = vmatpush1.msra.mxu0 0.0
  %5201 = vmatprep.subr.mxu0 0.0
  %5202 = vmatpush1.msra.mxu0 0.0
  %5203 = vmatprep.subr.mxu0 0.0
  %5204 = vmatpush1.msra.mxu0 0.0
  %5205 = vmatprep.subr.mxu0 0.0
  %5206 = vmatpush1.msra.mxu0 0.0
  %5207 = vmatprep.subr.mxu0 0.0
  %5208 = vmatpush1.msra.mxu0 0.0
  %5209 = vmatprep.subr.mxu0 0.0
  %5210 = vmatpush1.msra.mxu0 0.0
  %5211 = vmatprep.mubr.f32.mxu0 0.0
  %5212 = vmatmul.mubr.f32.gmra.mrb[0].mxu0 %v5142
  %v5213 = vpop.f32.mrb[0].mxu0
  %v5214 = vadd.f32 0.0, %v5213
  %v5215 = vpop.f32.mrb[0].mxu0
  %5216 = vmatprep.mubr.f32.mxu0 0.0
  %5217 = vmatmul.mubr.f32.gmra.mrb[0].mxu0 %v5145
  %v5218 = vpop.f32.mrb[0].mxu0
  %v5219 = vadd.f32 0.0, %v5218
  %v5220 = vpop.f32.mrb[0].mxu0
  %5221 = vdwg.mxu0
  %v5223 = vsel %vm27, %v4757, 0
  %v5226 = vsel %vm27, %v4830, 0
  %5228 = vmatprep.subr.mxu0 0.0
  %5229 = vmatpush1.msra.mxu0 %v5129
  %5230 = vmatprep.subr.mxu0 0.0
  %5231 = vmatpush1.msra.mxu0 %v5130
  %5232 = vmatprep.subr.mxu0 0.0
  %5233 = vmatpush1.msra.mxu0 %v5131
  %5234 = vmatprep.subr.mxu0 0.0
  %5235 = vmatpush1.msra.mxu0 %v5132
  %5236 = vmatprep.subr.mxu0 0.0
  %5237 = vmatpush1.msra.mxu0 0.0
  %5238 = vmatprep.subr.mxu0 0.0
  %5239 = vmatpush1.msra.mxu0 0.0
  %5240 = vmatprep.subr.mxu0 0.0
  %5241 = vmatpush1.msra.mxu0 0.0
  %5242 = vmatprep.subr.mxu0 0.0
  %5243 = vmatpush1.msra.mxu0 0.0
  %5244 = vmatprep.subr.mxu0 0.0
  %5245 = vmatpush1.msra.mxu0 0.0
  %5246 = vmatprep.subr.mxu0 0.0
  %5247 = vmatpush1.msra.mxu0 0.0
  %5248 = vmatprep.subr.mxu0 0.0
  %5249 = vmatpush1.msra.mxu0 0.0
  %5250 = vmatprep.subr.mxu0 0.0
  %5251 = vmatpush1.msra.mxu0 0.0
  %5252 = vmatprep.subr.mxu0 0.0
  %5253 = vmatpush1.msra.mxu0 0.0
  %5254 = vmatprep.subr.mxu0 0.0
  %5255 = vmatpush1.msra.mxu0 0.0
  %5256 = vmatprep.subr.mxu0 0.0
  %5257 = vmatpush1.msra.mxu0 0.0
  %5258 = vmatprep.subr.mxu0 0.0
  %5259 = vmatpush1.msra.mxu0 0.0
  %5260 = vmatprep.subr.mxu0 0.0
  %5261 = vmatpush1.msra.mxu0 0.0
  %5262 = vmatprep.subr.mxu0 0.0
  %5263 = vmatpush1.msra.mxu0 0.0
  %5264 = vmatprep.subr.mxu0 0.0
  %5265 = vmatpush1.msra.mxu0 0.0
  %5266 = vmatprep.subr.mxu0 0.0
  %5267 = vmatpush1.msra.mxu0 0.0
  %5268 = vmatprep.subr.mxu0 0.0
  %5269 = vmatpush1.msra.mxu0 0.0
  %5270 = vmatprep.subr.mxu0 0.0
  %5271 = vmatpush1.msra.mxu0 0.0
  %5272 = vmatprep.subr.mxu0 0.0
  %5273 = vmatpush1.msra.mxu0 0.0
  %5274 = vmatprep.subr.mxu0 0.0
  %5275 = vmatpush1.msra.mxu0 0.0
  %5276 = vmatprep.subr.mxu0 0.0
  %5277 = vmatpush1.msra.mxu0 0.0
  %5278 = vmatprep.subr.mxu0 0.0
  %5279 = vmatpush1.msra.mxu0 0.0
  %5280 = vmatprep.subr.mxu0 0.0
  %5281 = vmatpush1.msra.mxu0 0.0
  %5282 = vmatprep.subr.mxu0 0.0
  %5283 = vmatpush1.msra.mxu0 0.0
  %5284 = vmatprep.subr.mxu0 0.0
  %5285 = vmatpush1.msra.mxu0 0.0
  %5286 = vmatprep.subr.mxu0 0.0
  %5287 = vmatpush1.msra.mxu0 0.0
  %5288 = vmatprep.subr.mxu0 0.0
  %5289 = vmatpush1.msra.mxu0 0.0
  %5290 = vmatprep.subr.mxu0 0.0
  %5291 = vmatpush1.msra.mxu0 0.0
  %5292 = vmatprep.mubr.f32.mxu0 0.0
  %5293 = vmatmul.mubr.f32.gmra.mrb[0].mxu0 %v5223
  %v5294 = vpop.f32.mrb[0].mxu0
  %v5295 = vadd.f32 0.0, %v5294
  %v5296 = vpop.f32.mrb[0].mxu0
  %5297 = vmatprep.mubr.f32.mxu0 0.0
  %5298 = vmatmul.mubr.f32.gmra.mrb[0].mxu0 %v5226
  %v5299 = vpop.f32.mrb[0].mxu0
  %v5300 = vadd.f32 0.0, %v5299
  %v5301 = vpop.f32.mrb[0].mxu0
  %5302 = vdwg.mxu0
  %v5304 = vsel %vm27, %v4903, 0
  %v5307 = vsel %vm27, %v4976, 0
  %5309 = vmatprep.subr.mxu0 0.0
  %5310 = vmatpush1.msra.mxu0 %v5133
  %5311 = vmatprep.subr.mxu0 0.0
  %5312 = vmatpush1.msra.mxu0 %v5134
  %5313 = vmatprep.subr.mxu0 0.0
  %5314 = vmatpush1.msra.mxu0 %v5135
  %5315 = vmatprep.subr.mxu0 0.0
  %5316 = vmatpush1.msra.mxu0 %v5136
  %5317 = vmatprep.subr.mxu0 0.0
  %5318 = vmatpush1.msra.mxu0 0.0
  %5319 = vmatprep.subr.mxu0 0.0
  %5320 = vmatpush1.msra.mxu0 0.0
  %5321 = vmatprep.subr.mxu0 0.0
  %5322 = vmatpush1.msra.mxu0 0.0
  %5323 = vmatprep.subr.mxu0 0.0
  %5324 = vmatpush1.msra.mxu0 0.0
  %5325 = vmatprep.subr.mxu0 0.0
  %5326 = vmatpush1.msra.mxu0 0.0
  %5327 = vmatprep.subr.mxu0 0.0
  %5328 = vmatpush1.msra.mxu0 0.0
  %5329 = vmatprep.subr.mxu0 0.0
  %5330 = vmatpush1.msra.mxu0 0.0
  %5331 = vmatprep.subr.mxu0 0.0
  %5332 = vmatpush1.msra.mxu0 0.0
  %5333 = vmatprep.subr.mxu0 0.0
  %5334 = vmatpush1.msra.mxu0 0.0
  %5335 = vmatprep.subr.mxu0 0.0
  %5336 = vmatpush1.msra.mxu0 0.0
  %5337 = vmatprep.subr.mxu0 0.0
  %5338 = vmatpush1.msra.mxu0 0.0
  %5339 = vmatprep.subr.mxu0 0.0
  %5340 = vmatpush1.msra.mxu0 0.0
  %5341 = vmatprep.subr.mxu0 0.0
  %5342 = vmatpush1.msra.mxu0 0.0
  %5343 = vmatprep.subr.mxu0 0.0
  %5344 = vmatpush1.msra.mxu0 0.0
  %5345 = vmatprep.subr.mxu0 0.0
  %5346 = vmatpush1.msra.mxu0 0.0
  %5347 = vmatprep.subr.mxu0 0.0
  %5348 = vmatpush1.msra.mxu0 0.0
  %5349 = vmatprep.subr.mxu0 0.0
  %5350 = vmatpush1.msra.mxu0 0.0
  %5351 = vmatprep.subr.mxu0 0.0
  %5352 = vmatpush1.msra.mxu0 0.0
  %5353 = vmatprep.subr.mxu0 0.0
  %5354 = vmatpush1.msra.mxu0 0.0
  %5355 = vmatprep.subr.mxu0 0.0
  %5356 = vmatpush1.msra.mxu0 0.0
  %5357 = vmatprep.subr.mxu0 0.0
  %5358 = vmatpush1.msra.mxu0 0.0
  %5359 = vmatprep.subr.mxu0 0.0
  %5360 = vmatpush1.msra.mxu0 0.0
  %5361 = vmatprep.subr.mxu0 0.0
  %5362 = vmatpush1.msra.mxu0 0.0
  %5363 = vmatprep.subr.mxu0 0.0
  %5364 = vmatpush1.msra.mxu0 0.0
  %5365 = vmatprep.subr.mxu0 0.0
  %5366 = vmatpush1.msra.mxu0 0.0
  %5367 = vmatprep.subr.mxu0 0.0
  %5368 = vmatpush1.msra.mxu0 0.0
  %5369 = vmatprep.subr.mxu0 0.0
  %5370 = vmatpush1.msra.mxu0 0.0
  %5371 = vmatprep.subr.mxu0 0.0
  %5372 = vmatpush1.msra.mxu0 0.0
  %5373 = vmatprep.mubr.f32.mxu0 0.0
  %5374 = vmatmul.mubr.f32.gmra.mrb[0].mxu0 %v5304
  %v5375 = vpop.f32.mrb[0].mxu0
  %v5376 = vadd.f32 0.0, %v5375
  %v5377 = vpop.f32.mrb[0].mxu0
  %5378 = vmatprep.mubr.f32.mxu0 0.0
  %5379 = vmatmul.mubr.f32.gmra.mrb[0].mxu0 %v5307
  %v5380 = vpop.f32.mrb[0].mxu0
  %v5381 = vadd.f32 0.0, %v5380
  %v5382 = vpop.f32.mrb[0].mxu0
  %5383 = vdwg.mxu0
  %v5385 = vsel %vm27, %v5049, 0
  %v5388 = vsel %vm27, %v5122, 0
  %5390 = vmatprep.subr.mxu0 0.0
  %5391 = vmatpush1.msra.mxu0 %v5137
  %5392 = vmatprep.subr.mxu0 0.0
  %5393 = vmatpush1.msra.mxu0 %v5138
  %5394 = vmatprep.subr.mxu0 0.0
  %5395 = vmatpush1.msra.mxu0 %v5139
  %5396 = vmatprep.subr.mxu0 0.0
  %5397 = vmatpush1.msra.mxu0 %v5140
  %5398 = vmatprep.subr.mxu0 0.0
  %5399 = vmatpush1.msra.mxu0 0.0
  %5400 = vmatprep.subr.mxu0 0.0
  %5401 = vmatpush1.msra.mxu0 0.0
  %5402 = vmatprep.subr.mxu0 0.0
  %5403 = vmatpush1.msra.mxu0 0.0
  %5404 = vmatprep.subr.mxu0 0.0
  %5405 = vmatpush1.msra.mxu0 0.0
  %5406 = vmatprep.subr.mxu0 0.0
  %5407 = vmatpush1.msra.mxu0 0.0
  %5408 = vmatprep.subr.mxu0 0.0
  %5409 = vmatpush1.msra.mxu0 0.0
  %5410 = vmatprep.subr.mxu0 0.0
  %5411 = vmatpush1.msra.mxu0 0.0
  %5412 = vmatprep.subr.mxu0 0.0
  %5413 = vmatpush1.msra.mxu0 0.0
  %5414 = vmatprep.subr.mxu0 0.0
  %5415 = vmatpush1.msra.mxu0 0.0
  %5416 = vmatprep.subr.mxu0 0.0
  %5417 = vmatpush1.msra.mxu0 0.0
  %5418 = vmatprep.subr.mxu0 0.0
  %5419 = vmatpush1.msra.mxu0 0.0
  %5420 = vmatprep.subr.mxu0 0.0
  %5421 = vmatpush1.msra.mxu0 0.0
  %5422 = vmatprep.subr.mxu0 0.0
  %5423 = vmatpush1.msra.mxu0 0.0
  %5424 = vmatprep.subr.mxu0 0.0
  %5425 = vmatpush1.msra.mxu0 0.0
  %5426 = vmatprep.subr.mxu0 0.0
  %5427 = vmatpush1.msra.mxu0 0.0
  %5428 = vmatprep.subr.mxu0 0.0
  %5429 = vmatpush1.msra.mxu0 0.0
  %5430 = vmatprep.subr.mxu0 0.0
  %5431 = vmatpush1.msra.mxu0 0.0
  %5432 = vmatprep.subr.mxu0 0.0
  %5433 = vmatpush1.msra.mxu0 0.0
  %5434 = vmatprep.subr.mxu0 0.0
  %5435 = vmatpush1.msra.mxu0 0.0
  %5436 = vmatprep.subr.mxu0 0.0
  %5437 = vmatpush1.msra.mxu0 0.0
  %5438 = vmatprep.subr.mxu0 0.0
  %5439 = vmatpush1.msra.mxu0 0.0
  %5440 = vmatprep.subr.mxu0 0.0
  %5441 = vmatpush1.msra.mxu0 0.0
  %5442 = vmatprep.subr.mxu0 0.0
  %5443 = vmatpush1.msra.mxu0 0.0
  %5444 = vmatprep.subr.mxu0 0.0
  %5445 = vmatpush1.msra.mxu0 0.0
  %5446 = vmatprep.subr.mxu0 0.0
  %5447 = vmatpush1.msra.mxu0 0.0
  %5448 = vmatprep.subr.mxu0 0.0
  %5449 = vmatpush1.msra.mxu0 0.0
  %5450 = vmatprep.subr.mxu0 0.0
  %5451 = vmatpush1.msra.mxu0 0.0
  %5452 = vmatprep.subr.mxu0 0.0
  %5453 = vmatpush1.msra.mxu0 0.0
  %5454 = vmatprep.mubr.f32.mxu0 0.0
  %5455 = vmatmul.mubr.f32.gmra.mrb[0].mxu0 %v5385
  %v5456 = vpop.f32.mrb[0].mxu0
  %v5457 = vadd.f32 0.0, %v5456
  %v5458 = vpop.f32.mrb[0].mxu0
  %5459 = vmatprep.mubr.f32.mxu0 0.0
  %5460 = vmatmul.mubr.f32.gmra.mrb[0].mxu0 %v5388
  %v5461 = vpop.f32.mrb[0].mxu0
  %v5462 = vadd.f32 0.0, %v5461
  %v5463 = vpop.f32.mrb[0].mxu0
  %5464 = vdwg.mxu0
  %v5465 = vsel %vm27, %v5214, 0.0
  %v5466 = vsel %vm27, %v5295, 0.0
  %v5467 = vadd.f32 %v5465, %v5466
  %v5468 = vsel %vm27, %v5376, 0.0
  %v5469 = vadd.f32 %v5467, %v5468
  %v5470 = vsel %vm27, %v5457, 0.0
  %v5471 = vadd.f32 %v5469, %v5470
  %v5472 = vsel %vm27, %v5219, 0.0
  %v5473 = vsel %vm27, %v5300, 0.0
  %v5474 = vadd.f32 %v5472, %v5473
  %v5475 = vsel %vm27, %v5381, 0.0
  %v5476 = vadd.f32 %v5474, %v5475
  %v5477 = vsel %vm27, %v5462, 0.0
  %v5478 = vadd.f32 %v5476, %v5477
  %v5479 = vadd.f32 %v2866, %v5471
  %v5480 = vadd.f32 %v2867, %v5478
  %v5481 = vld [vmem:[%s1 + $0x498] sm:$0x1]
  %v5482 = vmul.f32 %v5479, %v5479
  %v5483 = vmul.f32 %v5480, %v5480
  %v5484 = vsel %vm27, %v5482, 0.0
  %5485 = vadd.xlane.f32.xlu0 %v5484
  %v5486 = vpop.xlane.xlu0 %5485
  %v5487 = vsel %vm27, %v5483, 0.0
  %5488 = vadd.xlane.f32.xlu0 %v5487
  %v5489 = vpop.xlane.xlu0 %5488
  %v5490 = vmul.f32 %v5486, %v34
  %v5491 = vmul.f32 %v5489, %v34
  %v5492 = vadd.f32 %v5490, 1e-06
  %v5493 = vadd.f32 %v5491, 1e-06
  %v5494 = vrsqrt.pop %v5492
  %v5495 = vrsqrt.pop %v5493
  %v5496 = vmul.f32 %v5479, %v5494
  %v5497 = vmul.f32 %v5480, %v5495
  %v5498 = vlaneseq
  %v5499 = vshrl.u32 %v5498, 7
  %v5500 = vsub.s32 0, %v5499
  %v5501 = vrot.slane %v5481, %v5500
  %v5502 = vmul.f32 %v5496, %v5501
  %v5503 = vmul.f32 %v5497, %v5501
  %v5504 = vld [vmem:[%s2 + $0x20] sm:$0xff]
  %v5505 = vld [vmem:[%s2 + $0x28] sm:$0xff]
  %v5506 = vld [vmem:[%s2 + $0x30] sm:$0xff]
  %v5507 = vld [vmem:[%s2 + $0x38] sm:$0xff]
  %v5509 = vsel %vm27, %v5502, 0
  %v5512 = vsel %vm27, %v5503, 0
  %5514 = vmatprep.subr.mxu0 0.0
  %5515 = vmatpush1.msra.mxu0 %v5504
  %5516 = vmatprep.subr.mxu0 0.0
  %5517 = vmatpush1.msra.mxu0 %v5505
  %5518 = vmatprep.subr.mxu0 0.0
  %5519 = vmatpush1.msra.mxu0 %v5506
  %5520 = vmatprep.subr.mxu0 0.0
  %5521 = vmatpush1.msra.mxu0 %v5507
  %5522 = vmatprep.subr.mxu0 0.0
  %5523 = vmatpush1.msra.mxu0 0.0
  %5524 = vmatprep.subr.mxu0 0.0
  %5525 = vmatpush1.msra.mxu0 0.0
  %5526 = vmatprep.subr.mxu0 0.0
  %5527 = vmatpush1.msra.mxu0 0.0
  %5528 = vmatprep.subr.mxu0 0.0
  %5529 = vmatpush1.msra.mxu0 0.0
  %5530 = vmatprep.subr.mxu0 0.0
  %5531 = vmatpush1.msra.mxu0 0.0
  %5532 = vmatprep.subr.mxu0 0.0
  %5533 = vmatpush1.msra.mxu0 0.0
  %5534 = vmatprep.subr.mxu0 0.0
  %5535 = vmatpush1.msra.mxu0 0.0
  %5536 = vmatprep.subr.mxu0 0.0
  %5537 = vmatpush1.msra.mxu0 0.0
  %5538 = vmatprep.subr.mxu0 0.0
  %5539 = vmatpush1.msra.mxu0 0.0
  %5540 = vmatprep.subr.mxu0 0.0
  %5541 = vmatpush1.msra.mxu0 0.0
  %5542 = vmatprep.subr.mxu0 0.0
  %5543 = vmatpush1.msra.mxu0 0.0
  %5544 = vmatprep.subr.mxu0 0.0
  %5545 = vmatpush1.msra.mxu0 0.0
  %5546 = vmatprep.subr.mxu0 0.0
  %5547 = vmatpush1.msra.mxu0 0.0
  %5548 = vmatprep.subr.mxu0 0.0
  %5549 = vmatpush1.msra.mxu0 0.0
  %5550 = vmatprep.subr.mxu0 0.0
  %5551 = vmatpush1.msra.mxu0 0.0
  %5552 = vmatprep.subr.mxu0 0.0
  %5553 = vmatpush1.msra.mxu0 0.0
  %5554 = vmatprep.subr.mxu0 0.0
  %5555 = vmatpush1.msra.mxu0 0.0
  %5556 = vmatprep.subr.mxu0 0.0
  %5557 = vmatpush1.msra.mxu0 0.0
  %5558 = vmatprep.subr.mxu0 0.0
  %5559 = vmatpush1.msra.mxu0 0.0
  %5560 = vmatprep.subr.mxu0 0.0
  %5561 = vmatpush1.msra.mxu0 0.0
  %5562 = vmatprep.subr.mxu0 0.0
  %5563 = vmatpush1.msra.mxu0 0.0
  %5564 = vmatprep.subr.mxu0 0.0
  %5565 = vmatpush1.msra.mxu0 0.0
  %5566 = vmatprep.subr.mxu0 0.0
  %5567 = vmatpush1.msra.mxu0 0.0
  %5568 = vmatprep.subr.mxu0 0.0
  %5569 = vmatpush1.msra.mxu0 0.0
  %5570 = vmatprep.subr.mxu0 0.0
  %5571 = vmatpush1.msra.mxu0 0.0
  %5572 = vmatprep.subr.mxu0 0.0
  %5573 = vmatpush1.msra.mxu0 0.0
  %5574 = vmatprep.subr.mxu0 0.0
  %5575 = vmatpush1.msra.mxu0 0.0
  %5576 = vmatprep.subr.mxu0 0.0
  %5577 = vmatpush1.msra.mxu0 0.0
  %5578 = vmatprep.mubr.f32.mxu0 0.0
  %5579 = vmatmul.mubr.f32.gmra.mrb[0].mxu0 %v5509
  %v5580 = vpop.f32.mrb[0].mxu0
  %v5581 = vadd.f32 0.0, %v5580
  %v5582 = vpop.f32.mrb[0].mxu0
  %5583 = vmatprep.mubr.f32.mxu0 0.0
  %5584 = vmatmul.mubr.f32.gmra.mrb[0].mxu0 %v5512
  %v5585 = vpop.f32.mrb[0].mxu0
  %v5586 = vadd.f32 0.0, %v5585
  %v5587 = vpop.f32.mrb[0].mxu0
  %5588 = vdwg.mxu0
  %v5589 = vmul.f32 %v5581, 0.5
  %v5590 = vmul.f32 %v5586, 0.5
  %v5591 = vmul.f32 %v5581, 0.044715
  %v5592 = vmul.f32 %v5586, 0.044715
  %v5593 = vmul.f32 %v5591, %v5581
  %v5594 = vmul.f32 %v5592, %v5586
  %v5595 = vmul.f32 %v5593, %v5581
  %v5596 = vmul.f32 %v5594, %v5586
  %v5597 = vadd.f32 %v5581, %v5595
  %v5598 = vadd.f32 %v5586, %v5596
  %v5599 = vmul.f32 %v5597, 0.7978846
  %v5600 = vmul.f32 %v5598, 0.7978846
  %v5601 = vtanh.pop %v5599
  %v5602 = vtanh.pop %v5600
  %v5603 = vadd.f32 %v5601, 1.0
  %v5604 = vadd.f32 %v5602, 1.0
  %v5605 = vmul.f32 %v5589, %v5603
  %v5606 = vmul.f32 %v5590, %v5604
  %5609 = vrot.lane.b32.xlu0 %v5581, 64
  %v5610 = vpop.permute.xlu0 %5609
  %5611 = vrot.lane.b32.xlu0 %v5586, 64
  %v5612 = vpop.permute.xlu0 %5611
  %v5615 = vmul.f32 %v5605, %v5610
  %v5616 = vmul.f32 %v5606, %v5612
  %v5617 = vld [vmem:[%s1 + $0x450] sm:$0xff]
  %v5618 = vld [vmem:[%s1 + $0x458] sm:$0xff]
  %v5619 = vld [vmem:[%s1 + $0x460] sm:$0xff]
  %v5620 = vld [vmem:[%s1 + $0x468] sm:$0xff]
  %v5621 = vld [vmem:[%s1 + $0x470] sm:$0xff]
  %v5622 = vld [vmem:[%s1 + $0x478] sm:$0xff]
  %v5623 = vld [vmem:[%s1 + $0x480] sm:$0xff]
  %v5624 = vld [vmem:[%s1 + $0x488] sm:$0xff]
  %v5626 = vsel %vm2784, %v5615, 0
  %v5629 = vsel %vm2784, %v5616, 0
  %5631 = vmatprep.subr.mxu0 0.0
  %5632 = vmatpush1.msra.mxu0 %v5617
  %5633 = vmatprep.subr.mxu0 0.0
  %5634 = vmatpush1.msra.mxu0 %v5618
  %5635 = vmatprep.subr.mxu0 0.0
  %5636 = vmatpush1.msra.mxu0 %v5619
  %5637 = vmatprep.subr.mxu0 0.0
  %5638 = vmatpush1.msra.mxu0 %v5620
  %5639 = vmatprep.subr.mxu0 0.0
  %5640 = vmatpush1.msra.mxu0 %v5621
  %5641 = vmatprep.subr.mxu0 0.0
  %5642 = vmatpush1.msra.mxu0 %v5622
  %5643 = vmatprep.subr.mxu0 0.0
  %5644 = vmatpush1.msra.mxu0 %v5623
  %5645 = vmatprep.subr.mxu0 0.0
  %5646 = vmatpush1.msra.mxu0 %v5624
  %5647 = vmatprep.subr.mxu0 0.0
  %5648 = vmatpush1.msra.mxu0 0.0
  %5649 = vmatprep.subr.mxu0 0.0
  %5650 = vmatpush1.msra.mxu0 0.0
  %5651 = vmatprep.subr.mxu0 0.0
  %5652 = vmatpush1.msra.mxu0 0.0
  %5653 = vmatprep.subr.mxu0 0.0
  %5654 = vmatpush1.msra.mxu0 0.0
  %5655 = vmatprep.subr.mxu0 0.0
  %5656 = vmatpush1.msra.mxu0 0.0
  %5657 = vmatprep.subr.mxu0 0.0
  %5658 = vmatpush1.msra.mxu0 0.0
  %5659 = vmatprep.subr.mxu0 0.0
  %5660 = vmatpush1.msra.mxu0 0.0
  %5661 = vmatprep.subr.mxu0 0.0
  %5662 = vmatpush1.msra.mxu0 0.0
  %5663 = vmatprep.subr.mxu0 0.0
  %5664 = vmatpush1.msra.mxu0 0.0
  %5665 = vmatprep.subr.mxu0 0.0
  %5666 = vmatpush1.msra.mxu0 0.0
  %5667 = vmatprep.subr.mxu0 0.0
  %5668 = vmatpush1.msra.mxu0 0.0
  %5669 = vmatprep.subr.mxu0 0.0
  %5670 = vmatpush1.msra.mxu0 0.0
  %5671 = vmatprep.subr.mxu0 0.0
  %5672 = vmatpush1.msra.mxu0 0.0
  %5673 = vmatprep.subr.mxu0 0.0
  %5674 = vmatpush1.msra.mxu0 0.0
  %5675 = vmatprep.subr.mxu0 0.0
  %5676 = vmatpush1.msra.mxu0 0.0
  %5677 = vmatprep.subr.mxu0 0.0
  %5678 = vmatpush1.msra.mxu0 0.0
  %5679 = vmatprep.subr.mxu0 0.0
  %5680 = vmatpush1.msra.mxu0 0.0
  %5681 = vmatprep.subr.mxu0 0.0
  %5682 = vmatpush1.msra.mxu0 0.0
  %5683 = vmatprep.subr.mxu0 0.0
  %5684 = vmatpush1.msra.mxu0 0.0
  %5685 = vmatprep.subr.mxu0 0.0
  %5686 = vmatpush1.msra.mxu0 0.0
  %5687 = vmatprep.subr.mxu0 0.0
  %5688 = vmatpush1.msra.mxu0 0.0
  %5689 = vmatprep.subr.mxu0 0.0
  %5690 = vmatpush1.msra.mxu0 0.0
  %5691 = vmatprep.subr.mxu0 0.0
  %5692 = vmatpush1.msra.mxu0 0.0
  %5693 = vmatprep.subr.mxu0 0.0
  %5694 = vmatpush1.msra.mxu0 0.0
  %5695 = vmatprep.mubr.f32.mxu0 0.0
  %5696 = vmatmul.mubr.f32.gmra.mrb[0].mxu0 %v5626
  %v5697 = vpop.f32.mrb[0].mxu0
  %v5698 = vadd.f32 0.0, %v5697
  %v5699 = vpop.f32.mrb[0].mxu0
  %5700 = vmatprep.mubr.f32.mxu0 0.0
  %5701 = vmatmul.mubr.f32.gmra.mrb[0].mxu0 %v5629
  %v5702 = vpop.f32.mrb[0].mxu0
  %v5703 = vadd.f32 0.0, %v5702
  %v5704 = vpop.f32.mrb[0].mxu0
  %5705 = vdwg.mxu0
  %v5706 = vadd.f32 %v5479, %v5698
  %v5707 = vadd.f32 %v5480, %v5703
  %v5708 = vld [vmem:[%s1 + $0x4a0] sm:$0x1]
  %v5709 = vmul.f32 %v5706, %v5706
  %v5710 = vmul.f32 %v5707, %v5707
  %v5711 = vsel %vm27, %v5709, 0.0
  %5712 = vadd.xlane.f32.xlu0 %v5711
  %v5713 = vpop.xlane.xlu0 %5712
  %v5714 = vsel %vm27, %v5710, 0.0
  %5715 = vadd.xlane.f32.xlu0 %v5714
  %v5716 = vpop.xlane.xlu0 %5715
  %v5717 = vmul.f32 %v5713, %v34
  %v5718 = vmul.f32 %v5716, %v34
  %v5719 = vadd.f32 %v5717, 1e-06
  %v5720 = vadd.f32 %v5718, 1e-06
  %v5721 = vrsqrt.pop %v5719
  %v5722 = vrsqrt.pop %v5720
  %v5723 = vmul.f32 %v5706, %v5721
  %v5724 = vmul.f32 %v5707, %v5722
  %v5725 = vlaneseq
  %v5726 = vshrl.u32 %v5725, 7
  %v5727 = vsub.s32 0, %v5726
  %v5728 = vrot.slane %v5708, %v5727
  %v5729 = vmul.f32 %v5723, %v5728
  %v5730 = vmul.f32 %v5724, %v5728
  %v5731 = vld [vmem:[%s2 + $0x40] sm:$0xff]
  %v5732 = vld [vmem:[%s2 + $0x48] sm:$0xff]
  %v5733 = vld [vmem:[%s2 + $0x50] sm:$0xff]
  %v5734 = vld [vmem:[%s2 + $0x58] sm:$0xff]
  %v5736 = vsel %vm27, %v5729, 0
  %v5739 = vsel %vm27, %v5730, 0
  %5741 = vmatprep.subr.mxu0 0.0
  %5742 = vmatpush1.msra.mxu0 %v5731
  %5743 = vmatprep.subr.mxu0 0.0
  %5744 = vmatpush1.msra.mxu0 %v5732
  %5745 = vmatprep.subr.mxu0 0.0
  %5746 = vmatpush1.msra.mxu0 %v5733
  %5747 = vmatprep.subr.mxu0 0.0
  %5748 = vmatpush1.msra.mxu0 %v5734
  %5749 = vmatprep.subr.mxu0 0.0
  %5750 = vmatpush1.msra.mxu0 0.0
  %5751 = vmatprep.subr.mxu0 0.0
  %5752 = vmatpush1.msra.mxu0 0.0
  %5753 = vmatprep.subr.mxu0 0.0
  %5754 = vmatpush1.msra.mxu0 0.0
  %5755 = vmatprep.subr.mxu0 0.0
  %5756 = vmatpush1.msra.mxu0 0.0
  %5757 = vmatprep.subr.mxu0 0.0
  %5758 = vmatpush1.msra.mxu0 0.0
  %5759 = vmatprep.subr.mxu0 0.0
  %5760 = vmatpush1.msra.mxu0 0.0
  %5761 = vmatprep.subr.mxu0 0.0
  %5762 = vmatpush1.msra.mxu0 0.0
  %5763 = vmatprep.subr.mxu0 0.0
  %5764 = vmatpush1.msra.mxu0 0.0
  %5765 = vmatprep.subr.mxu0 0.0
  %5766 = vmatpush1.msra.mxu0 0.0
  %5767 = vmatprep.subr.mxu0 0.0
  %5768 = vmatpush1.msra.mxu0 0.0
  %5769 = vmatprep.subr.mxu0 0.0
  %5770 = vmatpush1.msra.mxu0 0.0
  %5771 = vmatprep.subr.mxu0 0.0
  %5772 = vmatpush1.msra.mxu0 0.0
  %5773 = vmatprep.subr.mxu0 0.0
  %5774 = vmatpush1.msra.mxu0 0.0
  %5775 = vmatprep.subr.mxu0 0.0
  %5776 = vmatpush1.msra.mxu0 0.0
  %5777 = vmatprep.subr.mxu0 0.0
  %5778 = vmatpush1.msra.mxu0 0.0
  %5779 = vmatprep.subr.mxu0 0.0
  %5780 = vmatpush1.msra.mxu0 0.0
  %5781 = vmatprep.subr.mxu0 0.0
  %5782 = vmatpush1.msra.mxu0 0.0
  %5783 = vmatprep.subr.mxu0 0.0
  %5784 = vmatpush1.msra.mxu0 0.0
  %5785 = vmatprep.subr.mxu0 0.0
  %5786 = vmatpush1.msra.mxu0 0.0
  %5787 = vmatprep.subr.mxu0 0.0
  %5788 = vmatpush1.msra.mxu0 0.0
  %5789 = vmatprep.subr.mxu0 0.0
  %5790 = vmatpush1.msra.mxu0 0.0
  %5791 = vmatprep.subr.mxu0 0.0
  %5792 = vmatpush1.msra.mxu0 0.0
  %5793 = vmatprep.subr.mxu0 0.0
  %5794 = vmatpush1.msra.mxu0 0.0
  %5795 = vmatprep.subr.mxu0 0.0
  %5796 = vmatpush1.msra.mxu0 0.0
  %5797 = vmatprep.subr.mxu0 0.0
  %5798 = vmatpush1.msra.mxu0 0.0
  %5799 = vmatprep.subr.mxu0 0.0
  %5800 = vmatpush1.msra.mxu0 0.0
  %5801 = vmatprep.subr.mxu0 0.0
  %5802 = vmatpush1.msra.mxu0 0.0
  %5803 = vmatprep.subr.mxu0 0.0
  %5804 = vmatpush1.msra.mxu0 0.0
  %5805 = vmatprep.mubr.f32.mxu0 0.0
  %5806 = vmatmul.mubr.f32.gmra.mrb[0].mxu0 %v5736
  %v5807 = vpop.f32.mrb[0].mxu0
  %v5808 = vadd.f32 0.0, %v5807
  %v5809 = vpop.f32.mrb[0].mxu0
  %5810 = vmatprep.mubr.f32.mxu0 0.0
  %5811 = vmatmul.mubr.f32.gmra.mrb[0].mxu0 %v5739
  %v5812 = vpop.f32.mrb[0].mxu0
  %v5813 = vadd.f32 0.0, %v5812
  %v5814 = vpop.f32.mrb[0].mxu0
  %5815 = vdwg.mxu0
  %5816 = vst [vmem:[%s3] sm:$0xff] %v5808
  %5817 = vst [vmem:[%s3 + $0x8] sm:$0xff] %v5813
  // Predicated region
  $region14: #{t5_forward.1} parent=0 // pred_check
    _
  $region15: #{t5_forward.1} parent=0 // pred_check_branch
    %5819 = sbr.rel (0) target = $region17
  $region16: #{t5_forward.1} parent=0 // pred_region
    _
  $region17: #{t5_forward.1} parent=0 // pred_fallthru
    _
  // Predicated region
  $region18: #{t5_forward.1} parent=0 // pred_check
    _
  $region19: #{t5_forward.1} parent=0 // pred_check_branch
    %5821 = sbr.rel (0) target = $region21
  $region20: #{t5_forward.1} parent=0 // pred_region
    _
  $region21: #{t5_forward.1} parent=0 // pred_fallthru
    _

</llo_original>
